<compile_context>
chip_gen: v7x
topology: tpu7x:2x2x1
jax: 0.10.0
libtpu: 0.0.40
codegen_flags: <defaults>
</compile_context>

<pallas_src>
import jax
import jax.numpy as jnp
from jax.experimental import pallas as pl
from jax.experimental.pallas import tpu as pltpu

# torch.finfo(torch.float32).eps == jnp.finfo(jnp.float32).eps == 2**-23
EPS = float(jnp.finfo(jnp.float32).eps)


def mi_loss_kernel(i1_ref, i2_ref, t_ref, loss_ref):
    # i1_ref : (Bt, K, 1) column histograms   (VMEM)
    # i2_ref : (Bt, 1, K) row histograms      (VMEM)
    # t_ref  : (Bt, K, K) joint histograms    (VMEM)
    # loss_ref: (Bt, 1)  per-batch loss block (VMEM)
    col = i1_ref[...]                  # (Bt, K, 1)
    row = i2_ref[...]                  # (Bt, 1, K)
    t = t_ref[...]                     # (Bt, K, K)

    # Outer product + eps (== torch.matmul(i1^T, i2) + eps), pure VPU broadcast.
    prod = col * row + EPS             # (Bt, K, K)

    # Exact rewrite of t * log(t/prod + EPS) without a divide:
    #   t/prod + EPS = (t + EPS*prod) / prod
    # => log(t/prod + EPS) = log(t + EPS*prod) - log(prod)
    e_mi = t * (jnp.log(t + EPS * prod) - jnp.log(prod))   # (Bt, K, K)
    e_h = t * jnp.log(t + EPS)                             # (Bt, K, K)

    # Lane reduction first, then the short sublane reduction.
    mi_rows = jnp.sum(e_mi, axis=-1)                        # (Bt, K)
    h_rows = jnp.sum(e_h, axis=-1)                          # (Bt, K)
    mi = jnp.sum(mi_rows, axis=-1, keepdims=True)           # (Bt, 1)
    h = -jnp.sum(h_rows, axis=-1, keepdims=True)            # (Bt, 1)

    # Matches torch reference exactly (no guard on h -> 0 for one-hot targets).
    loss_ref[...] = 1.0 - mi / h


def _pick_bt(B):
    """Batch tile: prefer 8-32 rows/step with >=2 grid steps; keep sublane-aligned."""
    for bt in (32, 16, 8):
        if B % bt == 0 and B // bt >= 2:
            return bt
    if B % 8 == 0:
        return 8
    return B  # single grid step; block == full batch dim (always legal)


def mi_loss(i1, i2, target):
    """Pallas MILoss forward. i1, i2: (B, K); target: (B, K, K) -> (B,)."""
    B, K = i1.shape
    bt = _pick_bt(B)

    i1c = i1.reshape(B, K, 1).astype(jnp.float32)   # column per batch
    i2r = i2.reshape(B, 1, K).astype(jnp.float32)   # row per batch
    t = target.astype(jnp.float32)

    out = pl.pallas_call(
        mi_loss_kernel,
        out_shape=jax.ShapeDtypeStruct((B, 1), jnp.float32),
        grid=(B // bt,),
        in_specs=[
            pl.BlockSpec((bt, K, 1), lambda g: (g, 0, 0)),
            pl.BlockSpec((bt, 1, K), lambda g: (g, 0, 0)),
            pl.BlockSpec((bt, K, K), lambda g: (g, 0, 0)),
        ],
        out_specs=pl.BlockSpec((bt, 1), lambda g: (g, 0)),
        compiler_params=pltpu.CompilerParams(
            dimension_semantics=("parallel",)),   # v7x: shard steps across 2 TCs
        cost_estimate=pl.CostEstimate(
            flops=10 * B * K * K,
            transcendentals=2 * B * K * K,
            bytes_accessed=4 * (B * K * K + 2 * B * K + B)),
    )(i1c, i2r, t)
    return out.reshape(B)


def mi_loss_ref(i1, i2, target):
    """Pure-JAX reference mirroring the PyTorch module exactly."""
    eps = jnp.finfo(i1.dtype).eps
    prod = jnp.einsum("bi,bj->bij", i1, i2) + eps
    mi = jnp.sum(target * jnp.log(target / prod + eps), axis=(1, 2))
    h = -jnp.sum(target * jnp.log(target + eps), axis=(1, 2))
    return 1.0 - mi / h


if __name__ == "__main__":
    B, K = 16, 128  # batch, histogram bins (K=128 keeps lanes dense)

    key = jax.random.PRNGKey(0)
    k1, k2, k3 = jax.random.split(key, 3)

    # Histogram-like (positive, normalized) inputs, matching typical use of
    # MILoss on soft histograms.
    i1 = jax.nn.softmax(jax.random.normal(k1, (B, K), jnp.float32), axis=-1)
    i2 = jax.nn.softmax(jax.random.normal(k2, (B, K), jnp.float32), axis=-1)
    tl = jax.random.normal(k3, (B, K, K), jnp.float32)
    target = jax.nn.softmax(tl.reshape(B, -1), axis=-1).reshape(B, K, K)

    out = jax.block_until_ready(mi_loss(i1, i2, target))
    ref = jax.block_until_ready(mi_loss_ref(i1, i2, target))

    assert out.shape == (B,), f"bad output shape {out.shape}"
    assert jnp.allclose(out, ref, rtol=1e-4, atol=1e-5), (out, ref)

    print("KERNEL_OK")
</pallas_src>

<mosaic_0001>
module attributes {stable_mosaic.version = 11 : i64} {
  func.func @mi_loss_kernel(%arg0: i32, %arg1: memref<8x128x1xf32, #tpu.memory_space<vmem>>, %arg2: memref<8x1x128xf32, #tpu.memory_space<vmem>>, %arg3: memref<8x128x128xf32, #tpu.memory_space<vmem>>, %arg4: memref<8x1xf32, #tpu.memory_space<vmem>>) attributes {dimension_semantics = [#tpu.dimension_semantics<parallel>], iteration_bounds = array<i64: 2>, scalar_prefetch = 0 : i64, scratch_operands = 0 : i64, tpu.core_type = #tpu.core_type<tc>, window_params = [{transform_indices = @transform_0, window_bounds = array<i64: 8, 128, 1>}, {transform_indices = @transform_1, window_bounds = array<i64: 8, 1, 128>}, {transform_indices = @transform_2, window_bounds = array<i64: 8, 128, 128>}, {transform_indices = @transform_3, window_bounds = array<i64: 8, 1>}]} {
    %c0 = arith.constant 0 : index
    %c0_0 = arith.constant 0 : index
    %c0_1 = arith.constant 0 : index
    %0 = vector.load %arg1[%c0, %c0_0, %c0_1] : memref<8x128x1xf32, #tpu.memory_space<vmem>>, vector<8x128x1xf32>
    %c0_2 = arith.constant 0 : index
    %c0_3 = arith.constant 0 : index
    %c0_4 = arith.constant 0 : index
    %1 = vector.load %arg2[%c0_2, %c0_3, %c0_4] : memref<8x1x128xf32, #tpu.memory_space<vmem>>, vector<8x1x128xf32>
    %c0_5 = arith.constant 0 : index
    %c0_6 = arith.constant 0 : index
    %c0_7 = arith.constant 0 : index
    %2 = vector.load %arg3[%c0_5, %c0_6, %c0_7] : memref<8x128x128xf32, #tpu.memory_space<vmem>>, vector<8x128x128xf32>
    %3 = vector.broadcast %0 : vector<8x128x1xf32> to vector<8x128x128xf32>
    %4 = vector.broadcast %1 : vector<8x1x128xf32> to vector<8x128x128xf32>
    %5 = arith.mulf %3, %4 : vector<8x128x128xf32>
    %cst = arith.constant 1.1920929E-7 : f32
    %6 = vector.broadcast %cst : f32 to vector<8x128x128xf32>
    %7 = arith.addf %5, %6 : vector<8x128x128xf32>
    %cst_8 = arith.constant 1.1920929E-7 : f32
    %8 = vector.broadcast %cst_8 : f32 to vector<8x128x128xf32>
    %9 = arith.mulf %8, %7 : vector<8x128x128xf32>
    %10 = arith.addf %2, %9 : vector<8x128x128xf32>
    %11 = math.log %10 : vector<8x128x128xf32>
    %12 = math.log %7 : vector<8x128x128xf32>
    %13 = arith.subf %11, %12 : vector<8x128x128xf32>
    %14 = arith.mulf %2, %13 : vector<8x128x128xf32>
    %cst_9 = arith.constant 1.1920929E-7 : f32
    %15 = vector.broadcast %cst_9 : f32 to vector<8x128x128xf32>
    %16 = arith.addf %2, %15 : vector<8x128x128xf32>
    %17 = math.log %16 : vector<8x128x128xf32>
    %18 = arith.mulf %2, %17 : vector<8x128x128xf32>
    %cst_10 = arith.constant dense<0.000000e+00> : vector<8x128xf32>
    %19 = vector.multi_reduction <add>, %14, %cst_10 [2] : vector<8x128x128xf32> to vector<8x128xf32>
    %cst_11 = arith.constant dense<0.000000e+00> : vector<8x128xf32>
    %20 = vector.multi_reduction <add>, %18, %cst_11 [2] : vector<8x128x128xf32> to vector<8x128xf32>
    %cst_12 = arith.constant dense<0.000000e+00> : vector<8xf32>
    %21 = vector.multi_reduction <add>, %19, %cst_12 [1] : vector<8x128xf32> to vector<8xf32>
    %22 = vector.shape_cast %21 : vector<8xf32> to vector<8x1xf32>
    %cst_13 = arith.constant dense<0.000000e+00> : vector<8xf32>
    %23 = vector.multi_reduction <add>, %20, %cst_13 [1] : vector<8x128xf32> to vector<8xf32>
    %24 = vector.shape_cast %23 : vector<8xf32> to vector<8x1xf32>
    %cst_14 = arith.constant 0.000000e+00 : f32
    %25 = vector.broadcast %cst_14 : f32 to vector<8x1xf32>
    %26 = arith.subf %25, %24 : vector<8x1xf32>
    %27 = arith.divf %22, %26 : vector<8x1xf32>
    %cst_15 = arith.constant 1.000000e+00 : f32
    %28 = vector.broadcast %cst_15 : f32 to vector<8x1xf32>
    %29 = arith.subf %28, %27 : vector<8x1xf32>
    %c0_16 = arith.constant 0 : index
    %c0_17 = arith.constant 0 : index
    %30 = vector.load %arg4[%c0_16, %c0_17] : memref<8x1xf32, #tpu.memory_space<vmem>>, vector<8x1xf32>
    tpu.vector_store %arg4[%c0_16, %c0_17], %29 {strides = array<i32>} : memref<8x1xf32, #tpu.memory_space<vmem>>, vector<8x1xf32>,
    return
  }
  func.func @transform_0(%arg0: i32) -> (i32, i32, i32) {
    %c0_i32 = arith.constant 0 : i32
    %c0_i32_0 = arith.constant 0 : i32
    %c0_i32_1 = arith.constant 0 : i32
    return %arg0, %c0_i32, %c0_i32_0 : i32, i32, i32
  }
  func.func @transform_1(%arg0: i32) -> (i32, i32, i32) {
    %c0_i32 = arith.constant 0 : i32
    %c0_i32_0 = arith.constant 0 : i32
    %c0_i32_1 = arith.constant 0 : i32
    return %arg0, %c0_i32, %c0_i32_0 : i32, i32, i32
  }
  func.func @transform_2(%arg0: i32) -> (i32, i32, i32) {
    %c0_i32 = arith.constant 0 : i32
    %c0_i32_0 = arith.constant 0 : i32
    %c0_i32_1 = arith.constant 0 : i32
    return %arg0, %c0_i32, %c0_i32_0 : i32, i32, i32
  }
  func.func @transform_3(%arg0: i32) -> (i32, i32) {
    %c0_i32 = arith.constant 0 : i32
    %c0_i32_0 = arith.constant 0 : i32
    return %arg0, %c0_i32 : i32, i32
  }
}

</mosaic_0001>

<llo_original>
// kernel: tpu_custom_call.1
$region0: #{tpu_custom_call.1}
  #allocation0 [shape = 'u32[]', space=smem, size = 0x4, offset = 0x4, fixed_abs, tag = 'smem constant byte address 0x4 - core index']
  #allocation1 [shape = 'u32[144,128]{1,0:T(1,128)}', space=vmem, size = 0x12000, scoped, tag = 'internal scratch']
  %s0 = inlined_call_operand.vmem [shape: f32[16,128,1], index: 0, kind: input, shape index: {}]
  %s1 = inlined_call_operand.vmem [shape: f32[16,1,128], index: 1, kind: input, shape index: {}]
  %s2 = inlined_call_operand.vmem [shape: f32[16,128,128], index: 2, kind: input, shape index: {}]
  %s3 = inlined_call_operand.vmem [shape: f32[16,1], index: 3, kind: output, shape index: {}]
  %s4 = sld [smem:[#allocation0]]
  $region45: #{tpu_custom_call.1} parent=0
    _
  %s6 = ssub.s32 1, %s4
  %s7 = scalar_select 0, %s6, %s4
  loop: start=0, step=1, limit=4
  $region2: #{tpu_custom_call.1} parent=0 // loop_pre_header
    _
  $region3: #{tpu_custom_call.1} parent=0 // loop_header
    %s9 = sphi 0, %s13
    %p10 = scmp.ge.s32.totalorder %s9, 4
    %s19 = sphi 0, %s21
    %s22 = sphi 0, %s19
    %s23 = sphi 0, %s22
    %s39 = sphi 0, %s23
    %s45 = sphi 0, %s47
    %s48 = sphi 0, %s45
    %s49 = sphi 0, %s48
    %s65 = sphi 0, %s49
    %s71 = sphi 0, %s73
    %s74 = sphi 0, %s71
    %s75 = sphi 0, %s74
    %s91 = sphi 0, %s75
    %s97 = sphi 0, %s99
    %s100 = sphi 0, %s97
    %s101 = sphi 0, %s100
    %s117 = sphi 0, %s101
  $region4: #{tpu_custom_call.1} parent=0 // loop_header_branch
    %12 = sbr.rel (%p10) target = $region8
  $region5: #{tpu_custom_call.1} parent=0 // loop_body
    %s14 = ssub.s32 %s9, 1
    %s15 = ssub.s32 %s9, 2
    %s16 = sadd.s32 %s9, 1
    %s17 = ssub.s32 %s9, %s16
    %p18 = scmp.eq.s32.totalorder %s17, 0
    %s20 = sadd.s32 %s19, 1
    %s21 = scalar_select %p18, %s19, %s20
    %p24 = pneg %p18
    %p25 = scmp.eq.s32.totalorder %s9, 1
    %p26 = por %p24, %p25
    %p27 = scmp.ne.s32.totalorder %s19, %s22
    %p28 = scmp.eq.s32.totalorder %s9, 0
    %p29 = por %p27, %p28
    %p30 = scmp.ne.s32.totalorder %s19, %s22
    %p31 = scmp.eq.s32.totalorder %s14, 1
    %p32 = por %p30, %p31
    %p33 = scmp.ne.s32.totalorder %s22, %s23
    %p34 = scmp.eq.s32.totalorder %s14, 0
    %p35 = por %p33, %p34
    %p36 = scmp.ne.s32.totalorder %s22, %s23
    %p37 = scmp.eq.s32.totalorder %s15, 1
    %p38 = por %p36, %p37
    %p40 = scmp.ne.s32.totalorder %s23, %s39
    %p41 = scmp.eq.s32.totalorder %s15, 0
    %p42 = por %p40, %p41
    %s43 = ssub.s32 %s9, %s16
    %p44 = scmp.eq.s32.totalorder %s43, 0
    %s46 = sadd.s32 %s45, 1
    %s47 = scalar_select %p44, %s45, %s46
    %p50 = pneg %p44
    %p51 = scmp.eq.s32.totalorder %s9, 1
    %p52 = por %p50, %p51
    %p53 = scmp.ne.s32.totalorder %s45, %s48
    %p54 = scmp.eq.s32.totalorder %s9, 0
    %p55 = por %p53, %p54
    %p56 = scmp.ne.s32.totalorder %s45, %s48
    %p57 = scmp.eq.s32.totalorder %s14, 1
    %p58 = por %p56, %p57
    %p59 = scmp.ne.s32.totalorder %s48, %s49
    %p60 = scmp.eq.s32.totalorder %s14, 0
    %p61 = por %p59, %p60
    %p62 = scmp.ne.s32.totalorder %s48, %s49
    %p63 = scmp.eq.s32.totalorder %s15, 1
    %p64 = por %p62, %p63
    %p66 = scmp.ne.s32.totalorder %s49, %s65
    %p67 = scmp.eq.s32.totalorder %s15, 0
    %p68 = por %p66, %p67
    %s69 = ssub.s32 %s9, %s16
    %p70 = scmp.eq.s32.totalorder %s69, 0
    %s72 = sadd.s32 %s71, 1
    %s73 = scalar_select %p70, %s71, %s72
    %p76 = pneg %p70
    %p77 = scmp.eq.s32.totalorder %s9, 1
    %p78 = por %p76, %p77
    %p79 = scmp.ne.s32.totalorder %s71, %s74
    %p80 = scmp.eq.s32.totalorder %s9, 0
    %p81 = por %p79, %p80
    %p82 = scmp.ne.s32.totalorder %s71, %s74
    %p83 = scmp.eq.s32.totalorder %s14, 1
    %p84 = por %p82, %p83
    %p85 = scmp.ne.s32.totalorder %s74, %s75
    %p86 = scmp.eq.s32.totalorder %s14, 0
    %p87 = por %p85, %p86
    %p88 = scmp.ne.s32.totalorder %s74, %s75
    %p89 = scmp.eq.s32.totalorder %s15, 1
    %p90 = por %p88, %p89
    %p92 = scmp.ne.s32.totalorder %s75, %s91
    %p93 = scmp.eq.s32.totalorder %s15, 0
    %p94 = por %p92, %p93
    %s95 = ssub.s32 %s9, %s16
    %p96 = scmp.eq.s32.totalorder %s95, 0
    %s98 = sadd.s32 %s97, 1
    %s99 = scalar_select %p96, %s97, %s98
    %p102 = pneg %p96
    %p103 = scmp.eq.s32.totalorder %s9, 1
    %p104 = por %p102, %p103
    %p105 = scmp.ne.s32.totalorder %s97, %s100
    %p106 = scmp.eq.s32.totalorder %s9, 0
    %p107 = por %p105, %p106
    %p108 = scmp.ne.s32.totalorder %s97, %s100
    %p109 = scmp.eq.s32.totalorder %s14, 1
    %p110 = por %p108, %p109
    %p111 = scmp.ne.s32.totalorder %s100, %s101
    %p112 = scmp.eq.s32.totalorder %s14, 0
    %p113 = por %p111, %p112
    %p114 = scmp.ne.s32.totalorder %s100, %s101
    %p115 = scmp.eq.s32.totalorder %s15, 1
    %p116 = por %p114, %p115
    %p118 = scmp.ne.s32.totalorder %s101, %s117
    %p119 = scmp.eq.s32.totalorder %s15, 0
    %p120 = por %p118, %p119
    %p121 = scmp.le.s32.totalorder 1, %s9
    %p122 = scmp.lt.s32.totalorder %s9, 3
    %p123 = pnand %p121, %p122
    %p124 = pneg %p123
    // Predicated region
    $region9: #{tpu_custom_call.1} parent=5 // pred_check
      _
    $region10: #{tpu_custom_call.1} parent=5 // pred_check_branch
      %126 = sbr.rel (%p123) target = $region12
    $region11: #{tpu_custom_call.1} parent=5 // pred_region
      %s127 = ssub.s32 %s9, 1
    $region12: #{tpu_custom_call.1} parent=5 // pred_fallthru
      _
    %p128 = scmp.lt.s32.totalorder %s9, 2
    // Predicated region
    $region13: #{tpu_custom_call.1} parent=5 // pred_check
      %p129 = pneg %p128
    $region14: #{tpu_custom_call.1} parent=5 // pred_check_branch
      %131 = sbr.rel (%p129) target = $region16
    $region15: #{tpu_custom_call.1} parent=5 // pred_region
      // Predicated region
      $region17: #{tpu_custom_call.1} parent=15 // pred_check
        %p132 = pneg %p29
      $region18: #{tpu_custom_call.1} parent=15 // pred_check_branch
        %134 = sbr.rel (%p132) target = $region20
      $region19: #{tpu_custom_call.1} parent=15 // pred_region
        %s135 = smul.u32 8, %s9
        %p136 = scmp.lt.s32.totalorder %s135, 15
        %s137 = scalar_select %p136, %s135, 15
        %s138 = smul.addr %s137, 16
        %s139 = smul.addr %s138, 8
        %s140 = scalar_lea.vmem %s0, %s139
        %s141 = smul.u32 8, %s9
      $region20: #{tpu_custom_call.1} parent=15 // pred_fallthru
        _
      // Predicated region
      $region21: #{tpu_custom_call.1} parent=15 // pred_check
        %p142 = pneg %p55
      $region22: #{tpu_custom_call.1} parent=15 // pred_check_branch
        %144 = sbr.rel (%p142) target = $region24
      $region23: #{tpu_custom_call.1} parent=15 // pred_region
        %s145 = smul.u32 8, %s9
        %p146 = scmp.lt.s32.totalorder %s145, 15
        %s147 = scalar_select %p146, %s145, 15
        %s148 = scalar_lea.vmem %s1, %s147
        %s149 = smul.u32 8, %s9
      $region24: #{tpu_custom_call.1} parent=15 // pred_fallthru
        _
      // Predicated region
      $region25: #{tpu_custom_call.1} parent=15 // pred_check
        %p150 = pneg %p81
      $region26: #{tpu_custom_call.1} parent=15 // pred_check_branch
        %152 = sbr.rel (%p150) target = $region28
      $region27: #{tpu_custom_call.1} parent=15 // pred_region
        %s153 = smul.u32 8, %s9
        %p154 = scmp.lt.s32.totalorder %s153, 15
        %s155 = scalar_select %p154, %s153, 15
        %s156 = smul.addr %s155, 16
        %s157 = smul.addr %s156, 8
        %s158 = scalar_lea.vmem %s2, %s157
        %s159 = smul.u32 8, %s9
      $region28: #{tpu_custom_call.1} parent=15 // pred_fallthru
        _
    $region16: #{tpu_custom_call.1} parent=5 // pred_fallthru
      _
    %p160 = scmp.le.s32.totalorder 1, %s9
    %p161 = scmp.lt.s32.totalorder %s9, 3
    %p162 = pnand %p160, %p161
    %p163 = pneg %p162
    // Predicated region
    $region29: #{tpu_custom_call.1} parent=5 // pred_check
      _
    $region30: #{tpu_custom_call.1} parent=5 // pred_check_branch
      %165 = sbr.rel (%p162) target = $region32
    $region31: #{tpu_custom_call.1} parent=5 // pred_region
      %s166 = ssub.s32 %s9, 1
      %s167 = smul.u32 8, %s14
      %p168 = scmp.lt.s32.totalorder %s167, 15
      %s169 = scalar_select %p168, %s167, 15
      %s170 = smul.addr %s169, 16
      %s171 = smul.addr %s170, 8
      %s172 = scalar_lea.vmem %s0, %s171
      %p173 = pneg %p35
      %p174 = pneg %p32
      %s175 = smul.u32 8, %s14
      %p176 = scmp.lt.s32.totalorder %s175, 15
      %s177 = scalar_select %p176, %s175, 15
      %s178 = scalar_lea.vmem %s1, %s177
      %p179 = pneg %p61
      %p180 = pneg %p58
      %s181 = smul.u32 8, %s14
      %p182 = scmp.lt.s32.totalorder %s181, 15
      %s183 = scalar_select %p182, %s181, 15
      %s184 = smul.addr %s183, 16
      %s185 = smul.addr %s184, 8
      %s186 = scalar_lea.vmem %s2, %s185
      %p187 = pneg %p87
      %p188 = pneg %p84
      %p189 = pneg %p113
      %p190 = pneg %p110
      %p191 = scmp.lt.s32.totalorder %s14, 1
      %s192 = scalar_select %p191, %s14, 1
      %s193 = smul.addr %s192, 8
      %s194 = scalar_lea.vmem %s3, %s193
      %s195 = smul.u32 8, %s14
      %p196 = scmp.lt.s32.totalorder %s195, 15
      %s197 = scalar_select %p196, %s195, 15
      %s198 = smul.addr %s197, 16
      %s199 = smul.addr %s198, 8
      %s200 = scalar_lea.vmem %s0, %s199
      %s201 = smul.u32 8, %s14
      %s202 = smul.u32 8, %s14
      %p203 = scmp.lt.s32.totalorder %s202, 15
      %s204 = scalar_select %p203, %s202, 15
      %s205 = scalar_lea.vmem %s1, %s204
      %s206 = smul.u32 8, %s14
      %s207 = smul.u32 8, %s14
      %p208 = scmp.lt.s32.totalorder %s207, 15
      %s209 = scalar_select %p208, %s207, 15
      %s210 = smul.addr %s209, 16
      %s211 = smul.addr %s210, 8
      %s212 = scalar_lea.vmem %s2, %s211
      %s213 = smul.u32 8, %s14
      %p214 = scmp.lt.s32.totalorder %s14, 1
      %s215 = scalar_select %p214, %s14, 1
      %s216 = smul.addr %s215, 8
      %s217 = scalar_lea.vmem %s3, %s216
      %v218 = vld [vmem:[%s200] sm:$0xff]
      %v219 = vld [vmem:[%s200 + $0x8] sm:$0xff]
      %v220 = vld [vmem:[%s200 + $0x10] sm:$0xff]
      %v221 = vld [vmem:[%s200 + $0x18] sm:$0xff]
      %v222 = vld [vmem:[%s200 + $0x20] sm:$0xff]
      %v223 = vld [vmem:[%s200 + $0x28] sm:$0xff]
      %v224 = vld [vmem:[%s200 + $0x30] sm:$0xff]
      %v225 = vld [vmem:[%s200 + $0x38] sm:$0xff]
      %v226 = vld [vmem:[%s200 + $0x40] sm:$0xff]
      %v227 = vld [vmem:[%s200 + $0x48] sm:$0xff]
      %v228 = vld [vmem:[%s200 + $0x50] sm:$0xff]
      %v229 = vld [vmem:[%s200 + $0x58] sm:$0xff]
      %v230 = vld [vmem:[%s200 + $0x60] sm:$0xff]
      %v231 = vld [vmem:[%s200 + $0x68] sm:$0xff]
      %v232 = vld [vmem:[%s200 + $0x70] sm:$0xff]
      %v233 = vld [vmem:[%s200 + $0x78] sm:$0xff]
      %v234 = vld [vmem:[%s200 + $0x80] sm:$0xff]
      %v235 = vld [vmem:[%s200 + $0x88] sm:$0xff]
      %v236 = vld [vmem:[%s200 + $0x90] sm:$0xff]
      %v237 = vld [vmem:[%s200 + $0x98] sm:$0xff]
      %v238 = vld [vmem:[%s200 + $0xa0] sm:$0xff]
      %v239 = vld [vmem:[%s200 + $0xa8] sm:$0xff]
      %v240 = vld [vmem:[%s200 + $0xb0] sm:$0xff]
      %v241 = vld [vmem:[%s200 + $0xb8] sm:$0xff]
      %v242 = vld [vmem:[%s200 + $0xc0] sm:$0xff]
      %v243 = vld [vmem:[%s200 + $0xc8] sm:$0xff]
      %v244 = vld [vmem:[%s200 + $0xd0] sm:$0xff]
      %v245 = vld [vmem:[%s200 + $0xd8] sm:$0xff]
      %v246 = vld [vmem:[%s200 + $0xe0] sm:$0xff]
      %v247 = vld [vmem:[%s200 + $0xe8] sm:$0xff]
      %v248 = vld [vmem:[%s200 + $0xf0] sm:$0xff]
      %v249 = vld [vmem:[%s200 + $0xf8] sm:$0xff]
      %v250 = vld [vmem:[%s200 + $0x100] sm:$0xff]
      %v251 = vld [vmem:[%s200 + $0x108] sm:$0xff]
      %v252 = vld [vmem:[%s200 + $0x110] sm:$0xff]
      %v253 = vld [vmem:[%s200 + $0x118] sm:$0xff]
      %v254 = vld [vmem:[%s200 + $0x120] sm:$0xff]
      %v255 = vld [vmem:[%s200 + $0x128] sm:$0xff]
      %v256 = vld [vmem:[%s200 + $0x130] sm:$0xff]
      %v257 = vld [vmem:[%s200 + $0x138] sm:$0xff]
      %v258 = vld [vmem:[%s200 + $0x140] sm:$0xff]
      %v259 = vld [vmem:[%s200 + $0x148] sm:$0xff]
      %v260 = vld [vmem:[%s200 + $0x150] sm:$0xff]
      %v261 = vld [vmem:[%s200 + $0x158] sm:$0xff]
      %v262 = vld [vmem:[%s200 + $0x160] sm:$0xff]
      %v263 = vld [vmem:[%s200 + $0x168] sm:$0xff]
      %v264 = vld [vmem:[%s200 + $0x170] sm:$0xff]
      %v265 = vld [vmem:[%s200 + $0x178] sm:$0xff]
      %v266 = vld [vmem:[%s200 + $0x180] sm:$0xff]
      %v267 = vld [vmem:[%s200 + $0x188] sm:$0xff]
      %v268 = vld [vmem:[%s200 + $0x190] sm:$0xff]
      %v269 = vld [vmem:[%s200 + $0x198] sm:$0xff]
      %v270 = vld [vmem:[%s200 + $0x1a0] sm:$0xff]
      %v271 = vld [vmem:[%s200 + $0x1a8] sm:$0xff]
      %v272 = vld [vmem:[%s200 + $0x1b0] sm:$0xff]
      %v273 = vld [vmem:[%s200 + $0x1b8] sm:$0xff]
      %v274 = vld [vmem:[%s200 + $0x1c0] sm:$0xff]
      %v275 = vld [vmem:[%s200 + $0x1c8] sm:$0xff]
      %v276 = vld [vmem:[%s200 + $0x1d0] sm:$0xff]
      %v277 = vld [vmem:[%s200 + $0x1d8] sm:$0xff]
      %v278 = vld [vmem:[%s200 + $0x1e0] sm:$0xff]
      %v279 = vld [vmem:[%s200 + $0x1e8] sm:$0xff]
      %v280 = vld [vmem:[%s200 + $0x1f0] sm:$0xff]
      %v281 = vld [vmem:[%s200 + $0x1f8] sm:$0xff]
      %v282 = vld [vmem:[%s200 + $0x200] sm:$0xff]
      %v283 = vld [vmem:[%s200 + $0x208] sm:$0xff]
      %v284 = vld [vmem:[%s200 + $0x210] sm:$0xff]
      %v285 = vld [vmem:[%s200 + $0x218] sm:$0xff]
      %v286 = vld [vmem:[%s200 + $0x220] sm:$0xff]
      %v287 = vld [vmem:[%s200 + $0x228] sm:$0xff]
      %v288 = vld [vmem:[%s200 + $0x230] sm:$0xff]
      %v289 = vld [vmem:[%s200 + $0x238] sm:$0xff]
      %v290 = vld [vmem:[%s200 + $0x240] sm:$0xff]
      %v291 = vld [vmem:[%s200 + $0x248] sm:$0xff]
      %v292 = vld [vmem:[%s200 + $0x250] sm:$0xff]
      %v293 = vld [vmem:[%s200 + $0x258] sm:$0xff]
      %v294 = vld [vmem:[%s200 + $0x260] sm:$0xff]
      %v295 = vld [vmem:[%s200 + $0x268] sm:$0xff]
      %v296 = vld [vmem:[%s200 + $0x270] sm:$0xff]
      %v297 = vld [vmem:[%s200 + $0x278] sm:$0xff]
      %v298 = vld [vmem:[%s200 + $0x280] sm:$0xff]
      %v299 = vld [vmem:[%s200 + $0x288] sm:$0xff]
      %v300 = vld [vmem:[%s200 + $0x290] sm:$0xff]
      %v301 = vld [vmem:[%s200 + $0x298] sm:$0xff]
      %v302 = vld [vmem:[%s200 + $0x2a0] sm:$0xff]
      %v303 = vld [vmem:[%s200 + $0x2a8] sm:$0xff]
      %v304 = vld [vmem:[%s200 + $0x2b0] sm:$0xff]
      %v305 = vld [vmem:[%s200 + $0x2b8] sm:$0xff]
      %v306 = vld [vmem:[%s200 + $0x2c0] sm:$0xff]
      %v307 = vld [vmem:[%s200 + $0x2c8] sm:$0xff]
      %v308 = vld [vmem:[%s200 + $0x2d0] sm:$0xff]
      %v309 = vld [vmem:[%s200 + $0x2d8] sm:$0xff]
      %v310 = vld [vmem:[%s200 + $0x2e0] sm:$0xff]
      %v311 = vld [vmem:[%s200 + $0x2e8] sm:$0xff]
      %v312 = vld [vmem:[%s200 + $0x2f0] sm:$0xff]
      %v313 = vld [vmem:[%s200 + $0x2f8] sm:$0xff]
      %v314 = vld [vmem:[%s200 + $0x300] sm:$0xff]
      %v315 = vld [vmem:[%s200 + $0x308] sm:$0xff]
      %v316 = vld [vmem:[%s200 + $0x310] sm:$0xff]
      %v317 = vld [vmem:[%s200 + $0x318] sm:$0xff]
      %v318 = vld [vmem:[%s200 + $0x320] sm:$0xff]
      %v319 = vld [vmem:[%s200 + $0x328] sm:$0xff]
      %v320 = vld [vmem:[%s200 + $0x330] sm:$0xff]
      %v321 = vld [vmem:[%s200 + $0x338] sm:$0xff]
      %v322 = vld [vmem:[%s200 + $0x340] sm:$0xff]
      %v323 = vld [vmem:[%s200 + $0x348] sm:$0xff]
      %v324 = vld [vmem:[%s200 + $0x350] sm:$0xff]
      %v325 = vld [vmem:[%s200 + $0x358] sm:$0xff]
      %v326 = vld [vmem:[%s200 + $0x360] sm:$0xff]
      %v327 = vld [vmem:[%s200 + $0x368] sm:$0xff]
      %v328 = vld [vmem:[%s200 + $0x370] sm:$0xff]
      %v329 = vld [vmem:[%s200 + $0x378] sm:$0xff]
      %v330 = vld [vmem:[%s200 + $0x380] sm:$0xff]
      %v331 = vld [vmem:[%s200 + $0x388] sm:$0xff]
      %v332 = vld [vmem:[%s200 + $0x390] sm:$0xff]
      %v333 = vld [vmem:[%s200 + $0x398] sm:$0xff]
      %v334 = vld [vmem:[%s200 + $0x3a0] sm:$0xff]
      %v335 = vld [vmem:[%s200 + $0x3a8] sm:$0xff]
      %v336 = vld [vmem:[%s200 + $0x3b0] sm:$0xff]
      %v337 = vld [vmem:[%s200 + $0x3b8] sm:$0xff]
      %v338 = vld [vmem:[%s200 + $0x3c0] sm:$0xff]
      %v339 = vld [vmem:[%s200 + $0x3c8] sm:$0xff]
      %v340 = vld [vmem:[%s200 + $0x3d0] sm:$0xff]
      %v341 = vld [vmem:[%s200 + $0x3d8] sm:$0xff]
      %v342 = vld [vmem:[%s200 + $0x3e0] sm:$0xff]
      %v343 = vld [vmem:[%s200 + $0x3e8] sm:$0xff]
      %v344 = vld [vmem:[%s200 + $0x3f0] sm:$0xff]
      %v345 = vld [vmem:[%s200 + $0x3f8] sm:$0xff]
      %v346 = vld [vmem:[%s205] sm:$0x1]
      %v347 = vld [vmem:[%s205 + $0x1] sm:$0x1]
      %v348 = vld [vmem:[%s205 + $0x2] sm:$0x1]
      %v349 = vld [vmem:[%s205 + $0x3] sm:$0x1]
      %v350 = vld [vmem:[%s205 + $0x4] sm:$0x1]
      %v351 = vld [vmem:[%s205 + $0x5] sm:$0x1]
      %v352 = vld [vmem:[%s205 + $0x6] sm:$0x1]
      %v353 = vld [vmem:[%s205 + $0x7] sm:$0x1]
      %v354 = vld [vmem:[%s212] sm:$0xff]
      %v355 = vld [vmem:[%s212 + $0x8] sm:$0xff]
      %v356 = vld [vmem:[%s212 + $0x10] sm:$0xff]
      %v357 = vld [vmem:[%s212 + $0x18] sm:$0xff]
      %v358 = vld [vmem:[%s212 + $0x20] sm:$0xff]
      %v359 = vld [vmem:[%s212 + $0x28] sm:$0xff]
      %v360 = vld [vmem:[%s212 + $0x30] sm:$0xff]
      %v361 = vld [vmem:[%s212 + $0x38] sm:$0xff]
      %v362 = vld [vmem:[%s212 + $0x40] sm:$0xff]
      %v363 = vld [vmem:[%s212 + $0x48] sm:$0xff]
      %v364 = vld [vmem:[%s212 + $0x50] sm:$0xff]
      %v365 = vld [vmem:[%s212 + $0x58] sm:$0xff]
      %v366 = vld [vmem:[%s212 + $0x60] sm:$0xff]
      %v367 = vld [vmem:[%s212 + $0x68] sm:$0xff]
      %v368 = vld [vmem:[%s212 + $0x70] sm:$0xff]
      %v369 = vld [vmem:[%s212 + $0x78] sm:$0xff]
      %v370 = vld [vmem:[%s212 + $0x80] sm:$0xff]
      %v371 = vld [vmem:[%s212 + $0x88] sm:$0xff]
      %v372 = vld [vmem:[%s212 + $0x90] sm:$0xff]
      %v373 = vld [vmem:[%s212 + $0x98] sm:$0xff]
      %v374 = vld [vmem:[%s212 + $0xa0] sm:$0xff]
      %v375 = vld [vmem:[%s212 + $0xa8] sm:$0xff]
      %v376 = vld [vmem:[%s212 + $0xb0] sm:$0xff]
      %v377 = vld [vmem:[%s212 + $0xb8] sm:$0xff]
      %v378 = vld [vmem:[%s212 + $0xc0] sm:$0xff]
      %v379 = vld [vmem:[%s212 + $0xc8] sm:$0xff]
      %v380 = vld [vmem:[%s212 + $0xd0] sm:$0xff]
      %v381 = vld [vmem:[%s212 + $0xd8] sm:$0xff]
      %v382 = vld [vmem:[%s212 + $0xe0] sm:$0xff]
      %v383 = vld [vmem:[%s212 + $0xe8] sm:$0xff]
      %v384 = vld [vmem:[%s212 + $0xf0] sm:$0xff]
      %v385 = vld [vmem:[%s212 + $0xf8] sm:$0xff]
      %v386 = vld [vmem:[%s212 + $0x100] sm:$0xff]
      %v387 = vld [vmem:[%s212 + $0x108] sm:$0xff]
      %v388 = vld [vmem:[%s212 + $0x110] sm:$0xff]
      %v389 = vld [vmem:[%s212 + $0x118] sm:$0xff]
      %v390 = vld [vmem:[%s212 + $0x120] sm:$0xff]
      %v391 = vld [vmem:[%s212 + $0x128] sm:$0xff]
      %v392 = vld [vmem:[%s212 + $0x130] sm:$0xff]
      %v393 = vld [vmem:[%s212 + $0x138] sm:$0xff]
      %v394 = vld [vmem:[%s212 + $0x140] sm:$0xff]
      %v395 = vld [vmem:[%s212 + $0x148] sm:$0xff]
      %v396 = vld [vmem:[%s212 + $0x150] sm:$0xff]
      %v397 = vld [vmem:[%s212 + $0x158] sm:$0xff]
      %v398 = vld [vmem:[%s212 + $0x160] sm:$0xff]
      %v399 = vld [vmem:[%s212 + $0x168] sm:$0xff]
      %v400 = vld [vmem:[%s212 + $0x170] sm:$0xff]
      %v401 = vld [vmem:[%s212 + $0x178] sm:$0xff]
      %v402 = vld [vmem:[%s212 + $0x180] sm:$0xff]
      %v403 = vld [vmem:[%s212 + $0x188] sm:$0xff]
      %v404 = vld [vmem:[%s212 + $0x190] sm:$0xff]
      %v405 = vld [vmem:[%s212 + $0x198] sm:$0xff]
      %v406 = vld [vmem:[%s212 + $0x1a0] sm:$0xff]
      %v407 = vld [vmem:[%s212 + $0x1a8] sm:$0xff]
      %v408 = vld [vmem:[%s212 + $0x1b0] sm:$0xff]
      %v409 = vld [vmem:[%s212 + $0x1b8] sm:$0xff]
      %v410 = vld [vmem:[%s212 + $0x1c0] sm:$0xff]
      %v411 = vld [vmem:[%s212 + $0x1c8] sm:$0xff]
      %v412 = vld [vmem:[%s212 + $0x1d0] sm:$0xff]
      %v413 = vld [vmem:[%s212 + $0x1d8] sm:$0xff]
      %v414 = vld [vmem:[%s212 + $0x1e0] sm:$0xff]
      %v415 = vld [vmem:[%s212 + $0x1e8] sm:$0xff]
      %v416 = vld [vmem:[%s212 + $0x1f0] sm:$0xff]
      %v417 = vld [vmem:[%s212 + $0x1f8] sm:$0xff]
      %v418 = vld [vmem:[%s212 + $0x200] sm:$0xff]
      %v419 = vld [vmem:[%s212 + $0x208] sm:$0xff]
      %v420 = vld [vmem:[%s212 + $0x210] sm:$0xff]
      %v421 = vld [vmem:[%s212 + $0x218] sm:$0xff]
      %v422 = vld [vmem:[%s212 + $0x220] sm:$0xff]
      %v423 = vld [vmem:[%s212 + $0x228] sm:$0xff]
      %v424 = vld [vmem:[%s212 + $0x230] sm:$0xff]
      %v425 = vld [vmem:[%s212 + $0x238] sm:$0xff]
      %v426 = vld [vmem:[%s212 + $0x240] sm:$0xff]
      %v427 = vld [vmem:[%s212 + $0x248] sm:$0xff]
      %v428 = vld [vmem:[%s212 + $0x250] sm:$0xff]
      %v429 = vld [vmem:[%s212 + $0x258] sm:$0xff]
      %v430 = vld [vmem:[%s212 + $0x260] sm:$0xff]
      %v431 = vld [vmem:[%s212 + $0x268] sm:$0xff]
      %v432 = vld [vmem:[%s212 + $0x270] sm:$0xff]
      %v433 = vld [vmem:[%s212 + $0x278] sm:$0xff]
      %v434 = vld [vmem:[%s212 + $0x280] sm:$0xff]
      %v435 = vld [vmem:[%s212 + $0x288] sm:$0xff]
      %v436 = vld [vmem:[%s212 + $0x290] sm:$0xff]
      %v437 = vld [vmem:[%s212 + $0x298] sm:$0xff]
      %v438 = vld [vmem:[%s212 + $0x2a0] sm:$0xff]
      %v439 = vld [vmem:[%s212 + $0x2a8] sm:$0xff]
      %v440 = vld [vmem:[%s212 + $0x2b0] sm:$0xff]
      %v441 = vld [vmem:[%s212 + $0x2b8] sm:$0xff]
      %v442 = vld [vmem:[%s212 + $0x2c0] sm:$0xff]
      %v443 = vld [vmem:[%s212 + $0x2c8] sm:$0xff]
      %v444 = vld [vmem:[%s212 + $0x2d0] sm:$0xff]
      %v445 = vld [vmem:[%s212 + $0x2d8] sm:$0xff]
      %v446 = vld [vmem:[%s212 + $0x2e0] sm:$0xff]
      %v447 = vld [vmem:[%s212 + $0x2e8] sm:$0xff]
      %v448 = vld [vmem:[%s212 + $0x2f0] sm:$0xff]
      %v449 = vld [vmem:[%s212 + $0x2f8] sm:$0xff]
      %v450 = vld [vmem:[%s212 + $0x300] sm:$0xff]
      %v451 = vld [vmem:[%s212 + $0x308] sm:$0xff]
      %v452 = vld [vmem:[%s212 + $0x310] sm:$0xff]
      %v453 = vld [vmem:[%s212 + $0x318] sm:$0xff]
      %v454 = vld [vmem:[%s212 + $0x320] sm:$0xff]
      %v455 = vld [vmem:[%s212 + $0x328] sm:$0xff]
      %v456 = vld [vmem:[%s212 + $0x330] sm:$0xff]
      %v457 = vld [vmem:[%s212 + $0x338] sm:$0xff]
      %v458 = vld [vmem:[%s212 + $0x340] sm:$0xff]
      %v459 = vld [vmem:[%s212 + $0x348] sm:$0xff]
      %v460 = vld [vmem:[%s212 + $0x350] sm:$0xff]
      %v461 = vld [vmem:[%s212 + $0x358] sm:$0xff]
      %v462 = vld [vmem:[%s212 + $0x360] sm:$0xff]
      %v463 = vld [vmem:[%s212 + $0x368] sm:$0xff]
      %v464 = vld [vmem:[%s212 + $0x370] sm:$0xff]
      %v465 = vld [vmem:[%s212 + $0x378] sm:$0xff]
      %v466 = vld [vmem:[%s212 + $0x380] sm:$0xff]
      %v467 = vld [vmem:[%s212 + $0x388] sm:$0xff]
      %v468 = vld [vmem:[%s212 + $0x390] sm:$0xff]
      %v469 = vld [vmem:[%s212 + $0x398] sm:$0xff]
      %v470 = vld [vmem:[%s212 + $0x3a0] sm:$0xff]
      %v471 = vld [vmem:[%s212 + $0x3a8] sm:$0xff]
      %v472 = vld [vmem:[%s212 + $0x3b0] sm:$0xff]
      %v473 = vld [vmem:[%s212 + $0x3b8] sm:$0xff]
      %v474 = vld [vmem:[%s212 + $0x3c0] sm:$0xff]
      %v475 = vld [vmem:[%s212 + $0x3c8] sm:$0xff]
      %v476 = vld [vmem:[%s212 + $0x3d0] sm:$0xff]
      %v477 = vld [vmem:[%s212 + $0x3d8] sm:$0xff]
      %v478 = vld [vmem:[%s212 + $0x3e0] sm:$0xff]
      %v479 = vld [vmem:[%s212 + $0x3e8] sm:$0xff]
      %v480 = vld [vmem:[%s212 + $0x3f0] sm:$0xff]
      %v481 = vld [vmem:[%s212 + $0x3f8] sm:$0xff]
      %483 = vset.pattern.permute.xlu0 0
      %484 = vperm.xlu0 %483, %v218
      %v485 = vpop.permute.xlu0 %484
      %488 = vset.pattern.permute.xlu0 0
      %489 = vperm.xlu0 %488, %v219
      %v490 = vpop.permute.xlu0 %489
      %493 = vset.pattern.permute.xlu0 0
      %494 = vperm.xlu0 %493, %v220
      %v495 = vpop.permute.xlu0 %494
      %498 = vset.pattern.permute.xlu0 0
      %499 = vperm.xlu0 %498, %v221
      %v500 = vpop.permute.xlu0 %499
      %503 = vset.pattern.permute.xlu0 0
      %504 = vperm.xlu0 %503, %v222
      %v505 = vpop.permute.xlu0 %504
      %508 = vset.pattern.permute.xlu0 0
      %509 = vperm.xlu0 %508, %v223
      %v510 = vpop.permute.xlu0 %509
      %513 = vset.pattern.permute.xlu0 0
      %514 = vperm.xlu0 %513, %v224
      %v515 = vpop.permute.xlu0 %514
      %518 = vset.pattern.permute.xlu0 0
      %519 = vperm.xlu0 %518, %v225
      %v520 = vpop.permute.xlu0 %519
      %523 = vset.pattern.permute.xlu0 0
      %524 = vperm.xlu0 %523, %v226
      %v525 = vpop.permute.xlu0 %524
      %528 = vset.pattern.permute.xlu0 0
      %529 = vperm.xlu0 %528, %v227
      %v530 = vpop.permute.xlu0 %529
      %533 = vset.pattern.permute.xlu0 0
      %534 = vperm.xlu0 %533, %v228
      %v535 = vpop.permute.xlu0 %534
      %538 = vset.pattern.permute.xlu0 0
      %539 = vperm.xlu0 %538, %v229
      %v540 = vpop.permute.xlu0 %539
      %543 = vset.pattern.permute.xlu0 0
      %544 = vperm.xlu0 %543, %v230
      %v545 = vpop.permute.xlu0 %544
      %548 = vset.pattern.permute.xlu0 0
      %549 = vperm.xlu0 %548, %v231
      %v550 = vpop.permute.xlu0 %549
      %553 = vset.pattern.permute.xlu0 0
      %554 = vperm.xlu0 %553, %v232
      %v555 = vpop.permute.xlu0 %554
      %558 = vset.pattern.permute.xlu0 0
      %559 = vperm.xlu0 %558, %v233
      %v560 = vpop.permute.xlu0 %559
      %563 = vset.pattern.permute.xlu0 0
      %564 = vperm.xlu0 %563, %v234
      %v565 = vpop.permute.xlu0 %564
      %568 = vset.pattern.permute.xlu0 0
      %569 = vperm.xlu0 %568, %v235
      %v570 = vpop.permute.xlu0 %569
      %573 = vset.pattern.permute.xlu0 0
      %574 = vperm.xlu0 %573, %v236
      %v575 = vpop.permute.xlu0 %574
      %578 = vset.pattern.permute.xlu0 0
      %579 = vperm.xlu0 %578, %v237
      %v580 = vpop.permute.xlu0 %579
      %583 = vset.pattern.permute.xlu0 0
      %584 = vperm.xlu0 %583, %v238
      %v585 = vpop.permute.xlu0 %584
      %588 = vset.pattern.permute.xlu0 0
      %589 = vperm.xlu0 %588, %v239
      %v590 = vpop.permute.xlu0 %589
      %593 = vset.pattern.permute.xlu0 0
      %594 = vperm.xlu0 %593, %v240
      %v595 = vpop.permute.xlu0 %594
      %598 = vset.pattern.permute.xlu0 0
      %599 = vperm.xlu0 %598, %v241
      %v600 = vpop.permute.xlu0 %599
      %603 = vset.pattern.permute.xlu0 0
      %604 = vperm.xlu0 %603, %v242
      %v605 = vpop.permute.xlu0 %604
      %608 = vset.pattern.permute.xlu0 0
      %609 = vperm.xlu0 %608, %v243
      %v610 = vpop.permute.xlu0 %609
      %613 = vset.pattern.permute.xlu0 0
      %614 = vperm.xlu0 %613, %v244
      %v615 = vpop.permute.xlu0 %614
      %618 = vset.pattern.permute.xlu0 0
      %619 = vperm.xlu0 %618, %v245
      %v620 = vpop.permute.xlu0 %619
      %623 = vset.pattern.permute.xlu0 0
      %624 = vperm.xlu0 %623, %v246
      %v625 = vpop.permute.xlu0 %624
      %628 = vset.pattern.permute.xlu0 0
      %629 = vperm.xlu0 %628, %v247
      %v630 = vpop.permute.xlu0 %629
      %633 = vset.pattern.permute.xlu0 0
      %634 = vperm.xlu0 %633, %v248
      %v635 = vpop.permute.xlu0 %634
      %638 = vset.pattern.permute.xlu0 0
      %639 = vperm.xlu0 %638, %v249
      %v640 = vpop.permute.xlu0 %639
      %643 = vset.pattern.permute.xlu0 0
      %644 = vperm.xlu0 %643, %v250
      %v645 = vpop.permute.xlu0 %644
      %648 = vset.pattern.permute.xlu0 0
      %649 = vperm.xlu0 %648, %v251
      %v650 = vpop.permute.xlu0 %649
      %653 = vset.pattern.permute.xlu0 0
      %654 = vperm.xlu0 %653, %v252
      %v655 = vpop.permute.xlu0 %654
      %658 = vset.pattern.permute.xlu0 0
      %659 = vperm.xlu0 %658, %v253
      %v660 = vpop.permute.xlu0 %659
      %663 = vset.pattern.permute.xlu0 0
      %664 = vperm.xlu0 %663, %v254
      %v665 = vpop.permute.xlu0 %664
      %668 = vset.pattern.permute.xlu0 0
      %669 = vperm.xlu0 %668, %v255
      %v670 = vpop.permute.xlu0 %669
      %673 = vset.pattern.permute.xlu0 0
      %674 = vperm.xlu0 %673, %v256
      %v675 = vpop.permute.xlu0 %674
      %678 = vset.pattern.permute.xlu0 0
      %679 = vperm.xlu0 %678, %v257
      %v680 = vpop.permute.xlu0 %679
      %683 = vset.pattern.permute.xlu0 0
      %684 = vperm.xlu0 %683, %v258
      %v685 = vpop.permute.xlu0 %684
      %688 = vset.pattern.permute.xlu0 0
      %689 = vperm.xlu0 %688, %v259
      %v690 = vpop.permute.xlu0 %689
      %693 = vset.pattern.permute.xlu0 0
      %694 = vperm.xlu0 %693, %v260
      %v695 = vpop.permute.xlu0 %694
      %698 = vset.pattern.permute.xlu0 0
      %699 = vperm.xlu0 %698, %v261
      %v700 = vpop.permute.xlu0 %699
      %703 = vset.pattern.permute.xlu0 0
      %704 = vperm.xlu0 %703, %v262
      %v705 = vpop.permute.xlu0 %704
      %708 = vset.pattern.permute.xlu0 0
      %709 = vperm.xlu0 %708, %v263
      %v710 = vpop.permute.xlu0 %709
      %713 = vset.pattern.permute.xlu0 0
      %714 = vperm.xlu0 %713, %v264
      %v715 = vpop.permute.xlu0 %714
      %718 = vset.pattern.permute.xlu0 0
      %719 = vperm.xlu0 %718, %v265
      %v720 = vpop.permute.xlu0 %719
      %723 = vset.pattern.permute.xlu0 0
      %724 = vperm.xlu0 %723, %v266
      %v725 = vpop.permute.xlu0 %724
      %728 = vset.pattern.permute.xlu0 0
      %729 = vperm.xlu0 %728, %v267
      %v730 = vpop.permute.xlu0 %729
      %733 = vset.pattern.permute.xlu0 0
      %734 = vperm.xlu0 %733, %v268
      %v735 = vpop.permute.xlu0 %734
      %738 = vset.pattern.permute.xlu0 0
      %739 = vperm.xlu0 %738, %v269
      %v740 = vpop.permute.xlu0 %739
      %743 = vset.pattern.permute.xlu0 0
      %744 = vperm.xlu0 %743, %v270
      %v745 = vpop.permute.xlu0 %744
      %748 = vset.pattern.permute.xlu0 0
      %749 = vperm.xlu0 %748, %v271
      %v750 = vpop.permute.xlu0 %749
      %753 = vset.pattern.permute.xlu0 0
      %754 = vperm.xlu0 %753, %v272
      %v755 = vpop.permute.xlu0 %754
      %758 = vset.pattern.permute.xlu0 0
      %759 = vperm.xlu0 %758, %v273
      %v760 = vpop.permute.xlu0 %759
      %763 = vset.pattern.permute.xlu0 0
      %764 = vperm.xlu0 %763, %v274
      %v765 = vpop.permute.xlu0 %764
      %768 = vset.pattern.permute.xlu0 0
      %769 = vperm.xlu0 %768, %v275
      %v770 = vpop.permute.xlu0 %769
      %773 = vset.pattern.permute.xlu0 0
      %774 = vperm.xlu0 %773, %v276
      %v775 = vpop.permute.xlu0 %774
      %778 = vset.pattern.permute.xlu0 0
      %779 = vperm.xlu0 %778, %v277
      %v780 = vpop.permute.xlu0 %779
      %783 = vset.pattern.permute.xlu0 0
      %784 = vperm.xlu0 %783, %v278
      %v785 = vpop.permute.xlu0 %784
      %788 = vset.pattern.permute.xlu0 0
      %789 = vperm.xlu0 %788, %v279
      %v790 = vpop.permute.xlu0 %789
      %793 = vset.pattern.permute.xlu0 0
      %794 = vperm.xlu0 %793, %v280
      %v795 = vpop.permute.xlu0 %794
      %798 = vset.pattern.permute.xlu0 0
      %799 = vperm.xlu0 %798, %v281
      %v800 = vpop.permute.xlu0 %799
      %803 = vset.pattern.permute.xlu0 0
      %804 = vperm.xlu0 %803, %v282
      %v805 = vpop.permute.xlu0 %804
      %808 = vset.pattern.permute.xlu0 0
      %809 = vperm.xlu0 %808, %v283
      %v810 = vpop.permute.xlu0 %809
      %813 = vset.pattern.permute.xlu0 0
      %814 = vperm.xlu0 %813, %v284
      %v815 = vpop.permute.xlu0 %814
      %818 = vset.pattern.permute.xlu0 0
      %819 = vperm.xlu0 %818, %v285
      %v820 = vpop.permute.xlu0 %819
      %823 = vset.pattern.permute.xlu0 0
      %824 = vperm.xlu0 %823, %v286
      %v825 = vpop.permute.xlu0 %824
      %828 = vset.pattern.permute.xlu0 0
      %829 = vperm.xlu0 %828, %v287
      %v830 = vpop.permute.xlu0 %829
      %833 = vset.pattern.permute.xlu0 0
      %834 = vperm.xlu0 %833, %v288
      %v835 = vpop.permute.xlu0 %834
      %838 = vset.pattern.permute.xlu0 0
      %839 = vperm.xlu0 %838, %v289
      %v840 = vpop.permute.xlu0 %839
      %843 = vset.pattern.permute.xlu0 0
      %844 = vperm.xlu0 %843, %v290
      %v845 = vpop.permute.xlu0 %844
      %848 = vset.pattern.permute.xlu0 0
      %849 = vperm.xlu0 %848, %v291
      %v850 = vpop.permute.xlu0 %849
      %853 = vset.pattern.permute.xlu0 0
      %854 = vperm.xlu0 %853, %v292
      %v855 = vpop.permute.xlu0 %854
      %858 = vset.pattern.permute.xlu0 0
      %859 = vperm.xlu0 %858, %v293
      %v860 = vpop.permute.xlu0 %859
      %863 = vset.pattern.permute.xlu0 0
      %864 = vperm.xlu0 %863, %v294
      %v865 = vpop.permute.xlu0 %864
      %868 = vset.pattern.permute.xlu0 0
      %869 = vperm.xlu0 %868, %v295
      %v870 = vpop.permute.xlu0 %869
      %873 = vset.pattern.permute.xlu0 0
      %874 = vperm.xlu0 %873, %v296
      %v875 = vpop.permute.xlu0 %874
      %878 = vset.pattern.permute.xlu0 0
      %879 = vperm.xlu0 %878, %v297
      %v880 = vpop.permute.xlu0 %879
      %883 = vset.pattern.permute.xlu0 0
      %884 = vperm.xlu0 %883, %v298
      %v885 = vpop.permute.xlu0 %884
      %888 = vset.pattern.permute.xlu0 0
      %889 = vperm.xlu0 %888, %v299
      %v890 = vpop.permute.xlu0 %889
      %893 = vset.pattern.permute.xlu0 0
      %894 = vperm.xlu0 %893, %v300
      %v895 = vpop.permute.xlu0 %894
      %898 = vset.pattern.permute.xlu0 0
      %899 = vperm.xlu0 %898, %v301
      %v900 = vpop.permute.xlu0 %899
      %903 = vset.pattern.permute.xlu0 0
      %904 = vperm.xlu0 %903, %v302
      %v905 = vpop.permute.xlu0 %904
      %908 = vset.pattern.permute.xlu0 0
      %909 = vperm.xlu0 %908, %v303
      %v910 = vpop.permute.xlu0 %909
      %913 = vset.pattern.permute.xlu0 0
      %914 = vperm.xlu0 %913, %v304
      %v915 = vpop.permute.xlu0 %914
      %918 = vset.pattern.permute.xlu0 0
      %919 = vperm.xlu0 %918, %v305
      %v920 = vpop.permute.xlu0 %919
      %923 = vset.pattern.permute.xlu0 0
      %924 = vperm.xlu0 %923, %v306
      %v925 = vpop.permute.xlu0 %924
      %928 = vset.pattern.permute.xlu0 0
      %929 = vperm.xlu0 %928, %v307
      %v930 = vpop.permute.xlu0 %929
      %933 = vset.pattern.permute.xlu0 0
      %934 = vperm.xlu0 %933, %v308
      %v935 = vpop.permute.xlu0 %934
      %938 = vset.pattern.permute.xlu0 0
      %939 = vperm.xlu0 %938, %v309
      %v940 = vpop.permute.xlu0 %939
      %943 = vset.pattern.permute.xlu0 0
      %944 = vperm.xlu0 %943, %v310
      %v945 = vpop.permute.xlu0 %944
      %948 = vset.pattern.permute.xlu0 0
      %949 = vperm.xlu0 %948, %v311
      %v950 = vpop.permute.xlu0 %949
      %953 = vset.pattern.permute.xlu0 0
      %954 = vperm.xlu0 %953, %v312
      %v955 = vpop.permute.xlu0 %954
      %958 = vset.pattern.permute.xlu0 0
      %959 = vperm.xlu0 %958, %v313
      %v960 = vpop.permute.xlu0 %959
      %963 = vset.pattern.permute.xlu0 0
      %964 = vperm.xlu0 %963, %v314
      %v965 = vpop.permute.xlu0 %964
      %968 = vset.pattern.permute.xlu0 0
      %969 = vperm.xlu0 %968, %v315
      %v970 = vpop.permute.xlu0 %969
      %973 = vset.pattern.permute.xlu0 0
      %974 = vperm.xlu0 %973, %v316
      %v975 = vpop.permute.xlu0 %974
      %978 = vset.pattern.permute.xlu0 0
      %979 = vperm.xlu0 %978, %v317
      %v980 = vpop.permute.xlu0 %979
      %983 = vset.pattern.permute.xlu0 0
      %984 = vperm.xlu0 %983, %v318
      %v985 = vpop.permute.xlu0 %984
      %988 = vset.pattern.permute.xlu0 0
      %989 = vperm.xlu0 %988, %v319
      %v990 = vpop.permute.xlu0 %989
      %993 = vset.pattern.permute.xlu0 0
      %994 = vperm.xlu0 %993, %v320
      %v995 = vpop.permute.xlu0 %994
      %998 = vset.pattern.permute.xlu0 0
      %999 = vperm.xlu0 %998, %v321
      %v1000 = vpop.permute.xlu0 %999
      %1003 = vset.pattern.permute.xlu0 0
      %1004 = vperm.xlu0 %1003, %v322
      %v1005 = vpop.permute.xlu0 %1004
      %1008 = vset.pattern.permute.xlu0 0
      %1009 = vperm.xlu0 %1008, %v323
      %v1010 = vpop.permute.xlu0 %1009
      %1013 = vset.pattern.permute.xlu0 0
      %1014 = vperm.xlu0 %1013, %v324
      %v1015 = vpop.permute.xlu0 %1014
      %1018 = vset.pattern.permute.xlu0 0
      %1019 = vperm.xlu0 %1018, %v325
      %v1020 = vpop.permute.xlu0 %1019
      %1023 = vset.pattern.permute.xlu0 0
      %1024 = vperm.xlu0 %1023, %v326
      %v1025 = vpop.permute.xlu0 %1024
      %1028 = vset.pattern.permute.xlu0 0
      %1029 = vperm.xlu0 %1028, %v327
      %v1030 = vpop.permute.xlu0 %1029
      %1033 = vset.pattern.permute.xlu0 0
      %1034 = vperm.xlu0 %1033, %v328
      %v1035 = vpop.permute.xlu0 %1034
      %1038 = vset.pattern.permute.xlu0 0
      %1039 = vperm.xlu0 %1038, %v329
      %v1040 = vpop.permute.xlu0 %1039
      %1043 = vset.pattern.permute.xlu0 0
      %1044 = vperm.xlu0 %1043, %v330
      %v1045 = vpop.permute.xlu0 %1044
      %1048 = vset.pattern.permute.xlu0 0
      %1049 = vperm.xlu0 %1048, %v331
      %v1050 = vpop.permute.xlu0 %1049
      %1053 = vset.pattern.permute.xlu0 0
      %1054 = vperm.xlu0 %1053, %v332
      %v1055 = vpop.permute.xlu0 %1054
      %1058 = vset.pattern.permute.xlu0 0
      %1059 = vperm.xlu0 %1058, %v333
      %v1060 = vpop.permute.xlu0 %1059
      %1063 = vset.pattern.permute.xlu0 0
      %1064 = vperm.xlu0 %1063, %v334
      %v1065 = vpop.permute.xlu0 %1064
      %1068 = vset.pattern.permute.xlu0 0
      %1069 = vperm.xlu0 %1068, %v335
      %v1070 = vpop.permute.xlu0 %1069
      %1073 = vset.pattern.permute.xlu0 0
      %1074 = vperm.xlu0 %1073, %v336
      %v1075 = vpop.permute.xlu0 %1074
      %1078 = vset.pattern.permute.xlu0 0
      %1079 = vperm.xlu0 %1078, %v337
      %v1080 = vpop.permute.xlu0 %1079
      %1083 = vset.pattern.permute.xlu0 0
      %1084 = vperm.xlu0 %1083, %v338
      %v1085 = vpop.permute.xlu0 %1084
      %1088 = vset.pattern.permute.xlu0 0
      %1089 = vperm.xlu0 %1088, %v339
      %v1090 = vpop.permute.xlu0 %1089
      %1093 = vset.pattern.permute.xlu0 0
      %1094 = vperm.xlu0 %1093, %v340
      %v1095 = vpop.permute.xlu0 %1094
      %1098 = vset.pattern.permute.xlu0 0
      %1099 = vperm.xlu0 %1098, %v341
      %v1100 = vpop.permute.xlu0 %1099
      %1103 = vset.pattern.permute.xlu0 0
      %1104 = vperm.xlu0 %1103, %v342
      %v1105 = vpop.permute.xlu0 %1104
      %1108 = vset.pattern.permute.xlu0 0
      %1109 = vperm.xlu0 %1108, %v343
      %v1110 = vpop.permute.xlu0 %1109
      %1113 = vset.pattern.permute.xlu0 0
      %1114 = vperm.xlu0 %1113, %v344
      %v1115 = vpop.permute.xlu0 %1114
      %1118 = vset.pattern.permute.xlu0 0
      %1119 = vperm.xlu0 %1118, %v345
      %v1120 = vpop.permute.xlu0 %1119
      %v1130 = vlaneseq
      %v1131 = vshrl.u32 %v1130, 7
      %v1132 = vsub.s32 0, %v1131
      %v1133 = vrot.slane %v346, %v1132
      %v1134 = vlaneseq
      %v1135 = vshrl.u32 %v1134, 7
      %v1136 = vsub.s32 0, %v1135
      %v1137 = vrot.slane %v347, %v1136
      %v1138 = vlaneseq
      %v1139 = vshrl.u32 %v1138, 7
      %v1140 = vsub.s32 0, %v1139
      %v1141 = vrot.slane %v348, %v1140
      %v1142 = vlaneseq
      %v1143 = vshrl.u32 %v1142, 7
      %v1144 = vsub.s32 0, %v1143
      %v1145 = vrot.slane %v349, %v1144
      %v1146 = vlaneseq
      %v1147 = vshrl.u32 %v1146, 7
      %v1148 = vsub.s32 0, %v1147
      %v1149 = vrot.slane %v350, %v1148
      %v1150 = vlaneseq
      %v1151 = vshrl.u32 %v1150, 7
      %v1152 = vsub.s32 0, %v1151
      %v1153 = vrot.slane %v351, %v1152
      %v1154 = vlaneseq
      %v1155 = vshrl.u32 %v1154, 7
      %v1156 = vsub.s32 0, %v1155
      %v1157 = vrot.slane %v352, %v1156
      %v1158 = vlaneseq
      %v1159 = vshrl.u32 %v1158, 7
      %v1160 = vsub.s32 0, %v1159
      %v1161 = vrot.slane %v353, %v1160
      %v1170 = vmul.f32 %v485, %v1133
      %v1171 = vmul.f32 %v490, %v1133
      %v1172 = vmul.f32 %v495, %v1133
      %v1173 = vmul.f32 %v500, %v1133
      %v1174 = vmul.f32 %v505, %v1133
      %v1175 = vmul.f32 %v510, %v1133
      %v1176 = vmul.f32 %v515, %v1133
      %v1177 = vmul.f32 %v520, %v1133
      %v1178 = vmul.f32 %v525, %v1133
      %v1179 = vmul.f32 %v530, %v1133
      %v1180 = vmul.f32 %v535, %v1133
      %v1181 = vmul.f32 %v540, %v1133
      %v1182 = vmul.f32 %v545, %v1133
      %v1183 = vmul.f32 %v550, %v1133
      %v1184 = vmul.f32 %v555, %v1133
      %v1185 = vmul.f32 %v560, %v1133
      %v1186 = vmul.f32 %v565, %v1137
      %v1187 = vmul.f32 %v570, %v1137
      %v1188 = vmul.f32 %v575, %v1137
      %v1189 = vmul.f32 %v580, %v1137
      %v1190 = vmul.f32 %v585, %v1137
      %v1191 = vmul.f32 %v590, %v1137
      %v1192 = vmul.f32 %v595, %v1137
      %v1193 = vmul.f32 %v600, %v1137
      %v1194 = vmul.f32 %v605, %v1137
      %v1195 = vmul.f32 %v610, %v1137
      %v1196 = vmul.f32 %v615, %v1137
      %v1197 = vmul.f32 %v620, %v1137
      %v1198 = vmul.f32 %v625, %v1137
      %v1199 = vmul.f32 %v630, %v1137
      %v1200 = vmul.f32 %v635, %v1137
      %v1201 = vmul.f32 %v640, %v1137
      %v1202 = vmul.f32 %v645, %v1141
      %v1203 = vmul.f32 %v650, %v1141
      %v1204 = vmul.f32 %v655, %v1141
      %v1205 = vmul.f32 %v660, %v1141
      %v1206 = vmul.f32 %v665, %v1141
      %v1207 = vmul.f32 %v670, %v1141
      %v1208 = vmul.f32 %v675, %v1141
      %v1209 = vmul.f32 %v680, %v1141
      %v1210 = vmul.f32 %v685, %v1141
      %v1211 = vmul.f32 %v690, %v1141
      %v1212 = vmul.f32 %v695, %v1141
      %v1213 = vmul.f32 %v700, %v1141
      %v1214 = vmul.f32 %v705, %v1141
      %v1215 = vmul.f32 %v710, %v1141
      %v1216 = vmul.f32 %v715, %v1141
      %v1217 = vmul.f32 %v720, %v1141
      %v1218 = vmul.f32 %v725, %v1145
      %v1219 = vmul.f32 %v730, %v1145
      %v1220 = vmul.f32 %v735, %v1145
      %v1221 = vmul.f32 %v740, %v1145
      %v1222 = vmul.f32 %v745, %v1145
      %v1223 = vmul.f32 %v750, %v1145
      %v1224 = vmul.f32 %v755, %v1145
      %v1225 = vmul.f32 %v760, %v1145
      %v1226 = vmul.f32 %v765, %v1145
      %v1227 = vmul.f32 %v770, %v1145
      %v1228 = vmul.f32 %v775, %v1145
      %v1229 = vmul.f32 %v780, %v1145
      %v1230 = vmul.f32 %v785, %v1145
      %v1231 = vmul.f32 %v790, %v1145
      %v1232 = vmul.f32 %v795, %v1145
      %v1233 = vmul.f32 %v800, %v1145
      %v1234 = vmul.f32 %v805, %v1149
      %v1235 = vmul.f32 %v810, %v1149
      %v1236 = vmul.f32 %v815, %v1149
      %v1237 = vmul.f32 %v820, %v1149
      %v1238 = vmul.f32 %v825, %v1149
      %v1239 = vmul.f32 %v830, %v1149
      %v1240 = vmul.f32 %v835, %v1149
      %v1241 = vmul.f32 %v840, %v1149
      %v1242 = vmul.f32 %v845, %v1149
      %v1243 = vmul.f32 %v850, %v1149
      %v1244 = vmul.f32 %v855, %v1149
      %v1245 = vmul.f32 %v860, %v1149
      %v1246 = vmul.f32 %v865, %v1149
      %v1247 = vmul.f32 %v870, %v1149
      %v1248 = vmul.f32 %v875, %v1149
      %v1249 = vmul.f32 %v880, %v1149
      %v1250 = vmul.f32 %v885, %v1153
      %v1251 = vmul.f32 %v890, %v1153
      %v1252 = vmul.f32 %v895, %v1153
      %v1253 = vmul.f32 %v900, %v1153
      %v1254 = vmul.f32 %v905, %v1153
      %v1255 = vmul.f32 %v910, %v1153
      %v1256 = vmul.f32 %v915, %v1153
      %v1257 = vmul.f32 %v920, %v1153
      %v1258 = vmul.f32 %v925, %v1153
      %v1259 = vmul.f32 %v930, %v1153
      %v1260 = vmul.f32 %v935, %v1153
      %v1261 = vmul.f32 %v940, %v1153
      %v1262 = vmul.f32 %v945, %v1153
      %v1263 = vmul.f32 %v950, %v1153
      %v1264 = vmul.f32 %v955, %v1153
      %v1265 = vmul.f32 %v960, %v1153
      %v1266 = vmul.f32 %v965, %v1157
      %v1267 = vmul.f32 %v970, %v1157
      %v1268 = vmul.f32 %v975, %v1157
      %v1269 = vmul.f32 %v980, %v1157
      %v1270 = vmul.f32 %v985, %v1157
      %v1271 = vmul.f32 %v990, %v1157
      %v1272 = vmul.f32 %v995, %v1157
      %v1273 = vmul.f32 %v1000, %v1157
      %v1274 = vmul.f32 %v1005, %v1157
      %v1275 = vmul.f32 %v1010, %v1157
      %v1276 = vmul.f32 %v1015, %v1157
      %v1277 = vmul.f32 %v1020, %v1157
      %v1278 = vmul.f32 %v1025, %v1157
      %v1279 = vmul.f32 %v1030, %v1157
      %v1280 = vmul.f32 %v1035, %v1157
      %v1281 = vmul.f32 %v1040, %v1157
      %v1282 = vmul.f32 %v1045, %v1161
      %v1283 = vmul.f32 %v1050, %v1161
      %v1284 = vmul.f32 %v1055, %v1161
      %v1285 = vmul.f32 %v1060, %v1161
      %v1286 = vmul.f32 %v1065, %v1161
      %v1287 = vmul.f32 %v1070, %v1161
      %v1288 = vmul.f32 %v1075, %v1161
      %v1289 = vmul.f32 %v1080, %v1161
      %v1290 = vmul.f32 %v1085, %v1161
      %v1291 = vmul.f32 %v1090, %v1161
      %v1292 = vmul.f32 %v1095, %v1161
      %v1293 = vmul.f32 %v1100, %v1161
      %v1294 = vmul.f32 %v1105, %v1161
      %v1295 = vmul.f32 %v1110, %v1161
      %v1296 = vmul.f32 %v1115, %v1161
      %v1297 = vmul.f32 %v1120, %v1161
      %v1298 = vadd.f32 %v1170, 1.1920929e-07
      %v1299 = vadd.f32 %v1171, 1.1920929e-07
      %v1300 = vadd.f32 %v1172, 1.1920929e-07
      %v1301 = vadd.f32 %v1173, 1.1920929e-07
      %v1302 = vadd.f32 %v1174, 1.1920929e-07
      %v1303 = vadd.f32 %v1175, 1.1920929e-07
      %v1304 = vadd.f32 %v1176, 1.1920929e-07
      %v1305 = vadd.f32 %v1177, 1.1920929e-07
      %v1306 = vadd.f32 %v1178, 1.1920929e-07
      %v1307 = vadd.f32 %v1179, 1.1920929e-07
      %v1308 = vadd.f32 %v1180, 1.1920929e-07
      %v1309 = vadd.f32 %v1181, 1.1920929e-07
      %v1310 = vadd.f32 %v1182, 1.1920929e-07
      %v1311 = vadd.f32 %v1183, 1.1920929e-07
      %v1312 = vadd.f32 %v1184, 1.1920929e-07
      %v1313 = vadd.f32 %v1185, 1.1920929e-07
      %v1314 = vadd.f32 %v1186, 1.1920929e-07
      %v1315 = vadd.f32 %v1187, 1.1920929e-07
      %v1316 = vadd.f32 %v1188, 1.1920929e-07
      %v1317 = vadd.f32 %v1189, 1.1920929e-07
      %v1318 = vadd.f32 %v1190, 1.1920929e-07
      %v1319 = vadd.f32 %v1191, 1.1920929e-07
      %v1320 = vadd.f32 %v1192, 1.1920929e-07
      %v1321 = vadd.f32 %v1193, 1.1920929e-07
      %v1322 = vadd.f32 %v1194, 1.1920929e-07
      %v1323 = vadd.f32 %v1195, 1.1920929e-07
      %v1324 = vadd.f32 %v1196, 1.1920929e-07
      %v1325 = vadd.f32 %v1197, 1.1920929e-07
      %v1326 = vadd.f32 %v1198, 1.1920929e-07
      %v1327 = vadd.f32 %v1199, 1.1920929e-07
      %v1328 = vadd.f32 %v1200, 1.1920929e-07
      %v1329 = vadd.f32 %v1201, 1.1920929e-07
      %v1330 = vadd.f32 %v1202, 1.1920929e-07
      %v1331 = vadd.f32 %v1203, 1.1920929e-07
      %v1332 = vadd.f32 %v1204, 1.1920929e-07
      %v1333 = vadd.f32 %v1205, 1.1920929e-07
      %v1334 = vadd.f32 %v1206, 1.1920929e-07
      %v1335 = vadd.f32 %v1207, 1.1920929e-07
      %v1336 = vadd.f32 %v1208, 1.1920929e-07
      %v1337 = vadd.f32 %v1209, 1.1920929e-07
      %v1338 = vadd.f32 %v1210, 1.1920929e-07
      %v1339 = vadd.f32 %v1211, 1.1920929e-07
      %v1340 = vadd.f32 %v1212, 1.1920929e-07
      %v1341 = vadd.f32 %v1213, 1.1920929e-07
      %v1342 = vadd.f32 %v1214, 1.1920929e-07
      %v1343 = vadd.f32 %v1215, 1.1920929e-07
      %v1344 = vadd.f32 %v1216, 1.1920929e-07
      %v1345 = vadd.f32 %v1217, 1.1920929e-07
      %v1346 = vadd.f32 %v1218, 1.1920929e-07
      %v1347 = vadd.f32 %v1219, 1.1920929e-07
      %v1348 = vadd.f32 %v1220, 1.1920929e-07
      %v1349 = vadd.f32 %v1221, 1.1920929e-07
      %v1350 = vadd.f32 %v1222, 1.1920929e-07
      %v1351 = vadd.f32 %v1223, 1.1920929e-07
      %v1352 = vadd.f32 %v1224, 1.1920929e-07
      %v1353 = vadd.f32 %v1225, 1.1920929e-07
      %v1354 = vadd.f32 %v1226, 1.1920929e-07
      %v1355 = vadd.f32 %v1227, 1.1920929e-07
      %v1356 = vadd.f32 %v1228, 1.1920929e-07
      %v1357 = vadd.f32 %v1229, 1.1920929e-07
      %v1358 = vadd.f32 %v1230, 1.1920929e-07
      %v1359 = vadd.f32 %v1231, 1.1920929e-07
      %v1360 = vadd.f32 %v1232, 1.1920929e-07
      %v1361 = vadd.f32 %v1233, 1.1920929e-07
      %v1362 = vadd.f32 %v1234, 1.1920929e-07
      %v1363 = vadd.f32 %v1235, 1.1920929e-07
      %v1364 = vadd.f32 %v1236, 1.1920929e-07
      %v1365 = vadd.f32 %v1237, 1.1920929e-07
      %v1366 = vadd.f32 %v1238, 1.1920929e-07
      %v1367 = vadd.f32 %v1239, 1.1920929e-07
      %v1368 = vadd.f32 %v1240, 1.1920929e-07
      %v1369 = vadd.f32 %v1241, 1.1920929e-07
      %v1370 = vadd.f32 %v1242, 1.1920929e-07
      %v1371 = vadd.f32 %v1243, 1.1920929e-07
      %v1372 = vadd.f32 %v1244, 1.1920929e-07
      %v1373 = vadd.f32 %v1245, 1.1920929e-07
      %v1374 = vadd.f32 %v1246, 1.1920929e-07
      %v1375 = vadd.f32 %v1247, 1.1920929e-07
      %v1376 = vadd.f32 %v1248, 1.1920929e-07
      %v1377 = vadd.f32 %v1249, 1.1920929e-07
      %v1378 = vadd.f32 %v1250, 1.1920929e-07
      %v1379 = vadd.f32 %v1251, 1.1920929e-07
      %v1380 = vadd.f32 %v1252, 1.1920929e-07
      %v1381 = vadd.f32 %v1253, 1.1920929e-07
      %v1382 = vadd.f32 %v1254, 1.1920929e-07
      %v1383 = vadd.f32 %v1255, 1.1920929e-07
      %v1384 = vadd.f32 %v1256, 1.1920929e-07
      %v1385 = vadd.f32 %v1257, 1.1920929e-07
      %v1386 = vadd.f32 %v1258, 1.1920929e-07
      %v1387 = vadd.f32 %v1259, 1.1920929e-07
      %v1388 = vadd.f32 %v1260, 1.1920929e-07
      %v1389 = vadd.f32 %v1261, 1.1920929e-07
      %v1390 = vadd.f32 %v1262, 1.1920929e-07
      %v1391 = vadd.f32 %v1263, 1.1920929e-07
      %v1392 = vadd.f32 %v1264, 1.1920929e-07
      %v1393 = vadd.f32 %v1265, 1.1920929e-07
      %v1394 = vadd.f32 %v1266, 1.1920929e-07
      %v1395 = vadd.f32 %v1267, 1.1920929e-07
      %v1396 = vadd.f32 %v1268, 1.1920929e-07
      %v1397 = vadd.f32 %v1269, 1.1920929e-07
      %v1398 = vadd.f32 %v1270, 1.1920929e-07
      %v1399 = vadd.f32 %v1271, 1.1920929e-07
      %v1400 = vadd.f32 %v1272, 1.1920929e-07
      %v1401 = vadd.f32 %v1273, 1.1920929e-07
      %v1402 = vadd.f32 %v1274, 1.1920929e-07
      %v1403 = vadd.f32 %v1275, 1.1920929e-07
      %v1404 = vadd.f32 %v1276, 1.1920929e-07
      %v1405 = vadd.f32 %v1277, 1.1920929e-07
      %v1406 = vadd.f32 %v1278, 1.1920929e-07
      %v1407 = vadd.f32 %v1279, 1.1920929e-07
      %v1408 = vadd.f32 %v1280, 1.1920929e-07
      %v1409 = vadd.f32 %v1281, 1.1920929e-07
      %v1410 = vadd.f32 %v1282, 1.1920929e-07
      %v1411 = vadd.f32 %v1283, 1.1920929e-07
      %v1412 = vadd.f32 %v1284, 1.1920929e-07
      %v1413 = vadd.f32 %v1285, 1.1920929e-07
      %v1414 = vadd.f32 %v1286, 1.1920929e-07
      %v1415 = vadd.f32 %v1287, 1.1920929e-07
      %v1416 = vadd.f32 %v1288, 1.1920929e-07
      %v1417 = vadd.f32 %v1289, 1.1920929e-07
      %v1418 = vadd.f32 %v1290, 1.1920929e-07
      %v1419 = vadd.f32 %v1291, 1.1920929e-07
      %v1420 = vadd.f32 %v1292, 1.1920929e-07
      %v1421 = vadd.f32 %v1293, 1.1920929e-07
      %v1422 = vadd.f32 %v1294, 1.1920929e-07
      %v1423 = vadd.f32 %v1295, 1.1920929e-07
      %v1424 = vadd.f32 %v1296, 1.1920929e-07
      %v1425 = vadd.f32 %v1297, 1.1920929e-07
      %v1426 = vmul.f32 %v1298, 1.1920929e-07
      %v1427 = vmul.f32 %v1299, 1.1920929e-07
      %v1428 = vmul.f32 %v1300, 1.1920929e-07
      %v1429 = vmul.f32 %v1301, 1.1920929e-07
      %v1430 = vmul.f32 %v1302, 1.1920929e-07
      %v1431 = vmul.f32 %v1303, 1.1920929e-07
      %v1432 = vmul.f32 %v1304, 1.1920929e-07
      %v1433 = vmul.f32 %v1305, 1.1920929e-07
      %v1434 = vmul.f32 %v1306, 1.1920929e-07
      %v1435 = vmul.f32 %v1307, 1.1920929e-07
      %v1436 = vmul.f32 %v1308, 1.1920929e-07
      %v1437 = vmul.f32 %v1309, 1.1920929e-07
      %v1438 = vmul.f32 %v1310, 1.1920929e-07
      %v1439 = vmul.f32 %v1311, 1.1920929e-07
      %v1440 = vmul.f32 %v1312, 1.1920929e-07
      %v1441 = vmul.f32 %v1313, 1.1920929e-07
      %v1442 = vmul.f32 %v1314, 1.1920929e-07
      %v1443 = vmul.f32 %v1315, 1.1920929e-07
      %v1444 = vmul.f32 %v1316, 1.1920929e-07
      %v1445 = vmul.f32 %v1317, 1.1920929e-07
      %v1446 = vmul.f32 %v1318, 1.1920929e-07
      %v1447 = vmul.f32 %v1319, 1.1920929e-07
      %v1448 = vmul.f32 %v1320, 1.1920929e-07
      %v1449 = vmul.f32 %v1321, 1.1920929e-07
      %v1450 = vmul.f32 %v1322, 1.1920929e-07
      %v1451 = vmul.f32 %v1323, 1.1920929e-07
      %v1452 = vmul.f32 %v1324, 1.1920929e-07
      %v1453 = vmul.f32 %v1325, 1.1920929e-07
      %v1454 = vmul.f32 %v1326, 1.1920929e-07
      %v1455 = vmul.f32 %v1327, 1.1920929e-07
      %v1456 = vmul.f32 %v1328, 1.1920929e-07
      %v1457 = vmul.f32 %v1329, 1.1920929e-07
      %v1458 = vmul.f32 %v1330, 1.1920929e-07
      %v1459 = vmul.f32 %v1331, 1.1920929e-07
      %v1460 = vmul.f32 %v1332, 1.1920929e-07
      %v1461 = vmul.f32 %v1333, 1.1920929e-07
      %v1462 = vmul.f32 %v1334, 1.1920929e-07
      %v1463 = vmul.f32 %v1335, 1.1920929e-07
      %v1464 = vmul.f32 %v1336, 1.1920929e-07
      %v1465 = vmul.f32 %v1337, 1.1920929e-07
      %v1466 = vmul.f32 %v1338, 1.1920929e-07
      %v1467 = vmul.f32 %v1339, 1.1920929e-07
      %v1468 = vmul.f32 %v1340, 1.1920929e-07
      %v1469 = vmul.f32 %v1341, 1.1920929e-07
      %v1470 = vmul.f32 %v1342, 1.1920929e-07
      %v1471 = vmul.f32 %v1343, 1.1920929e-07
      %v1472 = vmul.f32 %v1344, 1.1920929e-07
      %v1473 = vmul.f32 %v1345, 1.1920929e-07
      %v1474 = vmul.f32 %v1346, 1.1920929e-07
      %v1475 = vmul.f32 %v1347, 1.1920929e-07
      %v1476 = vmul.f32 %v1348, 1.1920929e-07
      %v1477 = vmul.f32 %v1349, 1.1920929e-07
      %v1478 = vmul.f32 %v1350, 1.1920929e-07
      %v1479 = vmul.f32 %v1351, 1.1920929e-07
      %v1480 = vmul.f32 %v1352, 1.1920929e-07
      %v1481 = vmul.f32 %v1353, 1.1920929e-07
      %v1482 = vmul.f32 %v1354, 1.1920929e-07
      %v1483 = vmul.f32 %v1355, 1.1920929e-07
      %v1484 = vmul.f32 %v1356, 1.1920929e-07
      %v1485 = vmul.f32 %v1357, 1.1920929e-07
      %v1486 = vmul.f32 %v1358, 1.1920929e-07
      %v1487 = vmul.f32 %v1359, 1.1920929e-07
      %v1488 = vmul.f32 %v1360, 1.1920929e-07
      %v1489 = vmul.f32 %v1361, 1.1920929e-07
      %v1490 = vmul.f32 %v1362, 1.1920929e-07
      %v1491 = vmul.f32 %v1363, 1.1920929e-07
      %v1492 = vmul.f32 %v1364, 1.1920929e-07
      %v1493 = vmul.f32 %v1365, 1.1920929e-07
      %v1494 = vmul.f32 %v1366, 1.1920929e-07
      %v1495 = vmul.f32 %v1367, 1.1920929e-07
      %v1496 = vmul.f32 %v1368, 1.1920929e-07
      %v1497 = vmul.f32 %v1369, 1.1920929e-07
      %v1498 = vmul.f32 %v1370, 1.1920929e-07
      %v1499 = vmul.f32 %v1371, 1.1920929e-07
      %v1500 = vmul.f32 %v1372, 1.1920929e-07
      %v1501 = vmul.f32 %v1373, 1.1920929e-07
      %v1502 = vmul.f32 %v1374, 1.1920929e-07
      %v1503 = vmul.f32 %v1375, 1.1920929e-07
      %v1504 = vmul.f32 %v1376, 1.1920929e-07
      %v1505 = vmul.f32 %v1377, 1.1920929e-07
      %v1506 = vmul.f32 %v1378, 1.1920929e-07
      %v1507 = vmul.f32 %v1379, 1.1920929e-07
      %v1508 = vmul.f32 %v1380, 1.1920929e-07
      %v1509 = vmul.f32 %v1381, 1.1920929e-07
      %v1510 = vmul.f32 %v1382, 1.1920929e-07
      %v1511 = vmul.f32 %v1383, 1.1920929e-07
      %v1512 = vmul.f32 %v1384, 1.1920929e-07
      %v1513 = vmul.f32 %v1385, 1.1920929e-07
      %v1514 = vmul.f32 %v1386, 1.1920929e-07
      %v1515 = vmul.f32 %v1387, 1.1920929e-07
      %v1516 = vmul.f32 %v1388, 1.1920929e-07
      %v1517 = vmul.f32 %v1389, 1.1920929e-07
      %v1518 = vmul.f32 %v1390, 1.1920929e-07
      %v1519 = vmul.f32 %v1391, 1.1920929e-07
      %v1520 = vmul.f32 %v1392, 1.1920929e-07
      %v1521 = vmul.f32 %v1393, 1.1920929e-07
      %v1522 = vmul.f32 %v1394, 1.1920929e-07
      %v1523 = vmul.f32 %v1395, 1.1920929e-07
      %v1524 = vmul.f32 %v1396, 1.1920929e-07
      %v1525 = vmul.f32 %v1397, 1.1920929e-07
      %v1526 = vmul.f32 %v1398, 1.1920929e-07
      %v1527 = vmul.f32 %v1399, 1.1920929e-07
      %v1528 = vmul.f32 %v1400, 1.1920929e-07
      %v1529 = vmul.f32 %v1401, 1.1920929e-07
      %v1530 = vmul.f32 %v1402, 1.1920929e-07
      %v1531 = vmul.f32 %v1403, 1.1920929e-07
      %v1532 = vmul.f32 %v1404, 1.1920929e-07
      %v1533 = vmul.f32 %v1405, 1.1920929e-07
      %v1534 = vmul.f32 %v1406, 1.1920929e-07
      %v1535 = vmul.f32 %v1407, 1.1920929e-07
      %v1536 = vmul.f32 %v1408, 1.1920929e-07
      %v1537 = vmul.f32 %v1409, 1.1920929e-07
      %v1538 = vmul.f32 %v1410, 1.1920929e-07
      %v1539 = vmul.f32 %v1411, 1.1920929e-07
      %v1540 = vmul.f32 %v1412, 1.1920929e-07
      %v1541 = vmul.f32 %v1413, 1.1920929e-07
      %v1542 = vmul.f32 %v1414, 1.1920929e-07
      %v1543 = vmul.f32 %v1415, 1.1920929e-07
      %v1544 = vmul.f32 %v1416, 1.1920929e-07
      %v1545 = vmul.f32 %v1417, 1.1920929e-07
      %v1546 = vmul.f32 %v1418, 1.1920929e-07
      %v1547 = vmul.f32 %v1419, 1.1920929e-07
      %v1548 = vmul.f32 %v1420, 1.1920929e-07
      %v1549 = vmul.f32 %v1421, 1.1920929e-07
      %v1550 = vmul.f32 %v1422, 1.1920929e-07
      %v1551 = vmul.f32 %v1423, 1.1920929e-07
      %v1552 = vmul.f32 %v1424, 1.1920929e-07
      %v1553 = vmul.f32 %v1425, 1.1920929e-07
      %v1554 = vadd.f32 %v354, %v1426
      %v1555 = vadd.f32 %v355, %v1427
      %v1556 = vadd.f32 %v356, %v1428
      %v1557 = vadd.f32 %v357, %v1429
      %v1558 = vadd.f32 %v358, %v1430
      %v1559 = vadd.f32 %v359, %v1431
      %v1560 = vadd.f32 %v360, %v1432
      %v1561 = vadd.f32 %v361, %v1433
      %v1562 = vadd.f32 %v362, %v1434
      %v1563 = vadd.f32 %v363, %v1435
      %v1564 = vadd.f32 %v364, %v1436
      %v1565 = vadd.f32 %v365, %v1437
      %v1566 = vadd.f32 %v366, %v1438
      %v1567 = vadd.f32 %v367, %v1439
      %v1568 = vadd.f32 %v368, %v1440
      %v1569 = vadd.f32 %v369, %v1441
      %v1570 = vadd.f32 %v370, %v1442
      %v1571 = vadd.f32 %v371, %v1443
      %v1572 = vadd.f32 %v372, %v1444
      %v1573 = vadd.f32 %v373, %v1445
      %v1574 = vadd.f32 %v374, %v1446
      %v1575 = vadd.f32 %v375, %v1447
      %v1576 = vadd.f32 %v376, %v1448
      %v1577 = vadd.f32 %v377, %v1449
      %v1578 = vadd.f32 %v378, %v1450
      %v1579 = vadd.f32 %v379, %v1451
      %v1580 = vadd.f32 %v380, %v1452
      %v1581 = vadd.f32 %v381, %v1453
      %v1582 = vadd.f32 %v382, %v1454
      %v1583 = vadd.f32 %v383, %v1455
      %v1584 = vadd.f32 %v384, %v1456
      %v1585 = vadd.f32 %v385, %v1457
      %v1586 = vadd.f32 %v386, %v1458
      %v1587 = vadd.f32 %v387, %v1459
      %v1588 = vadd.f32 %v388, %v1460
      %v1589 = vadd.f32 %v389, %v1461
      %v1590 = vadd.f32 %v390, %v1462
      %v1591 = vadd.f32 %v391, %v1463
      %v1592 = vadd.f32 %v392, %v1464
      %v1593 = vadd.f32 %v393, %v1465
      %v1594 = vadd.f32 %v394, %v1466
      %v1595 = vadd.f32 %v395, %v1467
      %v1596 = vadd.f32 %v396, %v1468
      %v1597 = vadd.f32 %v397, %v1469
      %v1598 = vadd.f32 %v398, %v1470
      %v1599 = vadd.f32 %v399, %v1471
      %v1600 = vadd.f32 %v400, %v1472
      %v1601 = vadd.f32 %v401, %v1473
      %v1602 = vadd.f32 %v402, %v1474
      %v1603 = vadd.f32 %v403, %v1475
      %v1604 = vadd.f32 %v404, %v1476
      %v1605 = vadd.f32 %v405, %v1477
      %v1606 = vadd.f32 %v406, %v1478
      %v1607 = vadd.f32 %v407, %v1479
      %v1608 = vadd.f32 %v408, %v1480
      %v1609 = vadd.f32 %v409, %v1481
      %v1610 = vadd.f32 %v410, %v1482
      %v1611 = vadd.f32 %v411, %v1483
      %v1612 = vadd.f32 %v412, %v1484
      %v1613 = vadd.f32 %v413, %v1485
      %v1614 = vadd.f32 %v414, %v1486
      %v1615 = vadd.f32 %v415, %v1487
      %v1616 = vadd.f32 %v416, %v1488
      %v1617 = vadd.f32 %v417, %v1489
      %v1618 = vadd.f32 %v418, %v1490
      %v1619 = vadd.f32 %v419, %v1491
      %v1620 = vadd.f32 %v420, %v1492
      %v1621 = vadd.f32 %v421, %v1493
      %v1622 = vadd.f32 %v422, %v1494
      %v1623 = vadd.f32 %v423, %v1495
      %v1624 = vadd.f32 %v424, %v1496
      %v1625 = vadd.f32 %v425, %v1497
      %v1626 = vadd.f32 %v426, %v1498
      %v1627 = vadd.f32 %v427, %v1499
      %v1628 = vadd.f32 %v428, %v1500
      %v1629 = vadd.f32 %v429, %v1501
      %v1630 = vadd.f32 %v430, %v1502
      %v1631 = vadd.f32 %v431, %v1503
      %v1632 = vadd.f32 %v432, %v1504
      %v1633 = vadd.f32 %v433, %v1505
      %v1634 = vadd.f32 %v434, %v1506
      %v1635 = vadd.f32 %v435, %v1507
      %v1636 = vadd.f32 %v436, %v1508
      %v1637 = vadd.f32 %v437, %v1509
      %v1638 = vadd.f32 %v438, %v1510
      %v1639 = vadd.f32 %v439, %v1511
      %v1640 = vadd.f32 %v440, %v1512
      %v1641 = vadd.f32 %v441, %v1513
      %v1642 = vadd.f32 %v442, %v1514
      %v1643 = vadd.f32 %v443, %v1515
      %v1644 = vadd.f32 %v444, %v1516
      %v1645 = vadd.f32 %v445, %v1517
      %v1646 = vadd.f32 %v446, %v1518
      %v1647 = vadd.f32 %v447, %v1519
      %v1648 = vadd.f32 %v448, %v1520
      %v1649 = vadd.f32 %v449, %v1521
      %v1650 = vadd.f32 %v450, %v1522
      %v1651 = vadd.f32 %v451, %v1523
      %v1652 = vadd.f32 %v452, %v1524
      %v1653 = vadd.f32 %v453, %v1525
      %v1654 = vadd.f32 %v454, %v1526
      %v1655 = vadd.f32 %v455, %v1527
      %v1656 = vadd.f32 %v456, %v1528
      %v1657 = vadd.f32 %v457, %v1529
      %v1658 = vadd.f32 %v458, %v1530
      %v1659 = vadd.f32 %v459, %v1531
      %v1660 = vadd.f32 %v460, %v1532
      %v1661 = vadd.f32 %v461, %v1533
      %v1662 = vadd.f32 %v462, %v1534
      %v1663 = vadd.f32 %v463, %v1535
      %v1664 = vadd.f32 %v464, %v1536
      %v1665 = vadd.f32 %v465, %v1537
      %v1666 = vadd.f32 %v466, %v1538
      %v1667 = vadd.f32 %v467, %v1539
      %v1668 = vadd.f32 %v468, %v1540
      %v1669 = vadd.f32 %v469, %v1541
      %v1670 = vadd.f32 %v470, %v1542
      %v1671 = vadd.f32 %v471, %v1543
      %v1672 = vadd.f32 %v472, %v1544
      %v1673 = vadd.f32 %v473, %v1545
      %v1674 = vadd.f32 %v474, %v1546
      %v1675 = vadd.f32 %v475, %v1547
      %v1676 = vadd.f32 %v476, %v1548
      %v1677 = vadd.f32 %v477, %v1549
      %v1678 = vadd.f32 %v478, %v1550
      %v1679 = vadd.f32 %v479, %v1551
      %v1680 = vadd.f32 %v480, %v1552
      %v1681 = vadd.f32 %v481, %v1553
      %v1682 = vlog2.pop %v1554
      %v1683 = vmul.f32 %v1682, 0.6931472
      %v1684 = vlog2.pop %v1555
      %v1685 = vmul.f32 %v1684, 0.6931472
      %v1686 = vlog2.pop %v1556
      %v1687 = vmul.f32 %v1686, 0.6931472
      %v1688 = vlog2.pop %v1557
      %v1689 = vmul.f32 %v1688, 0.6931472
      %v1690 = vlog2.pop %v1558
      %v1691 = vmul.f32 %v1690, 0.6931472
      %v1692 = vlog2.pop %v1559
      %v1693 = vmul.f32 %v1692, 0.6931472
      %v1694 = vlog2.pop %v1560
      %v1695 = vmul.f32 %v1694, 0.6931472
      %v1696 = vlog2.pop %v1561
      %v1697 = vmul.f32 %v1696, 0.6931472
      %v1698 = vlog2.pop %v1562
      %v1699 = vmul.f32 %v1698, 0.6931472
      %v1700 = vlog2.pop %v1563
      %v1701 = vmul.f32 %v1700, 0.6931472
      %v1702 = vlog2.pop %v1564
      %v1703 = vmul.f32 %v1702, 0.6931472
      %v1704 = vlog2.pop %v1565
      %v1705 = vmul.f32 %v1704, 0.6931472
      %v1706 = vlog2.pop %v1566
      %v1707 = vmul.f32 %v1706, 0.6931472
      %v1708 = vlog2.pop %v1567
      %v1709 = vmul.f32 %v1708, 0.6931472
      %v1710 = vlog2.pop %v1568
      %v1711 = vmul.f32 %v1710, 0.6931472
      %v1712 = vlog2.pop %v1569
      %v1713 = vmul.f32 %v1712, 0.6931472
      %v1714 = vlog2.pop %v1570
      %v1715 = vmul.f32 %v1714, 0.6931472
      %v1716 = vlog2.pop %v1571
      %v1717 = vmul.f32 %v1716, 0.6931472
      %v1718 = vlog2.pop %v1572
      %v1719 = vmul.f32 %v1718, 0.6931472
      %v1720 = vlog2.pop %v1573
      %v1721 = vmul.f32 %v1720, 0.6931472
      %v1722 = vlog2.pop %v1574
      %v1723 = vmul.f32 %v1722, 0.6931472
      %v1724 = vlog2.pop %v1575
      %v1725 = vmul.f32 %v1724, 0.6931472
      %v1726 = vlog2.pop %v1576
      %v1727 = vmul.f32 %v1726, 0.6931472
      %v1728 = vlog2.pop %v1577
      %v1729 = vmul.f32 %v1728, 0.6931472
      %v1730 = vlog2.pop %v1578
      %v1731 = vmul.f32 %v1730, 0.6931472
      %v1732 = vlog2.pop %v1579
      %v1733 = vmul.f32 %v1732, 0.6931472
      %v1734 = vlog2.pop %v1580
      %v1735 = vmul.f32 %v1734, 0.6931472
      %v1736 = vlog2.pop %v1581
      %v1737 = vmul.f32 %v1736, 0.6931472
      %v1738 = vlog2.pop %v1582
      %v1739 = vmul.f32 %v1738, 0.6931472
      %v1740 = vlog2.pop %v1583
      %v1741 = vmul.f32 %v1740, 0.6931472
      %v1742 = vlog2.pop %v1584
      %v1743 = vmul.f32 %v1742, 0.6931472
      %v1744 = vlog2.pop %v1585
      %v1745 = vmul.f32 %v1744, 0.6931472
      %v1746 = vlog2.pop %v1586
      %v1747 = vmul.f32 %v1746, 0.6931472
      %v1748 = vlog2.pop %v1587
      %v1749 = vmul.f32 %v1748, 0.6931472
      %v1750 = vlog2.pop %v1588
      %v1751 = vmul.f32 %v1750, 0.6931472
      %v1752 = vlog2.pop %v1589
      %v1753 = vmul.f32 %v1752, 0.6931472
      %v1754 = vlog2.pop %v1590
      %v1755 = vmul.f32 %v1754, 0.6931472
      %v1756 = vlog2.pop %v1591
      %v1757 = vmul.f32 %v1756, 0.6931472
      %v1758 = vlog2.pop %v1592
      %v1759 = vmul.f32 %v1758, 0.6931472
      %v1760 = vlog2.pop %v1593
      %v1761 = vmul.f32 %v1760, 0.6931472
      %v1762 = vlog2.pop %v1594
      %v1763 = vmul.f32 %v1762, 0.6931472
      %v1764 = vlog2.pop %v1595
      %v1765 = vmul.f32 %v1764, 0.6931472
      %v1766 = vlog2.pop %v1596
      %v1767 = vmul.f32 %v1766, 0.6931472
      %v1768 = vlog2.pop %v1597
      %v1769 = vmul.f32 %v1768, 0.6931472
      %v1770 = vlog2.pop %v1598
      %v1771 = vmul.f32 %v1770, 0.6931472
      %v1772 = vlog2.pop %v1599
      %v1773 = vmul.f32 %v1772, 0.6931472
      %v1774 = vlog2.pop %v1600
      %v1775 = vmul.f32 %v1774, 0.6931472
      %v1776 = vlog2.pop %v1601
      %v1777 = vmul.f32 %v1776, 0.6931472
      %v1778 = vlog2.pop %v1602
      %v1779 = vmul.f32 %v1778, 0.6931472
      %v1780 = vlog2.pop %v1603
      %v1781 = vmul.f32 %v1780, 0.6931472
      %v1782 = vlog2.pop %v1604
      %v1783 = vmul.f32 %v1782, 0.6931472
      %v1784 = vlog2.pop %v1605
      %v1785 = vmul.f32 %v1784, 0.6931472
      %v1786 = vlog2.pop %v1606
      %v1787 = vmul.f32 %v1786, 0.6931472
      %v1788 = vlog2.pop %v1607
      %v1789 = vmul.f32 %v1788, 0.6931472
      %v1790 = vlog2.pop %v1608
      %v1791 = vmul.f32 %v1790, 0.6931472
      %v1792 = vlog2.pop %v1609
      %v1793 = vmul.f32 %v1792, 0.6931472
      %v1794 = vlog2.pop %v1610
      %v1795 = vmul.f32 %v1794, 0.6931472
      %v1796 = vlog2.pop %v1611
      %v1797 = vmul.f32 %v1796, 0.6931472
      %v1798 = vlog2.pop %v1612
      %v1799 = vmul.f32 %v1798, 0.6931472
      %v1800 = vlog2.pop %v1613
      %v1801 = vmul.f32 %v1800, 0.6931472
      %v1802 = vlog2.pop %v1614
      %v1803 = vmul.f32 %v1802, 0.6931472
      %v1804 = vlog2.pop %v1615
      %v1805 = vmul.f32 %v1804, 0.6931472
      %v1806 = vlog2.pop %v1616
      %v1807 = vmul.f32 %v1806, 0.6931472
      %v1808 = vlog2.pop %v1617
      %v1809 = vmul.f32 %v1808, 0.6931472
      %v1810 = vlog2.pop %v1618
      %v1811 = vmul.f32 %v1810, 0.6931472
      %v1812 = vlog2.pop %v1619
      %v1813 = vmul.f32 %v1812, 0.6931472
      %v1814 = vlog2.pop %v1620
      %v1815 = vmul.f32 %v1814, 0.6931472
      %v1816 = vlog2.pop %v1621
      %v1817 = vmul.f32 %v1816, 0.6931472
      %v1818 = vlog2.pop %v1622
      %v1819 = vmul.f32 %v1818, 0.6931472
      %v1820 = vlog2.pop %v1623
      %v1821 = vmul.f32 %v1820, 0.6931472
      %v1822 = vlog2.pop %v1624
      %v1823 = vmul.f32 %v1822, 0.6931472
      %v1824 = vlog2.pop %v1625
      %v1825 = vmul.f32 %v1824, 0.6931472
      %v1826 = vlog2.pop %v1626
      %v1827 = vmul.f32 %v1826, 0.6931472
      %v1828 = vlog2.pop %v1627
      %v1829 = vmul.f32 %v1828, 0.6931472
      %v1830 = vlog2.pop %v1628
      %v1831 = vmul.f32 %v1830, 0.6931472
      %v1832 = vlog2.pop %v1629
      %v1833 = vmul.f32 %v1832, 0.6931472
      %v1834 = vlog2.pop %v1630
      %v1835 = vmul.f32 %v1834, 0.6931472
      %v1836 = vlog2.pop %v1631
      %v1837 = vmul.f32 %v1836, 0.6931472
      %v1838 = vlog2.pop %v1632
      %v1839 = vmul.f32 %v1838, 0.6931472
      %v1840 = vlog2.pop %v1633
      %v1841 = vmul.f32 %v1840, 0.6931472
      %v1842 = vlog2.pop %v1634
      %v1843 = vmul.f32 %v1842, 0.6931472
      %v1844 = vlog2.pop %v1635
      %v1845 = vmul.f32 %v1844, 0.6931472
      %v1846 = vlog2.pop %v1636
      %v1847 = vmul.f32 %v1846, 0.6931472
      %v1848 = vlog2.pop %v1637
      %v1849 = vmul.f32 %v1848, 0.6931472
      %v1850 = vlog2.pop %v1638
      %v1851 = vmul.f32 %v1850, 0.6931472
      %v1852 = vlog2.pop %v1639
      %v1853 = vmul.f32 %v1852, 0.6931472
      %v1854 = vlog2.pop %v1640
      %v1855 = vmul.f32 %v1854, 0.6931472
      %v1856 = vlog2.pop %v1641
      %v1857 = vmul.f32 %v1856, 0.6931472
      %v1858 = vlog2.pop %v1642
      %v1859 = vmul.f32 %v1858, 0.6931472
      %v1860 = vlog2.pop %v1643
      %v1861 = vmul.f32 %v1860, 0.6931472
      %v1862 = vlog2.pop %v1644
      %v1863 = vmul.f32 %v1862, 0.6931472
      %v1864 = vlog2.pop %v1645
      %v1865 = vmul.f32 %v1864, 0.6931472
      %v1866 = vlog2.pop %v1646
      %v1867 = vmul.f32 %v1866, 0.6931472
      %v1868 = vlog2.pop %v1647
      %v1869 = vmul.f32 %v1868, 0.6931472
      %v1870 = vlog2.pop %v1648
      %v1871 = vmul.f32 %v1870, 0.6931472
      %v1872 = vlog2.pop %v1649
      %v1873 = vmul.f32 %v1872, 0.6931472
      %v1874 = vlog2.pop %v1650
      %v1875 = vmul.f32 %v1874, 0.6931472
      %v1876 = vlog2.pop %v1651
      %v1877 = vmul.f32 %v1876, 0.6931472
      %v1878 = vlog2.pop %v1652
      %v1879 = vmul.f32 %v1878, 0.6931472
      %v1880 = vlog2.pop %v1653
      %v1881 = vmul.f32 %v1880, 0.6931472
      %v1882 = vlog2.pop %v1654
      %v1883 = vmul.f32 %v1882, 0.6931472
      %v1884 = vlog2.pop %v1655
      %v1885 = vmul.f32 %v1884, 0.6931472
      %v1886 = vlog2.pop %v1656
      %v1887 = vmul.f32 %v1886, 0.6931472
      %v1888 = vlog2.pop %v1657
      %v1889 = vmul.f32 %v1888, 0.6931472
      %v1890 = vlog2.pop %v1658
      %v1891 = vmul.f32 %v1890, 0.6931472
      %v1892 = vlog2.pop %v1659
      %v1893 = vmul.f32 %v1892, 0.6931472
      %v1894 = vlog2.pop %v1660
      %v1895 = vmul.f32 %v1894, 0.6931472
      %v1896 = vlog2.pop %v1661
      %v1897 = vmul.f32 %v1896, 0.6931472
      %v1898 = vlog2.pop %v1662
      %v1899 = vmul.f32 %v1898, 0.6931472
      %v1900 = vlog2.pop %v1663
      %v1901 = vmul.f32 %v1900, 0.6931472
      %v1902 = vlog2.pop %v1664
      %v1903 = vmul.f32 %v1902, 0.6931472
      %v1904 = vlog2.pop %v1665
      %v1905 = vmul.f32 %v1904, 0.6931472
      %v1906 = vlog2.pop %v1666
      %v1907 = vmul.f32 %v1906, 0.6931472
      %v1908 = vlog2.pop %v1667
      %v1909 = vmul.f32 %v1908, 0.6931472
      %v1910 = vlog2.pop %v1668
      %v1911 = vmul.f32 %v1910, 0.6931472
      %v1912 = vlog2.pop %v1669
      %v1913 = vmul.f32 %v1912, 0.6931472
      %v1914 = vlog2.pop %v1670
      %v1915 = vmul.f32 %v1914, 0.6931472
      %v1916 = vlog2.pop %v1671
      %v1917 = vmul.f32 %v1916, 0.6931472
      %v1918 = vlog2.pop %v1672
      %v1919 = vmul.f32 %v1918, 0.6931472
      %v1920 = vlog2.pop %v1673
      %v1921 = vmul.f32 %v1920, 0.6931472
      %v1922 = vlog2.pop %v1674
      %v1923 = vmul.f32 %v1922, 0.6931472
      %v1924 = vlog2.pop %v1675
      %v1925 = vmul.f32 %v1924, 0.6931472
      %v1926 = vlog2.pop %v1676
      %v1927 = vmul.f32 %v1926, 0.6931472
      %v1928 = vlog2.pop %v1677
      %v1929 = vmul.f32 %v1928, 0.6931472
      %v1930 = vlog2.pop %v1678
      %v1931 = vmul.f32 %v1930, 0.6931472
      %v1932 = vlog2.pop %v1679
      %v1933 = vmul.f32 %v1932, 0.6931472
      %v1934 = vlog2.pop %v1680
      %v1935 = vmul.f32 %v1934, 0.6931472
      %v1936 = vlog2.pop %v1681
      %v1937 = vmul.f32 %v1936, 0.6931472
      %v1938 = vlog2.pop %v1298
      %v1939 = vmul.f32 %v1938, 0.6931472
      %v1940 = vlog2.pop %v1299
      %v1941 = vmul.f32 %v1940, 0.6931472
      %v1942 = vlog2.pop %v1300
      %v1943 = vmul.f32 %v1942, 0.6931472
      %v1944 = vlog2.pop %v1301
      %v1945 = vmul.f32 %v1944, 0.6931472
      %v1946 = vlog2.pop %v1302
      %v1947 = vmul.f32 %v1946, 0.6931472
      %v1948 = vlog2.pop %v1303
      %v1949 = vmul.f32 %v1948, 0.6931472
      %v1950 = vlog2.pop %v1304
      %v1951 = vmul.f32 %v1950, 0.6931472
      %v1952 = vlog2.pop %v1305
      %v1953 = vmul.f32 %v1952, 0.6931472
      %v1954 = vlog2.pop %v1306
      %v1955 = vmul.f32 %v1954, 0.6931472
      %v1956 = vlog2.pop %v1307
      %v1957 = vmul.f32 %v1956, 0.6931472
      %v1958 = vlog2.pop %v1308
      %v1959 = vmul.f32 %v1958, 0.6931472
      %v1960 = vlog2.pop %v1309
      %v1961 = vmul.f32 %v1960, 0.6931472
      %v1962 = vlog2.pop %v1310
      %v1963 = vmul.f32 %v1962, 0.6931472
      %v1964 = vlog2.pop %v1311
      %v1965 = vmul.f32 %v1964, 0.6931472
      %v1966 = vlog2.pop %v1312
      %v1967 = vmul.f32 %v1966, 0.6931472
      %v1968 = vlog2.pop %v1313
      %v1969 = vmul.f32 %v1968, 0.6931472
      %v1970 = vlog2.pop %v1314
      %v1971 = vmul.f32 %v1970, 0.6931472
      %v1972 = vlog2.pop %v1315
      %v1973 = vmul.f32 %v1972, 0.6931472
      %v1974 = vlog2.pop %v1316
      %v1975 = vmul.f32 %v1974, 0.6931472
      %v1976 = vlog2.pop %v1317
      %v1977 = vmul.f32 %v1976, 0.6931472
      %v1978 = vlog2.pop %v1318
      %v1979 = vmul.f32 %v1978, 0.6931472
      %v1980 = vlog2.pop %v1319
      %v1981 = vmul.f32 %v1980, 0.6931472
      %v1982 = vlog2.pop %v1320
      %v1983 = vmul.f32 %v1982, 0.6931472
      %v1984 = vlog2.pop %v1321
      %v1985 = vmul.f32 %v1984, 0.6931472
      %v1986 = vlog2.pop %v1322
      %v1987 = vmul.f32 %v1986, 0.6931472
      %v1988 = vlog2.pop %v1323
      %v1989 = vmul.f32 %v1988, 0.6931472
      %v1990 = vlog2.pop %v1324
      %v1991 = vmul.f32 %v1990, 0.6931472
      %v1992 = vlog2.pop %v1325
      %v1993 = vmul.f32 %v1992, 0.6931472
      %v1994 = vlog2.pop %v1326
      %v1995 = vmul.f32 %v1994, 0.6931472
      %v1996 = vlog2.pop %v1327
      %v1997 = vmul.f32 %v1996, 0.6931472
      %v1998 = vlog2.pop %v1328
      %v1999 = vmul.f32 %v1998, 0.6931472
      %v2000 = vlog2.pop %v1329
      %v2001 = vmul.f32 %v2000, 0.6931472
      %v2002 = vlog2.pop %v1330
      %v2003 = vmul.f32 %v2002, 0.6931472
      %v2004 = vlog2.pop %v1331
      %v2005 = vmul.f32 %v2004, 0.6931472
      %v2006 = vlog2.pop %v1332
      %v2007 = vmul.f32 %v2006, 0.6931472
      %v2008 = vlog2.pop %v1333
      %v2009 = vmul.f32 %v2008, 0.6931472
      %v2010 = vlog2.pop %v1334
      %v2011 = vmul.f32 %v2010, 0.6931472
      %v2012 = vlog2.pop %v1335
      %v2013 = vmul.f32 %v2012, 0.6931472
      %v2014 = vlog2.pop %v1336
      %v2015 = vmul.f32 %v2014, 0.6931472
      %v2016 = vlog2.pop %v1337
      %v2017 = vmul.f32 %v2016, 0.6931472
      %v2018 = vlog2.pop %v1338
      %v2019 = vmul.f32 %v2018, 0.6931472
      %v2020 = vlog2.pop %v1339
      %v2021 = vmul.f32 %v2020, 0.6931472
      %v2022 = vlog2.pop %v1340
      %v2023 = vmul.f32 %v2022, 0.6931472
      %v2024 = vlog2.pop %v1341
      %v2025 = vmul.f32 %v2024, 0.6931472
      %v2026 = vlog2.pop %v1342
      %v2027 = vmul.f32 %v2026, 0.6931472
      %v2028 = vlog2.pop %v1343
      %v2029 = vmul.f32 %v2028, 0.6931472
      %v2030 = vlog2.pop %v1344
      %v2031 = vmul.f32 %v2030, 0.6931472
      %v2032 = vlog2.pop %v1345
      %v2033 = vmul.f32 %v2032, 0.6931472
      %v2034 = vlog2.pop %v1346
      %v2035 = vmul.f32 %v2034, 0.6931472
      %v2036 = vlog2.pop %v1347
      %v2037 = vmul.f32 %v2036, 0.6931472
      %v2038 = vlog2.pop %v1348
      %v2039 = vmul.f32 %v2038, 0.6931472
      %v2040 = vlog2.pop %v1349
      %v2041 = vmul.f32 %v2040, 0.6931472
      %v2042 = vlog2.pop %v1350
      %v2043 = vmul.f32 %v2042, 0.6931472
      %v2044 = vlog2.pop %v1351
      %v2045 = vmul.f32 %v2044, 0.6931472
      %v2046 = vlog2.pop %v1352
      %v2047 = vmul.f32 %v2046, 0.6931472
      %v2048 = vlog2.pop %v1353
      %v2049 = vmul.f32 %v2048, 0.6931472
      %v2050 = vlog2.pop %v1354
      %v2051 = vmul.f32 %v2050, 0.6931472
      %v2052 = vlog2.pop %v1355
      %v2053 = vmul.f32 %v2052, 0.6931472
      %v2054 = vlog2.pop %v1356
      %v2055 = vmul.f32 %v2054, 0.6931472
      %v2056 = vlog2.pop %v1357
      %v2057 = vmul.f32 %v2056, 0.6931472
      %v2058 = vlog2.pop %v1358
      %v2059 = vmul.f32 %v2058, 0.6931472
      %v2060 = vlog2.pop %v1359
      %v2061 = vmul.f32 %v2060, 0.6931472
      %v2062 = vlog2.pop %v1360
      %v2063 = vmul.f32 %v2062, 0.6931472
      %v2064 = vlog2.pop %v1361
      %v2065 = vmul.f32 %v2064, 0.6931472
      %v2066 = vlog2.pop %v1362
      %v2067 = vmul.f32 %v2066, 0.6931472
      %v2068 = vlog2.pop %v1363
      %v2069 = vmul.f32 %v2068, 0.6931472
      %v2070 = vlog2.pop %v1364
      %v2071 = vmul.f32 %v2070, 0.6931472
      %v2072 = vlog2.pop %v1365
      %v2073 = vmul.f32 %v2072, 0.6931472
      %v2074 = vlog2.pop %v1366
      %v2075 = vmul.f32 %v2074, 0.6931472
      %v2076 = vlog2.pop %v1367
      %v2077 = vmul.f32 %v2076, 0.6931472
      %v2078 = vlog2.pop %v1368
      %v2079 = vmul.f32 %v2078, 0.6931472
      %v2080 = vlog2.pop %v1369
      %v2081 = vmul.f32 %v2080, 0.6931472
      %v2082 = vlog2.pop %v1370
      %v2083 = vmul.f32 %v2082, 0.6931472
      %v2084 = vlog2.pop %v1371
      %v2085 = vmul.f32 %v2084, 0.6931472
      %v2086 = vlog2.pop %v1372
      %v2087 = vmul.f32 %v2086, 0.6931472
      %v2088 = vlog2.pop %v1373
      %v2089 = vmul.f32 %v2088, 0.6931472
      %v2090 = vlog2.pop %v1374
      %v2091 = vmul.f32 %v2090, 0.6931472
      %v2092 = vlog2.pop %v1375
      %v2093 = vmul.f32 %v2092, 0.6931472
      %v2094 = vlog2.pop %v1376
      %v2095 = vmul.f32 %v2094, 0.6931472
      %v2096 = vlog2.pop %v1377
      %v2097 = vmul.f32 %v2096, 0.6931472
      %v2098 = vlog2.pop %v1378
      %v2099 = vmul.f32 %v2098, 0.6931472
      %v2100 = vlog2.pop %v1379
      %v2101 = vmul.f32 %v2100, 0.6931472
      %v2102 = vlog2.pop %v1380
      %v2103 = vmul.f32 %v2102, 0.6931472
      %v2104 = vlog2.pop %v1381
      %v2105 = vmul.f32 %v2104, 0.6931472
      %v2106 = vlog2.pop %v1382
      %v2107 = vmul.f32 %v2106, 0.6931472
      %v2108 = vlog2.pop %v1383
      %v2109 = vmul.f32 %v2108, 0.6931472
      %v2110 = vlog2.pop %v1384
      %v2111 = vmul.f32 %v2110, 0.6931472
      %v2112 = vlog2.pop %v1385
      %v2113 = vmul.f32 %v2112, 0.6931472
      %v2114 = vlog2.pop %v1386
      %v2115 = vmul.f32 %v2114, 0.6931472
      %v2116 = vlog2.pop %v1387
      %v2117 = vmul.f32 %v2116, 0.6931472
      %v2118 = vlog2.pop %v1388
      %v2119 = vmul.f32 %v2118, 0.6931472
      %v2120 = vlog2.pop %v1389
      %v2121 = vmul.f32 %v2120, 0.6931472
      %v2122 = vlog2.pop %v1390
      %v2123 = vmul.f32 %v2122, 0.6931472
      %v2124 = vlog2.pop %v1391
      %v2125 = vmul.f32 %v2124, 0.6931472
      %v2126 = vlog2.pop %v1392
      %v2127 = vmul.f32 %v2126, 0.6931472
      %v2128 = vlog2.pop %v1393
      %v2129 = vmul.f32 %v2128, 0.6931472
      %v2130 = vlog2.pop %v1394
      %v2131 = vmul.f32 %v2130, 0.6931472
      %v2132 = vlog2.pop %v1395
      %v2133 = vmul.f32 %v2132, 0.6931472
      %v2134 = vlog2.pop %v1396
      %v2135 = vmul.f32 %v2134, 0.6931472
      %v2136 = vlog2.pop %v1397
      %v2137 = vmul.f32 %v2136, 0.6931472
      %v2138 = vlog2.pop %v1398
      %v2139 = vmul.f32 %v2138, 0.6931472
      %v2140 = vlog2.pop %v1399
      %v2141 = vmul.f32 %v2140, 0.6931472
      %v2142 = vlog2.pop %v1400
      %v2143 = vmul.f32 %v2142, 0.6931472
      %v2144 = vlog2.pop %v1401
      %v2145 = vmul.f32 %v2144, 0.6931472
      %v2146 = vlog2.pop %v1402
      %v2147 = vmul.f32 %v2146, 0.6931472
      %v2148 = vlog2.pop %v1403
      %v2149 = vmul.f32 %v2148, 0.6931472
      %v2150 = vlog2.pop %v1404
      %v2151 = vmul.f32 %v2150, 0.6931472
      %v2152 = vlog2.pop %v1405
      %v2153 = vmul.f32 %v2152, 0.6931472
      %v2154 = vlog2.pop %v1406
      %v2155 = vmul.f32 %v2154, 0.6931472
      %v2156 = vlog2.pop %v1407
      %v2157 = vmul.f32 %v2156, 0.6931472
      %v2158 = vlog2.pop %v1408
      %v2159 = vmul.f32 %v2158, 0.6931472
      %v2160 = vlog2.pop %v1409
      %v2161 = vmul.f32 %v2160, 0.6931472
      %v2162 = vlog2.pop %v1410
      %v2163 = vmul.f32 %v2162, 0.6931472
      %v2164 = vlog2.pop %v1411
      %v2165 = vmul.f32 %v2164, 0.6931472
      %v2166 = vlog2.pop %v1412
      %v2167 = vmul.f32 %v2166, 0.6931472
      %v2168 = vlog2.pop %v1413
      %v2169 = vmul.f32 %v2168, 0.6931472
      %v2170 = vlog2.pop %v1414
      %v2171 = vmul.f32 %v2170, 0.6931472
      %v2172 = vlog2.pop %v1415
      %v2173 = vmul.f32 %v2172, 0.6931472
      %v2174 = vlog2.pop %v1416
      %v2175 = vmul.f32 %v2174, 0.6931472
      %v2176 = vlog2.pop %v1417
      %v2177 = vmul.f32 %v2176, 0.6931472
      %v2178 = vlog2.pop %v1418
      %v2179 = vmul.f32 %v2178, 0.6931472
      %v2180 = vlog2.pop %v1419
      %v2181 = vmul.f32 %v2180, 0.6931472
      %v2182 = vlog2.pop %v1420
      %v2183 = vmul.f32 %v2182, 0.6931472
      %v2184 = vlog2.pop %v1421
      %v2185 = vmul.f32 %v2184, 0.6931472
      %v2186 = vlog2.pop %v1422
      %v2187 = vmul.f32 %v2186, 0.6931472
      %v2188 = vlog2.pop %v1423
      %v2189 = vmul.f32 %v2188, 0.6931472
      %v2190 = vlog2.pop %v1424
      %v2191 = vmul.f32 %v2190, 0.6931472
      %v2192 = vlog2.pop %v1425
      %v2193 = vmul.f32 %v2192, 0.6931472
      %v2194 = vsub.f32 %v1683, %v1939
      %v2195 = vsub.f32 %v1685, %v1941
      %v2196 = vsub.f32 %v1687, %v1943
      %v2197 = vsub.f32 %v1689, %v1945
      %v2198 = vsub.f32 %v1691, %v1947
      %v2199 = vsub.f32 %v1693, %v1949
      %v2200 = vsub.f32 %v1695, %v1951
      %v2201 = vsub.f32 %v1697, %v1953
      %v2202 = vsub.f32 %v1699, %v1955
      %v2203 = vsub.f32 %v1701, %v1957
      %v2204 = vsub.f32 %v1703, %v1959
      %v2205 = vsub.f32 %v1705, %v1961
      %v2206 = vsub.f32 %v1707, %v1963
      %v2207 = vsub.f32 %v1709, %v1965
      %v2208 = vsub.f32 %v1711, %v1967
      %v2209 = vsub.f32 %v1713, %v1969
      %v2210 = vsub.f32 %v1715, %v1971
      %v2211 = vsub.f32 %v1717, %v1973
      %v2212 = vsub.f32 %v1719, %v1975
      %v2213 = vsub.f32 %v1721, %v1977
      %v2214 = vsub.f32 %v1723, %v1979
      %v2215 = vsub.f32 %v1725, %v1981
      %v2216 = vsub.f32 %v1727, %v1983
      %v2217 = vsub.f32 %v1729, %v1985
      %v2218 = vsub.f32 %v1731, %v1987
      %v2219 = vsub.f32 %v1733, %v1989
      %v2220 = vsub.f32 %v1735, %v1991
      %v2221 = vsub.f32 %v1737, %v1993
      %v2222 = vsub.f32 %v1739, %v1995
      %v2223 = vsub.f32 %v1741, %v1997
      %v2224 = vsub.f32 %v1743, %v1999
      %v2225 = vsub.f32 %v1745, %v2001
      %v2226 = vsub.f32 %v1747, %v2003
      %v2227 = vsub.f32 %v1749, %v2005
      %v2228 = vsub.f32 %v1751, %v2007
      %v2229 = vsub.f32 %v1753, %v2009
      %v2230 = vsub.f32 %v1755, %v2011
      %v2231 = vsub.f32 %v1757, %v2013
      %v2232 = vsub.f32 %v1759, %v2015
      %v2233 = vsub.f32 %v1761, %v2017
      %v2234 = vsub.f32 %v1763, %v2019
      %v2235 = vsub.f32 %v1765, %v2021
      %v2236 = vsub.f32 %v1767, %v2023
      %v2237 = vsub.f32 %v1769, %v2025
      %v2238 = vsub.f32 %v1771, %v2027
      %v2239 = vsub.f32 %v1773, %v2029
      %v2240 = vsub.f32 %v1775, %v2031
      %v2241 = vsub.f32 %v1777, %v2033
      %v2242 = vsub.f32 %v1779, %v2035
      %v2243 = vsub.f32 %v1781, %v2037
      %v2244 = vsub.f32 %v1783, %v2039
      %v2245 = vsub.f32 %v1785, %v2041
      %v2246 = vsub.f32 %v1787, %v2043
      %v2247 = vsub.f32 %v1789, %v2045
      %v2248 = vsub.f32 %v1791, %v2047
      %v2249 = vsub.f32 %v1793, %v2049
      %v2250 = vsub.f32 %v1795, %v2051
      %v2251 = vsub.f32 %v1797, %v2053
      %v2252 = vsub.f32 %v1799, %v2055
      %v2253 = vsub.f32 %v1801, %v2057
      %v2254 = vsub.f32 %v1803, %v2059
      %v2255 = vsub.f32 %v1805, %v2061
      %v2256 = vsub.f32 %v1807, %v2063
      %v2257 = vsub.f32 %v1809, %v2065
      %v2258 = vsub.f32 %v1811, %v2067
      %v2259 = vsub.f32 %v1813, %v2069
      %v2260 = vsub.f32 %v1815, %v2071
      %v2261 = vsub.f32 %v1817, %v2073
      %v2262 = vsub.f32 %v1819, %v2075
      %v2263 = vsub.f32 %v1821, %v2077
      %v2264 = vsub.f32 %v1823, %v2079
      %v2265 = vsub.f32 %v1825, %v2081
      %v2266 = vsub.f32 %v1827, %v2083
      %v2267 = vsub.f32 %v1829, %v2085
      %v2268 = vsub.f32 %v1831, %v2087
      %v2269 = vsub.f32 %v1833, %v2089
      %v2270 = vsub.f32 %v1835, %v2091
      %v2271 = vsub.f32 %v1837, %v2093
      %v2272 = vsub.f32 %v1839, %v2095
      %v2273 = vsub.f32 %v1841, %v2097
      %v2274 = vsub.f32 %v1843, %v2099
      %v2275 = vsub.f32 %v1845, %v2101
      %v2276 = vsub.f32 %v1847, %v2103
      %v2277 = vsub.f32 %v1849, %v2105
      %v2278 = vsub.f32 %v1851, %v2107
      %v2279 = vsub.f32 %v1853, %v2109
      %v2280 = vsub.f32 %v1855, %v2111
      %v2281 = vsub.f32 %v1857, %v2113
      %v2282 = vsub.f32 %v1859, %v2115
      %v2283 = vsub.f32 %v1861, %v2117
      %v2284 = vsub.f32 %v1863, %v2119
      %v2285 = vsub.f32 %v1865, %v2121
      %v2286 = vsub.f32 %v1867, %v2123
      %v2287 = vsub.f32 %v1869, %v2125
      %v2288 = vsub.f32 %v1871, %v2127
      %v2289 = vsub.f32 %v1873, %v2129
      %v2290 = vsub.f32 %v1875, %v2131
      %v2291 = vsub.f32 %v1877, %v2133
      %v2292 = vsub.f32 %v1879, %v2135
      %v2293 = vsub.f32 %v1881, %v2137
      %v2294 = vsub.f32 %v1883, %v2139
      %v2295 = vsub.f32 %v1885, %v2141
      %v2296 = vsub.f32 %v1887, %v2143
      %v2297 = vsub.f32 %v1889, %v2145
      %v2298 = vsub.f32 %v1891, %v2147
      %v2299 = vsub.f32 %v1893, %v2149
      %v2300 = vsub.f32 %v1895, %v2151
      %v2301 = vsub.f32 %v1897, %v2153
      %v2302 = vsub.f32 %v1899, %v2155
      %v2303 = vsub.f32 %v1901, %v2157
      %v2304 = vsub.f32 %v1903, %v2159
      %v2305 = vsub.f32 %v1905, %v2161
      %v2306 = vsub.f32 %v1907, %v2163
      %v2307 = vsub.f32 %v1909, %v2165
      %v2308 = vsub.f32 %v1911, %v2167
      %v2309 = vsub.f32 %v1913, %v2169
      %v2310 = vsub.f32 %v1915, %v2171
      %v2311 = vsub.f32 %v1917, %v2173
      %v2312 = vsub.f32 %v1919, %v2175
      %v2313 = vsub.f32 %v1921, %v2177
      %v2314 = vsub.f32 %v1923, %v2179
      %v2315 = vsub.f32 %v1925, %v2181
      %v2316 = vsub.f32 %v1927, %v2183
      %v2317 = vsub.f32 %v1929, %v2185
      %v2318 = vsub.f32 %v1931, %v2187
      %v2319 = vsub.f32 %v1933, %v2189
      %v2320 = vsub.f32 %v1935, %v2191
      %v2321 = vsub.f32 %v1937, %v2193
      %v2322 = vmul.f32 %v354, %v2194
      %v2323 = vmul.f32 %v355, %v2195
      %v2324 = vmul.f32 %v356, %v2196
      %v2325 = vmul.f32 %v357, %v2197
      %v2326 = vmul.f32 %v358, %v2198
      %v2327 = vmul.f32 %v359, %v2199
      %v2328 = vmul.f32 %v360, %v2200
      %v2329 = vmul.f32 %v361, %v2201
      %v2330 = vmul.f32 %v362, %v2202
      %v2331 = vmul.f32 %v363, %v2203
      %v2332 = vmul.f32 %v364, %v2204
      %v2333 = vmul.f32 %v365, %v2205
      %v2334 = vmul.f32 %v366, %v2206
      %v2335 = vmul.f32 %v367, %v2207
      %v2336 = vmul.f32 %v368, %v2208
      %v2337 = vmul.f32 %v369, %v2209
      %v2338 = vmul.f32 %v370, %v2210
      %v2339 = vmul.f32 %v371, %v2211
      %v2340 = vmul.f32 %v372, %v2212
      %v2341 = vmul.f32 %v373, %v2213
      %v2342 = vmul.f32 %v374, %v2214
      %v2343 = vmul.f32 %v375, %v2215
      %v2344 = vmul.f32 %v376, %v2216
      %v2345 = vmul.f32 %v377, %v2217
      %v2346 = vmul.f32 %v378, %v2218
      %v2347 = vmul.f32 %v379, %v2219
      %v2348 = vmul.f32 %v380, %v2220
      %v2349 = vmul.f32 %v381, %v2221
      %v2350 = vmul.f32 %v382, %v2222
      %v2351 = vmul.f32 %v383, %v2223
      %v2352 = vmul.f32 %v384, %v2224
      %v2353 = vmul.f32 %v385, %v2225
      %v2354 = vmul.f32 %v386, %v2226
      %v2355 = vmul.f32 %v387, %v2227
      %v2356 = vmul.f32 %v388, %v2228
      %v2357 = vmul.f32 %v389, %v2229
      %v2358 = vmul.f32 %v390, %v2230
      %v2359 = vmul.f32 %v391, %v2231
      %v2360 = vmul.f32 %v392, %v2232
      %v2361 = vmul.f32 %v393, %v2233
      %v2362 = vmul.f32 %v394, %v2234
      %v2363 = vmul.f32 %v395, %v2235
      %v2364 = vmul.f32 %v396, %v2236
      %v2365 = vmul.f32 %v397, %v2237
      %v2366 = vmul.f32 %v398, %v2238
      %v2367 = vmul.f32 %v399, %v2239
      %v2368 = vmul.f32 %v400, %v2240
      %v2369 = vmul.f32 %v401, %v2241
      %v2370 = vmul.f32 %v402, %v2242
      %v2371 = vmul.f32 %v403, %v2243
      %v2372 = vmul.f32 %v404, %v2244
      %v2373 = vmul.f32 %v405, %v2245
      %v2374 = vmul.f32 %v406, %v2246
      %v2375 = vmul.f32 %v407, %v2247
      %v2376 = vmul.f32 %v408, %v2248
      %v2377 = vmul.f32 %v409, %v2249
      %v2378 = vmul.f32 %v410, %v2250
      %v2379 = vmul.f32 %v411, %v2251
      %v2380 = vmul.f32 %v412, %v2252
      %v2381 = vmul.f32 %v413, %v2253
      %v2382 = vmul.f32 %v414, %v2254
      %v2383 = vmul.f32 %v415, %v2255
      %v2384 = vmul.f32 %v416, %v2256
      %v2385 = vmul.f32 %v417, %v2257
      %v2386 = vmul.f32 %v418, %v2258
      %v2387 = vmul.f32 %v419, %v2259
      %v2388 = vmul.f32 %v420, %v2260
      %v2389 = vmul.f32 %v421, %v2261
      %v2390 = vmul.f32 %v422, %v2262
      %v2391 = vmul.f32 %v423, %v2263
      %v2392 = vmul.f32 %v424, %v2264
      %v2393 = vmul.f32 %v425, %v2265
      %v2394 = vmul.f32 %v426, %v2266
      %v2395 = vmul.f32 %v427, %v2267
      %v2396 = vmul.f32 %v428, %v2268
      %v2397 = vmul.f32 %v429, %v2269
      %v2398 = vmul.f32 %v430, %v2270
      %v2399 = vmul.f32 %v431, %v2271
      %v2400 = vmul.f32 %v432, %v2272
      %v2401 = vmul.f32 %v433, %v2273
      %v2402 = vmul.f32 %v434, %v2274
      %v2403 = vmul.f32 %v435, %v2275
      %v2404 = vmul.f32 %v436, %v2276
      %v2405 = vmul.f32 %v437, %v2277
      %v2406 = vmul.f32 %v438, %v2278
      %v2407 = vmul.f32 %v439, %v2279
      %v2408 = vmul.f32 %v440, %v2280
      %v2409 = vmul.f32 %v441, %v2281
      %v2410 = vmul.f32 %v442, %v2282
      %v2411 = vmul.f32 %v443, %v2283
      %v2412 = vmul.f32 %v444, %v2284
      %v2413 = vmul.f32 %v445, %v2285
      %v2414 = vmul.f32 %v446, %v2286
      %v2415 = vmul.f32 %v447, %v2287
      %v2416 = vmul.f32 %v448, %v2288
      %v2417 = vmul.f32 %v449, %v2289
      %v2418 = vmul.f32 %v450, %v2290
      %v2419 = vmul.f32 %v451, %v2291
      %v2420 = vmul.f32 %v452, %v2292
      %v2421 = vmul.f32 %v453, %v2293
      %v2422 = vmul.f32 %v454, %v2294
      %v2423 = vmul.f32 %v455, %v2295
      %v2424 = vmul.f32 %v456, %v2296
      %v2425 = vmul.f32 %v457, %v2297
      %v2426 = vmul.f32 %v458, %v2298
      %v2427 = vmul.f32 %v459, %v2299
      %v2428 = vmul.f32 %v460, %v2300
      %v2429 = vmul.f32 %v461, %v2301
      %v2430 = vmul.f32 %v462, %v2302
      %v2431 = vmul.f32 %v463, %v2303
      %v2432 = vmul.f32 %v464, %v2304
      %v2433 = vmul.f32 %v465, %v2305
      %v2434 = vmul.f32 %v466, %v2306
      %v2435 = vmul.f32 %v467, %v2307
      %v2436 = vmul.f32 %v468, %v2308
      %v2437 = vmul.f32 %v469, %v2309
      %v2438 = vmul.f32 %v470, %v2310
      %v2439 = vmul.f32 %v471, %v2311
      %v2440 = vmul.f32 %v472, %v2312
      %v2441 = vmul.f32 %v473, %v2313
      %v2442 = vmul.f32 %v474, %v2314
      %v2443 = vmul.f32 %v475, %v2315
      %v2444 = vmul.f32 %v476, %v2316
      %v2445 = vmul.f32 %v477, %v2317
      %v2446 = vmul.f32 %v478, %v2318
      %v2447 = vmul.f32 %v479, %v2319
      %v2448 = vmul.f32 %v480, %v2320
      %v2449 = vmul.f32 %v481, %v2321
      %v2450 = vadd.f32 %v354, 1.1920929e-07
      %v2451 = vadd.f32 %v355, 1.1920929e-07
      %v2452 = vadd.f32 %v356, 1.1920929e-07
      %v2453 = vadd.f32 %v357, 1.1920929e-07
      %v2454 = vadd.f32 %v358, 1.1920929e-07
      %v2455 = vadd.f32 %v359, 1.1920929e-07
      %v2456 = vadd.f32 %v360, 1.1920929e-07
      %v2457 = vadd.f32 %v361, 1.1920929e-07
      %v2458 = vadd.f32 %v362, 1.1920929e-07
      %v2459 = vadd.f32 %v363, 1.1920929e-07
      %v2460 = vadd.f32 %v364, 1.1920929e-07
      %v2461 = vadd.f32 %v365, 1.1920929e-07
      %v2462 = vadd.f32 %v366, 1.1920929e-07
      %v2463 = vadd.f32 %v367, 1.1920929e-07
      %v2464 = vadd.f32 %v368, 1.1920929e-07
      %v2465 = vadd.f32 %v369, 1.1920929e-07
      %v2466 = vadd.f32 %v370, 1.1920929e-07
      %v2467 = vadd.f32 %v371, 1.1920929e-07
      %v2468 = vadd.f32 %v372, 1.1920929e-07
      %v2469 = vadd.f32 %v373, 1.1920929e-07
      %v2470 = vadd.f32 %v374, 1.1920929e-07
      %v2471 = vadd.f32 %v375, 1.1920929e-07
      %v2472 = vadd.f32 %v376, 1.1920929e-07
      %v2473 = vadd.f32 %v377, 1.1920929e-07
      %v2474 = vadd.f32 %v378, 1.1920929e-07
      %v2475 = vadd.f32 %v379, 1.1920929e-07
      %v2476 = vadd.f32 %v380, 1.1920929e-07
      %v2477 = vadd.f32 %v381, 1.1920929e-07
      %v2478 = vadd.f32 %v382, 1.1920929e-07
      %v2479 = vadd.f32 %v383, 1.1920929e-07
      %v2480 = vadd.f32 %v384, 1.1920929e-07
      %v2481 = vadd.f32 %v385, 1.1920929e-07
      %v2482 = vadd.f32 %v386, 1.1920929e-07
      %v2483 = vadd.f32 %v387, 1.1920929e-07
      %v2484 = vadd.f32 %v388, 1.1920929e-07
      %v2485 = vadd.f32 %v389, 1.1920929e-07
      %v2486 = vadd.f32 %v390, 1.1920929e-07
      %v2487 = vadd.f32 %v391, 1.1920929e-07
      %v2488 = vadd.f32 %v392, 1.1920929e-07
      %v2489 = vadd.f32 %v393, 1.1920929e-07
      %v2490 = vadd.f32 %v394, 1.1920929e-07
      %v2491 = vadd.f32 %v395, 1.1920929e-07
      %v2492 = vadd.f32 %v396, 1.1920929e-07
      %v2493 = vadd.f32 %v397, 1.1920929e-07
      %v2494 = vadd.f32 %v398, 1.1920929e-07
      %v2495 = vadd.f32 %v399, 1.1920929e-07
      %v2496 = vadd.f32 %v400, 1.1920929e-07
      %v2497 = vadd.f32 %v401, 1.1920929e-07
      %v2498 = vadd.f32 %v402, 1.1920929e-07
      %v2499 = vadd.f32 %v403, 1.1920929e-07
      %v2500 = vadd.f32 %v404, 1.1920929e-07
      %v2501 = vadd.f32 %v405, 1.1920929e-07
      %v2502 = vadd.f32 %v406, 1.1920929e-07
      %v2503 = vadd.f32 %v407, 1.1920929e-07
      %v2504 = vadd.f32 %v408, 1.1920929e-07
      %v2505 = vadd.f32 %v409, 1.1920929e-07
      %v2506 = vadd.f32 %v410, 1.1920929e-07
      %v2507 = vadd.f32 %v411, 1.1920929e-07
      %v2508 = vadd.f32 %v412, 1.1920929e-07
      %v2509 = vadd.f32 %v413, 1.1920929e-07
      %v2510 = vadd.f32 %v414, 1.1920929e-07
      %v2511 = vadd.f32 %v415, 1.1920929e-07
      %v2512 = vadd.f32 %v416, 1.1920929e-07
      %v2513 = vadd.f32 %v417, 1.1920929e-07
      %v2514 = vadd.f32 %v418, 1.1920929e-07
      %v2515 = vadd.f32 %v419, 1.1920929e-07
      %v2516 = vadd.f32 %v420, 1.1920929e-07
      %v2517 = vadd.f32 %v421, 1.1920929e-07
      %v2518 = vadd.f32 %v422, 1.1920929e-07
      %v2519 = vadd.f32 %v423, 1.1920929e-07
      %v2520 = vadd.f32 %v424, 1.1920929e-07
      %v2521 = vadd.f32 %v425, 1.1920929e-07
      %v2522 = vadd.f32 %v426, 1.1920929e-07
      %v2523 = vadd.f32 %v427, 1.1920929e-07
      %v2524 = vadd.f32 %v428, 1.1920929e-07
      %v2525 = vadd.f32 %v429, 1.1920929e-07
      %v2526 = vadd.f32 %v430, 1.1920929e-07
      %v2527 = vadd.f32 %v431, 1.1920929e-07
      %v2528 = vadd.f32 %v432, 1.1920929e-07
      %v2529 = vadd.f32 %v433, 1.1920929e-07
      %v2530 = vadd.f32 %v434, 1.1920929e-07
      %v2531 = vadd.f32 %v435, 1.1920929e-07
      %v2532 = vadd.f32 %v436, 1.1920929e-07
      %v2533 = vadd.f32 %v437, 1.1920929e-07
      %v2534 = vadd.f32 %v438, 1.1920929e-07
      %v2535 = vadd.f32 %v439, 1.1920929e-07
      %v2536 = vadd.f32 %v440, 1.1920929e-07
      %v2537 = vadd.f32 %v441, 1.1920929e-07
      %v2538 = vadd.f32 %v442, 1.1920929e-07
      %v2539 = vadd.f32 %v443, 1.1920929e-07
      %v2540 = vadd.f32 %v444, 1.1920929e-07
      %v2541 = vadd.f32 %v445, 1.1920929e-07
      %v2542 = vadd.f32 %v446, 1.1920929e-07
      %v2543 = vadd.f32 %v447, 1.1920929e-07
      %v2544 = vadd.f32 %v448, 1.1920929e-07
      %v2545 = vadd.f32 %v449, 1.1920929e-07
      %v2546 = vadd.f32 %v450, 1.1920929e-07
      %v2547 = vadd.f32 %v451, 1.1920929e-07
      %v2548 = vadd.f32 %v452, 1.1920929e-07
      %v2549 = vadd.f32 %v453, 1.1920929e-07
      %v2550 = vadd.f32 %v454, 1.1920929e-07
      %v2551 = vadd.f32 %v455, 1.1920929e-07
      %v2552 = vadd.f32 %v456, 1.1920929e-07
      %v2553 = vadd.f32 %v457, 1.1920929e-07
      %v2554 = vadd.f32 %v458, 1.1920929e-07
      %v2555 = vadd.f32 %v459, 1.1920929e-07
      %v2556 = vadd.f32 %v460, 1.1920929e-07
      %v2557 = vadd.f32 %v461, 1.1920929e-07
      %v2558 = vadd.f32 %v462, 1.1920929e-07
      %v2559 = vadd.f32 %v463, 1.1920929e-07
      %v2560 = vadd.f32 %v464, 1.1920929e-07
      %v2561 = vadd.f32 %v465, 1.1920929e-07
      %v2562 = vadd.f32 %v466, 1.1920929e-07
      %v2563 = vadd.f32 %v467, 1.1920929e-07
      %v2564 = vadd.f32 %v468, 1.1920929e-07
      %v2565 = vadd.f32 %v469, 1.1920929e-07
      %v2566 = vadd.f32 %v470, 1.1920929e-07
      %v2567 = vadd.f32 %v471, 1.1920929e-07
      %v2568 = vadd.f32 %v472, 1.1920929e-07
      %v2569 = vadd.f32 %v473, 1.1920929e-07
      %v2570 = vadd.f32 %v474, 1.1920929e-07
      %v2571 = vadd.f32 %v475, 1.1920929e-07
      %v2572 = vadd.f32 %v476, 1.1920929e-07
      %v2573 = vadd.f32 %v477, 1.1920929e-07
      %v2574 = vadd.f32 %v478, 1.1920929e-07
      %v2575 = vadd.f32 %v479, 1.1920929e-07
      %v2576 = vadd.f32 %v480, 1.1920929e-07
      %v2577 = vadd.f32 %v481, 1.1920929e-07
      %v2578 = vlog2.pop %v2450
      %v2579 = vmul.f32 %v2578, 0.6931472
      %v2580 = vlog2.pop %v2451
      %v2581 = vmul.f32 %v2580, 0.6931472
      %v2582 = vlog2.pop %v2452
      %v2583 = vmul.f32 %v2582, 0.6931472
      %v2584 = vlog2.pop %v2453
      %v2585 = vmul.f32 %v2584, 0.6931472
      %v2586 = vlog2.pop %v2454
      %v2587 = vmul.f32 %v2586, 0.6931472
      %v2588 = vlog2.pop %v2455
      %v2589 = vmul.f32 %v2588, 0.6931472
      %v2590 = vlog2.pop %v2456
      %v2591 = vmul.f32 %v2590, 0.6931472
      %v2592 = vlog2.pop %v2457
      %v2593 = vmul.f32 %v2592, 0.6931472
      %v2594 = vlog2.pop %v2458
      %v2595 = vmul.f32 %v2594, 0.6931472
      %v2596 = vlog2.pop %v2459
      %v2597 = vmul.f32 %v2596, 0.6931472
      %v2598 = vlog2.pop %v2460
      %v2599 = vmul.f32 %v2598, 0.6931472
      %v2600 = vlog2.pop %v2461
      %v2601 = vmul.f32 %v2600, 0.6931472
      %v2602 = vlog2.pop %v2462
      %v2603 = vmul.f32 %v2602, 0.6931472
      %v2604 = vlog2.pop %v2463
      %v2605 = vmul.f32 %v2604, 0.6931472
      %v2606 = vlog2.pop %v2464
      %v2607 = vmul.f32 %v2606, 0.6931472
      %v2608 = vlog2.pop %v2465
      %v2609 = vmul.f32 %v2608, 0.6931472
      %v2610 = vlog2.pop %v2466
      %v2611 = vmul.f32 %v2610, 0.6931472
      %v2612 = vlog2.pop %v2467
      %v2613 = vmul.f32 %v2612, 0.6931472
      %v2614 = vlog2.pop %v2468
      %v2615 = vmul.f32 %v2614, 0.6931472
      %v2616 = vlog2.pop %v2469
      %v2617 = vmul.f32 %v2616, 0.6931472
      %v2618 = vlog2.pop %v2470
      %v2619 = vmul.f32 %v2618, 0.6931472
      %v2620 = vlog2.pop %v2471
      %v2621 = vmul.f32 %v2620, 0.6931472
      %v2622 = vlog2.pop %v2472
      %v2623 = vmul.f32 %v2622, 0.6931472
      %v2624 = vlog2.pop %v2473
      %v2625 = vmul.f32 %v2624, 0.6931472
      %v2626 = vlog2.pop %v2474
      %v2627 = vmul.f32 %v2626, 0.6931472
      %v2628 = vlog2.pop %v2475
      %v2629 = vmul.f32 %v2628, 0.6931472
      %v2630 = vlog2.pop %v2476
      %v2631 = vmul.f32 %v2630, 0.6931472
      %v2632 = vlog2.pop %v2477
      %v2633 = vmul.f32 %v2632, 0.6931472
      %v2634 = vlog2.pop %v2478
      %v2635 = vmul.f32 %v2634, 0.6931472
      %v2636 = vlog2.pop %v2479
      %v2637 = vmul.f32 %v2636, 0.6931472
      %v2638 = vlog2.pop %v2480
      %v2639 = vmul.f32 %v2638, 0.6931472
      %v2640 = vlog2.pop %v2481
      %v2641 = vmul.f32 %v2640, 0.6931472
      %v2642 = vlog2.pop %v2482
      %v2643 = vmul.f32 %v2642, 0.6931472
      %v2644 = vlog2.pop %v2483
      %v2645 = vmul.f32 %v2644, 0.6931472
      %v2646 = vlog2.pop %v2484
      %v2647 = vmul.f32 %v2646, 0.6931472
      %v2648 = vlog2.pop %v2485
      %v2649 = vmul.f32 %v2648, 0.6931472
      %v2650 = vlog2.pop %v2486
      %v2651 = vmul.f32 %v2650, 0.6931472
      %v2652 = vlog2.pop %v2487
      %v2653 = vmul.f32 %v2652, 0.6931472
      %v2654 = vlog2.pop %v2488
      %v2655 = vmul.f32 %v2654, 0.6931472
      %v2656 = vlog2.pop %v2489
      %v2657 = vmul.f32 %v2656, 0.6931472
      %v2658 = vlog2.pop %v2490
      %v2659 = vmul.f32 %v2658, 0.6931472
      %v2660 = vlog2.pop %v2491
      %v2661 = vmul.f32 %v2660, 0.6931472
      %v2662 = vlog2.pop %v2492
      %v2663 = vmul.f32 %v2662, 0.6931472
      %v2664 = vlog2.pop %v2493
      %v2665 = vmul.f32 %v2664, 0.6931472
      %v2666 = vlog2.pop %v2494
      %v2667 = vmul.f32 %v2666, 0.6931472
      %v2668 = vlog2.pop %v2495
      %v2669 = vmul.f32 %v2668, 0.6931472
      %v2670 = vlog2.pop %v2496
      %v2671 = vmul.f32 %v2670, 0.6931472
      %v2672 = vlog2.pop %v2497
      %v2673 = vmul.f32 %v2672, 0.6931472
      %v2674 = vlog2.pop %v2498
      %v2675 = vmul.f32 %v2674, 0.6931472
      %v2676 = vlog2.pop %v2499
      %v2677 = vmul.f32 %v2676, 0.6931472
      %v2678 = vlog2.pop %v2500
      %v2679 = vmul.f32 %v2678, 0.6931472
      %v2680 = vlog2.pop %v2501
      %v2681 = vmul.f32 %v2680, 0.6931472
      %v2682 = vlog2.pop %v2502
      %v2683 = vmul.f32 %v2682, 0.6931472
      %v2684 = vlog2.pop %v2503
      %v2685 = vmul.f32 %v2684, 0.6931472
      %v2686 = vlog2.pop %v2504
      %v2687 = vmul.f32 %v2686, 0.6931472
      %v2688 = vlog2.pop %v2505
      %v2689 = vmul.f32 %v2688, 0.6931472
      %v2690 = vlog2.pop %v2506
      %v2691 = vmul.f32 %v2690, 0.6931472
      %v2692 = vlog2.pop %v2507
      %v2693 = vmul.f32 %v2692, 0.6931472
      %v2694 = vlog2.pop %v2508
      %v2695 = vmul.f32 %v2694, 0.6931472
      %v2696 = vlog2.pop %v2509
      %v2697 = vmul.f32 %v2696, 0.6931472
      %v2698 = vlog2.pop %v2510
      %v2699 = vmul.f32 %v2698, 0.6931472
      %v2700 = vlog2.pop %v2511
      %v2701 = vmul.f32 %v2700, 0.6931472
      %v2702 = vlog2.pop %v2512
      %v2703 = vmul.f32 %v2702, 0.6931472
      %v2704 = vlog2.pop %v2513
      %v2705 = vmul.f32 %v2704, 0.6931472
      %v2706 = vlog2.pop %v2514
      %v2707 = vmul.f32 %v2706, 0.6931472
      %v2708 = vlog2.pop %v2515
      %v2709 = vmul.f32 %v2708, 0.6931472
      %v2710 = vlog2.pop %v2516
      %v2711 = vmul.f32 %v2710, 0.6931472
      %v2712 = vlog2.pop %v2517
      %v2713 = vmul.f32 %v2712, 0.6931472
      %v2714 = vlog2.pop %v2518
      %v2715 = vmul.f32 %v2714, 0.6931472
      %v2716 = vlog2.pop %v2519
      %v2717 = vmul.f32 %v2716, 0.6931472
      %v2718 = vlog2.pop %v2520
      %v2719 = vmul.f32 %v2718, 0.6931472
      %v2720 = vlog2.pop %v2521
      %v2721 = vmul.f32 %v2720, 0.6931472
      %v2722 = vlog2.pop %v2522
      %v2723 = vmul.f32 %v2722, 0.6931472
      %v2724 = vlog2.pop %v2523
      %v2725 = vmul.f32 %v2724, 0.6931472
      %v2726 = vlog2.pop %v2524
      %v2727 = vmul.f32 %v2726, 0.6931472
      %v2728 = vlog2.pop %v2525
      %v2729 = vmul.f32 %v2728, 0.6931472
      %v2730 = vlog2.pop %v2526
      %v2731 = vmul.f32 %v2730, 0.6931472
      %v2732 = vlog2.pop %v2527
      %v2733 = vmul.f32 %v2732, 0.6931472
      %v2734 = vlog2.pop %v2528
      %v2735 = vmul.f32 %v2734, 0.6931472
      %v2736 = vlog2.pop %v2529
      %v2737 = vmul.f32 %v2736, 0.6931472
      %v2738 = vlog2.pop %v2530
      %v2739 = vmul.f32 %v2738, 0.6931472
      %v2740 = vlog2.pop %v2531
      %v2741 = vmul.f32 %v2740, 0.6931472
      %v2742 = vlog2.pop %v2532
      %v2743 = vmul.f32 %v2742, 0.6931472
      %v2744 = vlog2.pop %v2533
      %v2745 = vmul.f32 %v2744, 0.6931472
      %v2746 = vlog2.pop %v2534
      %v2747 = vmul.f32 %v2746, 0.6931472
      %v2748 = vlog2.pop %v2535
      %v2749 = vmul.f32 %v2748, 0.6931472
      %v2750 = vlog2.pop %v2536
      %v2751 = vmul.f32 %v2750, 0.6931472
      %v2752 = vlog2.pop %v2537
      %v2753 = vmul.f32 %v2752, 0.6931472
      %v2754 = vlog2.pop %v2538
      %v2755 = vmul.f32 %v2754, 0.6931472
      %v2756 = vlog2.pop %v2539
      %v2757 = vmul.f32 %v2756, 0.6931472
      %v2758 = vlog2.pop %v2540
      %v2759 = vmul.f32 %v2758, 0.6931472
      %v2760 = vlog2.pop %v2541
      %v2761 = vmul.f32 %v2760, 0.6931472
      %v2762 = vlog2.pop %v2542
      %v2763 = vmul.f32 %v2762, 0.6931472
      %v2764 = vlog2.pop %v2543
      %v2765 = vmul.f32 %v2764, 0.6931472
      %v2766 = vlog2.pop %v2544
      %v2767 = vmul.f32 %v2766, 0.6931472
      %v2768 = vlog2.pop %v2545
      %v2769 = vmul.f32 %v2768, 0.6931472
      %v2770 = vlog2.pop %v2546
      %v2771 = vmul.f32 %v2770, 0.6931472
      %v2772 = vlog2.pop %v2547
      %v2773 = vmul.f32 %v2772, 0.6931472
      %v2774 = vlog2.pop %v2548
      %v2775 = vmul.f32 %v2774, 0.6931472
      %v2776 = vlog2.pop %v2549
      %v2777 = vmul.f32 %v2776, 0.6931472
      %v2778 = vlog2.pop %v2550
      %v2779 = vmul.f32 %v2778, 0.6931472
      %v2780 = vlog2.pop %v2551
      %v2781 = vmul.f32 %v2780, 0.6931472
      %v2782 = vlog2.pop %v2552
      %v2783 = vmul.f32 %v2782, 0.6931472
      %v2784 = vlog2.pop %v2553
      %v2785 = vmul.f32 %v2784, 0.6931472
      %v2786 = vlog2.pop %v2554
      %v2787 = vmul.f32 %v2786, 0.6931472
      %v2788 = vlog2.pop %v2555
      %v2789 = vmul.f32 %v2788, 0.6931472
      %v2790 = vlog2.pop %v2556
      %v2791 = vmul.f32 %v2790, 0.6931472
      %v2792 = vlog2.pop %v2557
      %v2793 = vmul.f32 %v2792, 0.6931472
      %v2794 = vlog2.pop %v2558
      %v2795 = vmul.f32 %v2794, 0.6931472
      %v2796 = vlog2.pop %v2559
      %v2797 = vmul.f32 %v2796, 0.6931472
      %v2798 = vlog2.pop %v2560
      %v2799 = vmul.f32 %v2798, 0.6931472
      %v2800 = vlog2.pop %v2561
      %v2801 = vmul.f32 %v2800, 0.6931472
      %v2802 = vlog2.pop %v2562
      %v2803 = vmul.f32 %v2802, 0.6931472
      %v2804 = vlog2.pop %v2563
      %v2805 = vmul.f32 %v2804, 0.6931472
      %v2806 = vlog2.pop %v2564
      %v2807 = vmul.f32 %v2806, 0.6931472
      %v2808 = vlog2.pop %v2565
      %v2809 = vmul.f32 %v2808, 0.6931472
      %v2810 = vlog2.pop %v2566
      %v2811 = vmul.f32 %v2810, 0.6931472
      %v2812 = vlog2.pop %v2567
      %v2813 = vmul.f32 %v2812, 0.6931472
      %v2814 = vlog2.pop %v2568
      %v2815 = vmul.f32 %v2814, 0.6931472
      %v2816 = vlog2.pop %v2569
      %v2817 = vmul.f32 %v2816, 0.6931472
      %v2818 = vlog2.pop %v2570
      %v2819 = vmul.f32 %v2818, 0.6931472
      %v2820 = vlog2.pop %v2571
      %v2821 = vmul.f32 %v2820, 0.6931472
      %v2822 = vlog2.pop %v2572
      %v2823 = vmul.f32 %v2822, 0.6931472
      %v2824 = vlog2.pop %v2573
      %v2825 = vmul.f32 %v2824, 0.6931472
      %v2826 = vlog2.pop %v2574
      %v2827 = vmul.f32 %v2826, 0.6931472
      %v2828 = vlog2.pop %v2575
      %v2829 = vmul.f32 %v2828, 0.6931472
      %v2830 = vlog2.pop %v2576
      %v2831 = vmul.f32 %v2830, 0.6931472
      %v2832 = vlog2.pop %v2577
      %v2833 = vmul.f32 %v2832, 0.6931472
      %v2834 = vmul.f32 %v354, %v2579
      %v2835 = vmul.f32 %v355, %v2581
      %v2836 = vmul.f32 %v356, %v2583
      %v2837 = vmul.f32 %v357, %v2585
      %v2838 = vmul.f32 %v358, %v2587
      %v2839 = vmul.f32 %v359, %v2589
      %v2840 = vmul.f32 %v360, %v2591
      %v2841 = vmul.f32 %v361, %v2593
      %v2842 = vmul.f32 %v362, %v2595
      %v2843 = vmul.f32 %v363, %v2597
      %v2844 = vmul.f32 %v364, %v2599
      %v2845 = vmul.f32 %v365, %v2601
      %v2846 = vmul.f32 %v366, %v2603
      %v2847 = vmul.f32 %v367, %v2605
      %v2848 = vmul.f32 %v368, %v2607
      %v2849 = vmul.f32 %v369, %v2609
      %v2850 = vmul.f32 %v370, %v2611
      %v2851 = vmul.f32 %v371, %v2613
      %v2852 = vmul.f32 %v372, %v2615
      %v2853 = vmul.f32 %v373, %v2617
      %v2854 = vmul.f32 %v374, %v2619
      %v2855 = vmul.f32 %v375, %v2621
      %v2856 = vmul.f32 %v376, %v2623
      %v2857 = vmul.f32 %v377, %v2625
      %v2858 = vmul.f32 %v378, %v2627
      %v2859 = vmul.f32 %v379, %v2629
      %v2860 = vmul.f32 %v380, %v2631
      %v2861 = vmul.f32 %v381, %v2633
      %v2862 = vmul.f32 %v382, %v2635
      %v2863 = vmul.f32 %v383, %v2637
      %v2864 = vmul.f32 %v384, %v2639
      %v2865 = vmul.f32 %v385, %v2641
      %v2866 = vmul.f32 %v386, %v2643
      %v2867 = vmul.f32 %v387, %v2645
      %v2868 = vmul.f32 %v388, %v2647
      %v2869 = vmul.f32 %v389, %v2649
      %v2870 = vmul.f32 %v390, %v2651
      %v2871 = vmul.f32 %v391, %v2653
      %v2872 = vmul.f32 %v392, %v2655
      %v2873 = vmul.f32 %v393, %v2657
      %v2874 = vmul.f32 %v394, %v2659
      %v2875 = vmul.f32 %v395, %v2661
      %v2876 = vmul.f32 %v396, %v2663
      %v2877 = vmul.f32 %v397, %v2665
      %v2878 = vmul.f32 %v398, %v2667
      %v2879 = vmul.f32 %v399, %v2669
      %v2880 = vmul.f32 %v400, %v2671
      %v2881 = vmul.f32 %v401, %v2673
      %v2882 = vmul.f32 %v402, %v2675
      %v2883 = vmul.f32 %v403, %v2677
      %v2884 = vmul.f32 %v404, %v2679
      %v2885 = vmul.f32 %v405, %v2681
      %v2886 = vmul.f32 %v406, %v2683
      %v2887 = vmul.f32 %v407, %v2685
      %v2888 = vmul.f32 %v408, %v2687
      %v2889 = vmul.f32 %v409, %v2689
      %v2890 = vmul.f32 %v410, %v2691
      %v2891 = vmul.f32 %v411, %v2693
      %v2892 = vmul.f32 %v412, %v2695
      %v2893 = vmul.f32 %v413, %v2697
      %v2894 = vmul.f32 %v414, %v2699
      %v2895 = vmul.f32 %v415, %v2701
      %v2896 = vmul.f32 %v416, %v2703
      %v2897 = vmul.f32 %v417, %v2705
      %v2898 = vmul.f32 %v418, %v2707
      %v2899 = vmul.f32 %v419, %v2709
      %v2900 = vmul.f32 %v420, %v2711
      %v2901 = vmul.f32 %v421, %v2713
      %v2902 = vmul.f32 %v422, %v2715
      %v2903 = vmul.f32 %v423, %v2717
      %v2904 = vmul.f32 %v424, %v2719
      %v2905 = vmul.f32 %v425, %v2721
      %v2906 = vmul.f32 %v426, %v2723
      %v2907 = vmul.f32 %v427, %v2725
      %v2908 = vmul.f32 %v428, %v2727
      %v2909 = vmul.f32 %v429, %v2729
      %v2910 = vmul.f32 %v430, %v2731
      %v2911 = vmul.f32 %v431, %v2733
      %v2912 = vmul.f32 %v432, %v2735
      %v2913 = vmul.f32 %v433, %v2737
      %v2914 = vmul.f32 %v434, %v2739
      %v2915 = vmul.f32 %v435, %v2741
      %v2916 = vmul.f32 %v436, %v2743
      %v2917 = vmul.f32 %v437, %v2745
      %v2918 = vmul.f32 %v438, %v2747
      %v2919 = vmul.f32 %v439, %v2749
      %v2920 = vmul.f32 %v440, %v2751
      %v2921 = vmul.f32 %v441, %v2753
      %v2922 = vmul.f32 %v442, %v2755
      %v2923 = vmul.f32 %v443, %v2757
      %v2924 = vmul.f32 %v444, %v2759
      %v2925 = vmul.f32 %v445, %v2761
      %v2926 = vmul.f32 %v446, %v2763
      %v2927 = vmul.f32 %v447, %v2765
      %v2928 = vmul.f32 %v448, %v2767
      %v2929 = vmul.f32 %v449, %v2769
      %v2930 = vmul.f32 %v450, %v2771
      %v2931 = vmul.f32 %v451, %v2773
      %v2932 = vmul.f32 %v452, %v2775
      %v2933 = vmul.f32 %v453, %v2777
      %v2934 = vmul.f32 %v454, %v2779
      %v2935 = vmul.f32 %v455, %v2781
      %v2936 = vmul.f32 %v456, %v2783
      %v2937 = vmul.f32 %v457, %v2785
      %v2938 = vmul.f32 %v458, %v2787
      %v2939 = vmul.f32 %v459, %v2789
      %v2940 = vmul.f32 %v460, %v2791
      %v2941 = vmul.f32 %v461, %v2793
      %v2942 = vmul.f32 %v462, %v2795
      %v2943 = vmul.f32 %v463, %v2797
      %v2944 = vmul.f32 %v464, %v2799
      %v2945 = vmul.f32 %v465, %v2801
      %v2946 = vmul.f32 %v466, %v2803
      %v2947 = vmul.f32 %v467, %v2805
      %v2948 = vmul.f32 %v468, %v2807
      %v2949 = vmul.f32 %v469, %v2809
      %v2950 = vmul.f32 %v470, %v2811
      %v2951 = vmul.f32 %v471, %v2813
      %v2952 = vmul.f32 %v472, %v2815
      %v2953 = vmul.f32 %v473, %v2817
      %v2954 = vmul.f32 %v474, %v2819
      %v2955 = vmul.f32 %v475, %v2821
      %v2956 = vmul.f32 %v476, %v2823
      %v2957 = vmul.f32 %v477, %v2825
      %v2958 = vmul.f32 %v478, %v2827
      %v2959 = vmul.f32 %v479, %v2829
      %v2960 = vmul.f32 %v480, %v2831
      %v2961 = vmul.f32 %v481, %v2833
      %2962 = vadd.xlane.f32.xlu0 %v2322
      %v2963 = vpop.xlane.xlu0 %2962
      %2964 = vadd.xlane.f32.xlu0 %v2323
      %v2965 = vpop.xlane.xlu0 %2964
      %2966 = vadd.xlane.f32.xlu0 %v2324
      %v2967 = vpop.xlane.xlu0 %2966
      %2968 = vadd.xlane.f32.xlu0 %v2325
      %v2969 = vpop.xlane.xlu0 %2968
      %2970 = vadd.xlane.f32.xlu0 %v2326
      %v2971 = vpop.xlane.xlu0 %2970
      %2972 = vadd.xlane.f32.xlu0 %v2327
      %v2973 = vpop.xlane.xlu0 %2972
      %2974 = vadd.xlane.f32.xlu0 %v2328
      %v2975 = vpop.xlane.xlu0 %2974
      %2976 = vadd.xlane.f32.xlu0 %v2329
      %v2977 = vpop.xlane.xlu0 %2976
      %2978 = vadd.xlane.f32.xlu0 %v2330
      %v2979 = vpop.xlane.xlu0 %2978
      %2980 = vadd.xlane.f32.xlu0 %v2331
      %v2981 = vpop.xlane.xlu0 %2980
      %2982 = vadd.xlane.f32.xlu0 %v2332
      %v2983 = vpop.xlane.xlu0 %2982
      %2984 = vadd.xlane.f32.xlu0 %v2333
      %v2985 = vpop.xlane.xlu0 %2984
      %2986 = vadd.xlane.f32.xlu0 %v2334
      %v2987 = vpop.xlane.xlu0 %2986
      %2988 = vadd.xlane.f32.xlu0 %v2335
      %v2989 = vpop.xlane.xlu0 %2988
      %2990 = vadd.xlane.f32.xlu0 %v2336
      %v2991 = vpop.xlane.xlu0 %2990
      %2992 = vadd.xlane.f32.xlu0 %v2337
      %v2993 = vpop.xlane.xlu0 %2992
      %2994 = vadd.xlane.f32.xlu0 %v2338
      %v2995 = vpop.xlane.xlu0 %2994
      %2996 = vadd.xlane.f32.xlu0 %v2339
      %v2997 = vpop.xlane.xlu0 %2996
      %2998 = vadd.xlane.f32.xlu0 %v2340
      %v2999 = vpop.xlane.xlu0 %2998
      %3000 = vadd.xlane.f32.xlu0 %v2341
      %v3001 = vpop.xlane.xlu0 %3000
      %3002 = vadd.xlane.f32.xlu0 %v2342
      %v3003 = vpop.xlane.xlu0 %3002
      %3004 = vadd.xlane.f32.xlu0 %v2343
      %v3005 = vpop.xlane.xlu0 %3004
      %3006 = vadd.xlane.f32.xlu0 %v2344
      %v3007 = vpop.xlane.xlu0 %3006
      %3008 = vadd.xlane.f32.xlu0 %v2345
      %v3009 = vpop.xlane.xlu0 %3008
      %3010 = vadd.xlane.f32.xlu0 %v2346
      %v3011 = vpop.xlane.xlu0 %3010
      %3012 = vadd.xlane.f32.xlu0 %v2347
      %v3013 = vpop.xlane.xlu0 %3012
      %3014 = vadd.xlane.f32.xlu0 %v2348
      %v3015 = vpop.xlane.xlu0 %3014
      %3016 = vadd.xlane.f32.xlu0 %v2349
      %v3017 = vpop.xlane.xlu0 %3016
      %3018 = vadd.xlane.f32.xlu0 %v2350
      %v3019 = vpop.xlane.xlu0 %3018
      %3020 = vadd.xlane.f32.xlu0 %v2351
      %v3021 = vpop.xlane.xlu0 %3020
      %3022 = vadd.xlane.f32.xlu0 %v2352
      %v3023 = vpop.xlane.xlu0 %3022
      %3024 = vadd.xlane.f32.xlu0 %v2353
      %v3025 = vpop.xlane.xlu0 %3024
      %3026 = vadd.xlane.f32.xlu0 %v2354
      %v3027 = vpop.xlane.xlu0 %3026
      %3028 = vadd.xlane.f32.xlu0 %v2355
      %v3029 = vpop.xlane.xlu0 %3028
      %3030 = vadd.xlane.f32.xlu0 %v2356
      %v3031 = vpop.xlane.xlu0 %3030
      %3032 = vadd.xlane.f32.xlu0 %v2357
      %v3033 = vpop.xlane.xlu0 %3032
      %3034 = vadd.xlane.f32.xlu0 %v2358
      %v3035 = vpop.xlane.xlu0 %3034
      %3036 = vadd.xlane.f32.xlu0 %v2359
      %v3037 = vpop.xlane.xlu0 %3036
      %3038 = vadd.xlane.f32.xlu0 %v2360
      %v3039 = vpop.xlane.xlu0 %3038
      %3040 = vadd.xlane.f32.xlu0 %v2361
      %v3041 = vpop.xlane.xlu0 %3040
      %3042 = vadd.xlane.f32.xlu0 %v2362
      %v3043 = vpop.xlane.xlu0 %3042
      %3044 = vadd.xlane.f32.xlu0 %v2363
      %v3045 = vpop.xlane.xlu0 %3044
      %3046 = vadd.xlane.f32.xlu0 %v2364
      %v3047 = vpop.xlane.xlu0 %3046
      %3048 = vadd.xlane.f32.xlu0 %v2365
      %v3049 = vpop.xlane.xlu0 %3048
      %3050 = vadd.xlane.f32.xlu0 %v2366
      %v3051 = vpop.xlane.xlu0 %3050
      %3052 = vadd.xlane.f32.xlu0 %v2367
      %v3053 = vpop.xlane.xlu0 %3052
      %3054 = vadd.xlane.f32.xlu0 %v2368
      %v3055 = vpop.xlane.xlu0 %3054
      %3056 = vadd.xlane.f32.xlu0 %v2369
      %v3057 = vpop.xlane.xlu0 %3056
      %3058 = vadd.xlane.f32.xlu0 %v2370
      %v3059 = vpop.xlane.xlu0 %3058
      %3060 = vadd.xlane.f32.xlu0 %v2371
      %v3061 = vpop.xlane.xlu0 %3060
      %3062 = vadd.xlane.f32.xlu0 %v2372
      %v3063 = vpop.xlane.xlu0 %3062
      %3064 = vadd.xlane.f32.xlu0 %v2373
      %v3065 = vpop.xlane.xlu0 %3064
      %3066 = vadd.xlane.f32.xlu0 %v2374
      %v3067 = vpop.xlane.xlu0 %3066
      %3068 = vadd.xlane.f32.xlu0 %v2375
      %v3069 = vpop.xlane.xlu0 %3068
      %3070 = vadd.xlane.f32.xlu0 %v2376
      %v3071 = vpop.xlane.xlu0 %3070
      %3072 = vadd.xlane.f32.xlu0 %v2377
      %v3073 = vpop.xlane.xlu0 %3072
      %3074 = vadd.xlane.f32.xlu0 %v2378
      %v3075 = vpop.xlane.xlu0 %3074
      %3076 = vadd.xlane.f32.xlu0 %v2379
      %v3077 = vpop.xlane.xlu0 %3076
      %3078 = vadd.xlane.f32.xlu0 %v2380
      %v3079 = vpop.xlane.xlu0 %3078
      %3080 = vadd.xlane.f32.xlu0 %v2381
      %v3081 = vpop.xlane.xlu0 %3080
      %3082 = vadd.xlane.f32.xlu0 %v2382
      %v3083 = vpop.xlane.xlu0 %3082
      %3084 = vadd.xlane.f32.xlu0 %v2383
      %v3085 = vpop.xlane.xlu0 %3084
      %3086 = vadd.xlane.f32.xlu0 %v2384
      %v3087 = vpop.xlane.xlu0 %3086
      %3088 = vadd.xlane.f32.xlu0 %v2385
      %v3089 = vpop.xlane.xlu0 %3088
      %3090 = vadd.xlane.f32.xlu0 %v2386
      %v3091 = vpop.xlane.xlu0 %3090
      %3092 = vadd.xlane.f32.xlu0 %v2387
      %v3093 = vpop.xlane.xlu0 %3092
      %3094 = vadd.xlane.f32.xlu0 %v2388
      %v3095 = vpop.xlane.xlu0 %3094
      %3096 = vadd.xlane.f32.xlu0 %v2389
      %v3097 = vpop.xlane.xlu0 %3096
      %3098 = vadd.xlane.f32.xlu0 %v2390
      %v3099 = vpop.xlane.xlu0 %3098
      %3100 = vadd.xlane.f32.xlu0 %v2391
      %v3101 = vpop.xlane.xlu0 %3100
      %3102 = vadd.xlane.f32.xlu0 %v2392
      %v3103 = vpop.xlane.xlu0 %3102
      %3104 = vadd.xlane.f32.xlu0 %v2393
      %v3105 = vpop.xlane.xlu0 %3104
      %3106 = vadd.xlane.f32.xlu0 %v2394
      %v3107 = vpop.xlane.xlu0 %3106
      %3108 = vadd.xlane.f32.xlu0 %v2395
      %v3109 = vpop.xlane.xlu0 %3108
      %3110 = vadd.xlane.f32.xlu0 %v2396
      %v3111 = vpop.xlane.xlu0 %3110
      %3112 = vadd.xlane.f32.xlu0 %v2397
      %v3113 = vpop.xlane.xlu0 %3112
      %3114 = vadd.xlane.f32.xlu0 %v2398
      %v3115 = vpop.xlane.xlu0 %3114
      %3116 = vadd.xlane.f32.xlu0 %v2399
      %v3117 = vpop.xlane.xlu0 %3116
      %3118 = vadd.xlane.f32.xlu0 %v2400
      %v3119 = vpop.xlane.xlu0 %3118
      %3120 = vadd.xlane.f32.xlu0 %v2401
      %v3121 = vpop.xlane.xlu0 %3120
      %3122 = vadd.xlane.f32.xlu0 %v2402
      %v3123 = vpop.xlane.xlu0 %3122
      %3124 = vadd.xlane.f32.xlu0 %v2403
      %v3125 = vpop.xlane.xlu0 %3124
      %3126 = vadd.xlane.f32.xlu0 %v2404
      %v3127 = vpop.xlane.xlu0 %3126
      %3128 = vadd.xlane.f32.xlu0 %v2405
      %v3129 = vpop.xlane.xlu0 %3128
      %3130 = vadd.xlane.f32.xlu0 %v2406
      %v3131 = vpop.xlane.xlu0 %3130
      %3132 = vadd.xlane.f32.xlu0 %v2407
      %v3133 = vpop.xlane.xlu0 %3132
      %3134 = vadd.xlane.f32.xlu0 %v2408
      %v3135 = vpop.xlane.xlu0 %3134
      %3136 = vadd.xlane.f32.xlu0 %v2409
      %v3137 = vpop.xlane.xlu0 %3136
      %3138 = vadd.xlane.f32.xlu0 %v2410
      %v3139 = vpop.xlane.xlu0 %3138
      %3140 = vadd.xlane.f32.xlu0 %v2411
      %v3141 = vpop.xlane.xlu0 %3140
      %3142 = vadd.xlane.f32.xlu0 %v2412
      %v3143 = vpop.xlane.xlu0 %3142
      %3144 = vadd.xlane.f32.xlu0 %v2413
      %v3145 = vpop.xlane.xlu0 %3144
      %3146 = vadd.xlane.f32.xlu0 %v2414
      %v3147 = vpop.xlane.xlu0 %3146
      %3148 = vadd.xlane.f32.xlu0 %v2415
      %v3149 = vpop.xlane.xlu0 %3148
      %3150 = vadd.xlane.f32.xlu0 %v2416
      %v3151 = vpop.xlane.xlu0 %3150
      %3152 = vadd.xlane.f32.xlu0 %v2417
      %v3153 = vpop.xlane.xlu0 %3152
      %3154 = vadd.xlane.f32.xlu0 %v2418
      %v3155 = vpop.xlane.xlu0 %3154
      %3156 = vadd.xlane.f32.xlu0 %v2419
      %v3157 = vpop.xlane.xlu0 %3156
      %3158 = vadd.xlane.f32.xlu0 %v2420
      %v3159 = vpop.xlane.xlu0 %3158
      %3160 = vadd.xlane.f32.xlu0 %v2421
      %v3161 = vpop.xlane.xlu0 %3160
      %3162 = vadd.xlane.f32.xlu0 %v2422
      %v3163 = vpop.xlane.xlu0 %3162
      %3164 = vadd.xlane.f32.xlu0 %v2423
      %v3165 = vpop.xlane.xlu0 %3164
      %3166 = vadd.xlane.f32.xlu0 %v2424
      %v3167 = vpop.xlane.xlu0 %3166
      %3168 = vadd.xlane.f32.xlu0 %v2425
      %v3169 = vpop.xlane.xlu0 %3168
      %3170 = vadd.xlane.f32.xlu0 %v2426
      %v3171 = vpop.xlane.xlu0 %3170
      %3172 = vadd.xlane.f32.xlu0 %v2427
      %v3173 = vpop.xlane.xlu0 %3172
      %3174 = vadd.xlane.f32.xlu0 %v2428
      %v3175 = vpop.xlane.xlu0 %3174
      %3176 = vadd.xlane.f32.xlu0 %v2429
      %v3177 = vpop.xlane.xlu0 %3176
      %3178 = vadd.xlane.f32.xlu0 %v2430
      %v3179 = vpop.xlane.xlu0 %3178
      %3180 = vadd.xlane.f32.xlu0 %v2431
      %v3181 = vpop.xlane.xlu0 %3180
      %3182 = vadd.xlane.f32.xlu0 %v2432
      %v3183 = vpop.xlane.xlu0 %3182
      %3184 = vadd.xlane.f32.xlu0 %v2433
      %v3185 = vpop.xlane.xlu0 %3184
      %3186 = vadd.xlane.f32.xlu0 %v2434
      %v3187 = vpop.xlane.xlu0 %3186
      %3188 = vadd.xlane.f32.xlu0 %v2435
      %v3189 = vpop.xlane.xlu0 %3188
      %3190 = vadd.xlane.f32.xlu0 %v2436
      %v3191 = vpop.xlane.xlu0 %3190
      %3192 = vadd.xlane.f32.xlu0 %v2437
      %v3193 = vpop.xlane.xlu0 %3192
      %3194 = vadd.xlane.f32.xlu0 %v2438
      %v3195 = vpop.xlane.xlu0 %3194
      %3196 = vadd.xlane.f32.xlu0 %v2439
      %v3197 = vpop.xlane.xlu0 %3196
      %3198 = vadd.xlane.f32.xlu0 %v2440
      %v3199 = vpop.xlane.xlu0 %3198
      %3200 = vadd.xlane.f32.xlu0 %v2441
      %v3201 = vpop.xlane.xlu0 %3200
      %3202 = vadd.xlane.f32.xlu0 %v2442
      %v3203 = vpop.xlane.xlu0 %3202
      %3204 = vadd.xlane.f32.xlu0 %v2443
      %v3205 = vpop.xlane.xlu0 %3204
      %3206 = vadd.xlane.f32.xlu0 %v2444
      %v3207 = vpop.xlane.xlu0 %3206
      %3208 = vadd.xlane.f32.xlu0 %v2445
      %v3209 = vpop.xlane.xlu0 %3208
      %3210 = vadd.xlane.f32.xlu0 %v2446
      %v3211 = vpop.xlane.xlu0 %3210
      %3212 = vadd.xlane.f32.xlu0 %v2447
      %v3213 = vpop.xlane.xlu0 %3212
      %3214 = vadd.xlane.f32.xlu0 %v2448
      %v3215 = vpop.xlane.xlu0 %3214
      %3216 = vadd.xlane.f32.xlu0 %v2449
      %v3217 = vpop.xlane.xlu0 %3216
      %3218 = vadd.xlane.f32.xlu0 %v2834
      %v3219 = vpop.xlane.xlu0 %3218
      %3220 = vadd.xlane.f32.xlu0 %v2835
      %v3221 = vpop.xlane.xlu0 %3220
      %3222 = vadd.xlane.f32.xlu0 %v2836
      %v3223 = vpop.xlane.xlu0 %3222
      %3224 = vadd.xlane.f32.xlu0 %v2837
      %v3225 = vpop.xlane.xlu0 %3224
      %3226 = vadd.xlane.f32.xlu0 %v2838
      %v3227 = vpop.xlane.xlu0 %3226
      %3228 = vadd.xlane.f32.xlu0 %v2839
      %v3229 = vpop.xlane.xlu0 %3228
      %3230 = vadd.xlane.f32.xlu0 %v2840
      %v3231 = vpop.xlane.xlu0 %3230
      %3232 = vadd.xlane.f32.xlu0 %v2841
      %v3233 = vpop.xlane.xlu0 %3232
      %3234 = vadd.xlane.f32.xlu0 %v2842
      %v3235 = vpop.xlane.xlu0 %3234
      %3236 = vadd.xlane.f32.xlu0 %v2843
      %v3237 = vpop.xlane.xlu0 %3236
      %3238 = vadd.xlane.f32.xlu0 %v2844
      %v3239 = vpop.xlane.xlu0 %3238
      %3240 = vadd.xlane.f32.xlu0 %v2845
      %v3241 = vpop.xlane.xlu0 %3240
      %3242 = vadd.xlane.f32.xlu0 %v2846
      %v3243 = vpop.xlane.xlu0 %3242
      %3244 = vadd.xlane.f32.xlu0 %v2847
      %v3245 = vpop.xlane.xlu0 %3244
      %3246 = vadd.xlane.f32.xlu0 %v2848
      %v3247 = vpop.xlane.xlu0 %3246
      %3248 = vadd.xlane.f32.xlu0 %v2849
      %v3249 = vpop.xlane.xlu0 %3248
      %3250 = vadd.xlane.f32.xlu0 %v2850
      %v3251 = vpop.xlane.xlu0 %3250
      %3252 = vadd.xlane.f32.xlu0 %v2851
      %v3253 = vpop.xlane.xlu0 %3252
      %3254 = vadd.xlane.f32.xlu0 %v2852
      %v3255 = vpop.xlane.xlu0 %3254
      %3256 = vadd.xlane.f32.xlu0 %v2853
      %v3257 = vpop.xlane.xlu0 %3256
      %3258 = vadd.xlane.f32.xlu0 %v2854
      %v3259 = vpop.xlane.xlu0 %3258
      %3260 = vadd.xlane.f32.xlu0 %v2855
      %v3261 = vpop.xlane.xlu0 %3260
      %3262 = vadd.xlane.f32.xlu0 %v2856
      %v3263 = vpop.xlane.xlu0 %3262
      %3264 = vadd.xlane.f32.xlu0 %v2857
      %v3265 = vpop.xlane.xlu0 %3264
      %3266 = vadd.xlane.f32.xlu0 %v2858
      %v3267 = vpop.xlane.xlu0 %3266
      %3268 = vadd.xlane.f32.xlu0 %v2859
      %v3269 = vpop.xlane.xlu0 %3268
      %3270 = vadd.xlane.f32.xlu0 %v2860
      %v3271 = vpop.xlane.xlu0 %3270
      %3272 = vadd.xlane.f32.xlu0 %v2861
      %v3273 = vpop.xlane.xlu0 %3272
      %3274 = vadd.xlane.f32.xlu0 %v2862
      %v3275 = vpop.xlane.xlu0 %3274
      %3276 = vadd.xlane.f32.xlu0 %v2863
      %v3277 = vpop.xlane.xlu0 %3276
      %3278 = vadd.xlane.f32.xlu0 %v2864
      %v3279 = vpop.xlane.xlu0 %3278
      %3280 = vadd.xlane.f32.xlu0 %v2865
      %v3281 = vpop.xlane.xlu0 %3280
      %3282 = vadd.xlane.f32.xlu0 %v2866
      %v3283 = vpop.xlane.xlu0 %3282
      %3284 = vadd.xlane.f32.xlu0 %v2867
      %v3285 = vpop.xlane.xlu0 %3284
      %3286 = vadd.xlane.f32.xlu0 %v2868
      %v3287 = vpop.xlane.xlu0 %3286
      %3288 = vadd.xlane.f32.xlu0 %v2869
      %v3289 = vpop.xlane.xlu0 %3288
      %3290 = vadd.xlane.f32.xlu0 %v2870
      %v3291 = vpop.xlane.xlu0 %3290
      %3292 = vadd.xlane.f32.xlu0 %v2871
      %v3293 = vpop.xlane.xlu0 %3292
      %3294 = vadd.xlane.f32.xlu0 %v2872
      %v3295 = vpop.xlane.xlu0 %3294
      %3296 = vadd.xlane.f32.xlu0 %v2873
      %v3297 = vpop.xlane.xlu0 %3296
      %3298 = vadd.xlane.f32.xlu0 %v2874
      %v3299 = vpop.xlane.xlu0 %3298
      %3300 = vadd.xlane.f32.xlu0 %v2875
      %v3301 = vpop.xlane.xlu0 %3300
      %3302 = vadd.xlane.f32.xlu0 %v2876
      %v3303 = vpop.xlane.xlu0 %3302
      %3304 = vadd.xlane.f32.xlu0 %v2877
      %v3305 = vpop.xlane.xlu0 %3304
      %3306 = vadd.xlane.f32.xlu0 %v2878
      %v3307 = vpop.xlane.xlu0 %3306
      %3308 = vadd.xlane.f32.xlu0 %v2879
      %v3309 = vpop.xlane.xlu0 %3308
      %3310 = vadd.xlane.f32.xlu0 %v2880
      %v3311 = vpop.xlane.xlu0 %3310
      %3312 = vadd.xlane.f32.xlu0 %v2881
      %v3313 = vpop.xlane.xlu0 %3312
      %3314 = vadd.xlane.f32.xlu0 %v2882
      %v3315 = vpop.xlane.xlu0 %3314
      %3316 = vadd.xlane.f32.xlu0 %v2883
      %v3317 = vpop.xlane.xlu0 %3316
      %3318 = vadd.xlane.f32.xlu0 %v2884
      %v3319 = vpop.xlane.xlu0 %3318
      %3320 = vadd.xlane.f32.xlu0 %v2885
      %v3321 = vpop.xlane.xlu0 %3320
      %3322 = vadd.xlane.f32.xlu0 %v2886
      %v3323 = vpop.xlane.xlu0 %3322
      %3324 = vadd.xlane.f32.xlu0 %v2887
      %v3325 = vpop.xlane.xlu0 %3324
      %3326 = vadd.xlane.f32.xlu0 %v2888
      %v3327 = vpop.xlane.xlu0 %3326
      %3328 = vadd.xlane.f32.xlu0 %v2889
      %v3329 = vpop.xlane.xlu0 %3328
      %3330 = vadd.xlane.f32.xlu0 %v2890
      %v3331 = vpop.xlane.xlu0 %3330
      %3332 = vadd.xlane.f32.xlu0 %v2891
      %v3333 = vpop.xlane.xlu0 %3332
      %3334 = vadd.xlane.f32.xlu0 %v2892
      %v3335 = vpop.xlane.xlu0 %3334
      %3336 = vadd.xlane.f32.xlu0 %v2893
      %v3337 = vpop.xlane.xlu0 %3336
      %3338 = vadd.xlane.f32.xlu0 %v2894
      %v3339 = vpop.xlane.xlu0 %3338
      %3340 = vadd.xlane.f32.xlu0 %v2895
      %v3341 = vpop.xlane.xlu0 %3340
      %3342 = vadd.xlane.f32.xlu0 %v2896
      %v3343 = vpop.xlane.xlu0 %3342
      %3344 = vadd.xlane.f32.xlu0 %v2897
      %v3345 = vpop.xlane.xlu0 %3344
      %3346 = vadd.xlane.f32.xlu0 %v2898
      %v3347 = vpop.xlane.xlu0 %3346
      %3348 = vadd.xlane.f32.xlu0 %v2899
      %v3349 = vpop.xlane.xlu0 %3348
      %3350 = vadd.xlane.f32.xlu0 %v2900
      %v3351 = vpop.xlane.xlu0 %3350
      %3352 = vadd.xlane.f32.xlu0 %v2901
      %v3353 = vpop.xlane.xlu0 %3352
      %3354 = vadd.xlane.f32.xlu0 %v2902
      %v3355 = vpop.xlane.xlu0 %3354
      %3356 = vadd.xlane.f32.xlu0 %v2903
      %v3357 = vpop.xlane.xlu0 %3356
      %3358 = vadd.xlane.f32.xlu0 %v2904
      %v3359 = vpop.xlane.xlu0 %3358
      %3360 = vadd.xlane.f32.xlu0 %v2905
      %v3361 = vpop.xlane.xlu0 %3360
      %3362 = vadd.xlane.f32.xlu0 %v2906
      %v3363 = vpop.xlane.xlu0 %3362
      %3364 = vadd.xlane.f32.xlu0 %v2907
      %v3365 = vpop.xlane.xlu0 %3364
      %3366 = vadd.xlane.f32.xlu0 %v2908
      %v3367 = vpop.xlane.xlu0 %3366
      %3368 = vadd.xlane.f32.xlu0 %v2909
      %v3369 = vpop.xlane.xlu0 %3368
      %3370 = vadd.xlane.f32.xlu0 %v2910
      %v3371 = vpop.xlane.xlu0 %3370
      %3372 = vadd.xlane.f32.xlu0 %v2911
      %v3373 = vpop.xlane.xlu0 %3372
      %3374 = vadd.xlane.f32.xlu0 %v2912
      %v3375 = vpop.xlane.xlu0 %3374
      %3376 = vadd.xlane.f32.xlu0 %v2913
      %v3377 = vpop.xlane.xlu0 %3376
      %3378 = vadd.xlane.f32.xlu0 %v2914
      %v3379 = vpop.xlane.xlu0 %3378
      %3380 = vadd.xlane.f32.xlu0 %v2915
      %v3381 = vpop.xlane.xlu0 %3380
      %3382 = vadd.xlane.f32.xlu0 %v2916
      %v3383 = vpop.xlane.xlu0 %3382
      %3384 = vadd.xlane.f32.xlu0 %v2917
      %v3385 = vpop.xlane.xlu0 %3384
      %3386 = vadd.xlane.f32.xlu0 %v2918
      %v3387 = vpop.xlane.xlu0 %3386
      %3388 = vadd.xlane.f32.xlu0 %v2919
      %v3389 = vpop.xlane.xlu0 %3388
      %3390 = vadd.xlane.f32.xlu0 %v2920
      %v3391 = vpop.xlane.xlu0 %3390
      %3392 = vadd.xlane.f32.xlu0 %v2921
      %v3393 = vpop.xlane.xlu0 %3392
      %3394 = vadd.xlane.f32.xlu0 %v2922
      %v3395 = vpop.xlane.xlu0 %3394
      %3396 = vadd.xlane.f32.xlu0 %v2923
      %v3397 = vpop.xlane.xlu0 %3396
      %3398 = vadd.xlane.f32.xlu0 %v2924
      %v3399 = vpop.xlane.xlu0 %3398
      %3400 = vadd.xlane.f32.xlu0 %v2925
      %v3401 = vpop.xlane.xlu0 %3400
      %3402 = vadd.xlane.f32.xlu0 %v2926
      %v3403 = vpop.xlane.xlu0 %3402
      %3404 = vadd.xlane.f32.xlu0 %v2927
      %v3405 = vpop.xlane.xlu0 %3404
      %3406 = vadd.xlane.f32.xlu0 %v2928
      %v3407 = vpop.xlane.xlu0 %3406
      %3408 = vadd.xlane.f32.xlu0 %v2929
      %v3409 = vpop.xlane.xlu0 %3408
      %3410 = vadd.xlane.f32.xlu0 %v2930
      %v3411 = vpop.xlane.xlu0 %3410
      %3412 = vadd.xlane.f32.xlu0 %v2931
      %v3413 = vpop.xlane.xlu0 %3412
      %3414 = vadd.xlane.f32.xlu0 %v2932
      %v3415 = vpop.xlane.xlu0 %3414
      %3416 = vadd.xlane.f32.xlu0 %v2933
      %v3417 = vpop.xlane.xlu0 %3416
      %3418 = vadd.xlane.f32.xlu0 %v2934
      %v3419 = vpop.xlane.xlu0 %3418
      %3420 = vadd.xlane.f32.xlu0 %v2935
      %v3421 = vpop.xlane.xlu0 %3420
      %3422 = vadd.xlane.f32.xlu0 %v2936
      %v3423 = vpop.xlane.xlu0 %3422
      %3424 = vadd.xlane.f32.xlu0 %v2937
      %v3425 = vpop.xlane.xlu0 %3424
      %3426 = vadd.xlane.f32.xlu0 %v2938
      %v3427 = vpop.xlane.xlu0 %3426
      %3428 = vadd.xlane.f32.xlu0 %v2939
      %v3429 = vpop.xlane.xlu0 %3428
      %3430 = vadd.xlane.f32.xlu0 %v2940
      %v3431 = vpop.xlane.xlu0 %3430
      %3432 = vadd.xlane.f32.xlu0 %v2941
      %v3433 = vpop.xlane.xlu0 %3432
      %3434 = vadd.xlane.f32.xlu0 %v2942
      %v3435 = vpop.xlane.xlu0 %3434
      %3436 = vadd.xlane.f32.xlu0 %v2943
      %v3437 = vpop.xlane.xlu0 %3436
      %3438 = vadd.xlane.f32.xlu0 %v2944
      %v3439 = vpop.xlane.xlu0 %3438
      %3440 = vadd.xlane.f32.xlu0 %v2945
      %v3441 = vpop.xlane.xlu0 %3440
      %3442 = vadd.xlane.f32.xlu0 %v2946
      %v3443 = vpop.xlane.xlu0 %3442
      %3444 = vadd.xlane.f32.xlu0 %v2947
      %v3445 = vpop.xlane.xlu0 %3444
      %3446 = vadd.xlane.f32.xlu0 %v2948
      %v3447 = vpop.xlane.xlu0 %3446
      %3448 = vadd.xlane.f32.xlu0 %v2949
      %v3449 = vpop.xlane.xlu0 %3448
      %3450 = vadd.xlane.f32.xlu0 %v2950
      %v3451 = vpop.xlane.xlu0 %3450
      %3452 = vadd.xlane.f32.xlu0 %v2951
      %v3453 = vpop.xlane.xlu0 %3452
      %3454 = vadd.xlane.f32.xlu0 %v2952
      %v3455 = vpop.xlane.xlu0 %3454
      %3456 = vadd.xlane.f32.xlu0 %v2953
      %v3457 = vpop.xlane.xlu0 %3456
      %3458 = vadd.xlane.f32.xlu0 %v2954
      %v3459 = vpop.xlane.xlu0 %3458
      %3460 = vadd.xlane.f32.xlu0 %v2955
      %v3461 = vpop.xlane.xlu0 %3460
      %3462 = vadd.xlane.f32.xlu0 %v2956
      %v3463 = vpop.xlane.xlu0 %3462
      %3464 = vadd.xlane.f32.xlu0 %v2957
      %v3465 = vpop.xlane.xlu0 %3464
      %3466 = vadd.xlane.f32.xlu0 %v2958
      %v3467 = vpop.xlane.xlu0 %3466
      %3468 = vadd.xlane.f32.xlu0 %v2959
      %v3469 = vpop.xlane.xlu0 %3468
      %3470 = vadd.xlane.f32.xlu0 %v2960
      %v3471 = vpop.xlane.xlu0 %3470
      %3472 = vadd.xlane.f32.xlu0 %v2961
      %v3473 = vpop.xlane.xlu0 %3472
      %v3602 = vlaneseq
      %v3603 = vand.u32 %v3602, 127
      %v3604 = vlaneseq
      %v3605 = vshrl.u32 %v3604, 7
      %v3606 = vsub.s32 %v3603, %v3605
      %v3607 = vrot.slane %v2963, %v3606
      %v3608 = vadd.s32 %v3603, 4294967288
      %v3609 = vlaneseq
      %v3610 = vshrl.u32 %v3609, 7
      %v3611 = vsub.s32 %v3608, %v3610
      %v3612 = vrot.slane %v2965, %v3611
      %vm3613 = vcmask 130112
      %v3614 = vsel %vm3613, %v3612, %v3607
      %v3615 = vadd.s32 %v3603, 4294967280
      %v3616 = vlaneseq
      %v3617 = vshrl.u32 %v3616, 7
      %v3618 = vsub.s32 %v3615, %v3617
      %v3619 = vrot.slane %v2967, %v3618
      %vm3620 = vcmask 195712
      %v3621 = vsel %vm3620, %v3619, %v3614
      %v3622 = vadd.s32 %v3603, 4294967272
      %v3623 = vlaneseq
      %v3624 = vshrl.u32 %v3623, 7
      %v3625 = vsub.s32 %v3622, %v3624
      %v3626 = vrot.slane %v2969, %v3625
      %vm3627 = vcmask 261312
      %v3628 = vsel %vm3627, %v3626, %v3621
      %v3629 = vadd.s32 %v3603, 4294967264
      %v3630 = vlaneseq
      %v3631 = vshrl.u32 %v3630, 7
      %v3632 = vsub.s32 %v3629, %v3631
      %v3633 = vrot.slane %v2971, %v3632
      %vm3634 = vcmask 326912
      %v3635 = vsel %vm3634, %v3633, %v3628
      %v3636 = vadd.s32 %v3603, 4294967256
      %v3637 = vlaneseq
      %v3638 = vshrl.u32 %v3637, 7
      %v3639 = vsub.s32 %v3636, %v3638
      %v3640 = vrot.slane %v2973, %v3639
      %vm3641 = vcmask 392512
      %v3642 = vsel %vm3641, %v3640, %v3635
      %v3643 = vadd.s32 %v3603, 4294967248
      %v3644 = vlaneseq
      %v3645 = vshrl.u32 %v3644, 7
      %v3646 = vsub.s32 %v3643, %v3645
      %v3647 = vrot.slane %v2975, %v3646
      %vm3648 = vcmask 458112
      %v3649 = vsel %vm3648, %v3647, %v3642
      %v3650 = vadd.s32 %v3603, 4294967240
      %v3651 = vlaneseq
      %v3652 = vshrl.u32 %v3651, 7
      %v3653 = vsub.s32 %v3650, %v3652
      %v3654 = vrot.slane %v2977, %v3653
      %vm3655 = vcmask 523712
      %v3656 = vsel %vm3655, %v3654, %v3649
      %v3657 = vadd.s32 %v3603, 4294967232
      %v3658 = vlaneseq
      %v3659 = vshrl.u32 %v3658, 7
      %v3660 = vsub.s32 %v3657, %v3659
      %v3661 = vrot.slane %v2979, %v3660
      %vm3662 = vcmask 589312
      %v3663 = vsel %vm3662, %v3661, %v3656
      %v3664 = vadd.s32 %v3603, 4294967224
      %v3665 = vlaneseq
      %v3666 = vshrl.u32 %v3665, 7
      %v3667 = vsub.s32 %v3664, %v3666
      %v3668 = vrot.slane %v2981, %v3667
      %vm3669 = vcmask 654912
      %v3670 = vsel %vm3669, %v3668, %v3663
      %v3671 = vadd.s32 %v3603, 4294967216
      %v3672 = vlaneseq
      %v3673 = vshrl.u32 %v3672, 7
      %v3674 = vsub.s32 %v3671, %v3673
      %v3675 = vrot.slane %v2983, %v3674
      %vm3676 = vcmask 720512
      %v3677 = vsel %vm3676, %v3675, %v3670
      %v3678 = vadd.s32 %v3603, 4294967208
      %v3679 = vlaneseq
      %v3680 = vshrl.u32 %v3679, 7
      %v3681 = vsub.s32 %v3678, %v3680
      %v3682 = vrot.slane %v2985, %v3681
      %vm3683 = vcmask 786112
      %v3684 = vsel %vm3683, %v3682, %v3677
      %v3685 = vadd.s32 %v3603, 4294967200
      %v3686 = vlaneseq
      %v3687 = vshrl.u32 %v3686, 7
      %v3688 = vsub.s32 %v3685, %v3687
      %v3689 = vrot.slane %v2987, %v3688
      %vm3690 = vcmask 851712
      %v3691 = vsel %vm3690, %v3689, %v3684
      %v3692 = vadd.s32 %v3603, 4294967192
      %v3693 = vlaneseq
      %v3694 = vshrl.u32 %v3693, 7
      %v3695 = vsub.s32 %v3692, %v3694
      %v3696 = vrot.slane %v2989, %v3695
      %vm3697 = vcmask 917312
      %v3698 = vsel %vm3697, %v3696, %v3691
      %v3699 = vadd.s32 %v3603, 4294967184
      %v3700 = vlaneseq
      %v3701 = vshrl.u32 %v3700, 7
      %v3702 = vsub.s32 %v3699, %v3701
      %v3703 = vrot.slane %v2991, %v3702
      %vm3704 = vcmask 982912
      %v3705 = vsel %vm3704, %v3703, %v3698
      %v3706 = vadd.s32 %v3603, 4294967176
      %v3707 = vlaneseq
      %v3708 = vshrl.u32 %v3707, 7
      %v3709 = vsub.s32 %v3706, %v3708
      %v3710 = vrot.slane %v2993, %v3709
      %vm3711 = vcmask 1048512
      %v3712 = vsel %vm3711, %v3710, %v3705
      %v3713 = vlaneseq
      %v3714 = vshrl.u32 %v3713, 7
      %v3715 = vsub.s32 %v3603, %v3714
      %v3716 = vrot.slane %v2995, %v3715
      %v3717 = vlaneseq
      %v3718 = vshrl.u32 %v3717, 7
      %v3719 = vsub.s32 %v3608, %v3718
      %v3720 = vrot.slane %v2997, %v3719
      %v3721 = vsel %vm3613, %v3720, %v3716
      %v3722 = vlaneseq
      %v3723 = vshrl.u32 %v3722, 7
      %v3724 = vsub.s32 %v3615, %v3723
      %v3725 = vrot.slane %v2999, %v3724
      %v3726 = vsel %vm3620, %v3725, %v3721
      %v3727 = vlaneseq
      %v3728 = vshrl.u32 %v3727, 7
      %v3729 = vsub.s32 %v3622, %v3728
      %v3730 = vrot.slane %v3001, %v3729
      %v3731 = vsel %vm3627, %v3730, %v3726
      %v3732 = vlaneseq
      %v3733 = vshrl.u32 %v3732, 7
      %v3734 = vsub.s32 %v3629, %v3733
      %v3735 = vrot.slane %v3003, %v3734
      %v3736 = vsel %vm3634, %v3735, %v3731
      %v3737 = vlaneseq
      %v3738 = vshrl.u32 %v3737, 7
      %v3739 = vsub.s32 %v3636, %v3738
      %v3740 = vrot.slane %v3005, %v3739
      %v3741 = vsel %vm3641, %v3740, %v3736
      %v3742 = vlaneseq
      %v3743 = vshrl.u32 %v3742, 7
      %v3744 = vsub.s32 %v3643, %v3743
      %v3745 = vrot.slane %v3007, %v3744
      %v3746 = vsel %vm3648, %v3745, %v3741
      %v3747 = vlaneseq
      %v3748 = vshrl.u32 %v3747, 7
      %v3749 = vsub.s32 %v3650, %v3748
      %v3750 = vrot.slane %v3009, %v3749
      %v3751 = vsel %vm3655, %v3750, %v3746
      %v3752 = vlaneseq
      %v3753 = vshrl.u32 %v3752, 7
      %v3754 = vsub.s32 %v3657, %v3753
      %v3755 = vrot.slane %v3011, %v3754
      %v3756 = vsel %vm3662, %v3755, %v3751
      %v3757 = vlaneseq
      %v3758 = vshrl.u32 %v3757, 7
      %v3759 = vsub.s32 %v3664, %v3758
      %v3760 = vrot.slane %v3013, %v3759
      %v3761 = vsel %vm3669, %v3760, %v3756
      %v3762 = vlaneseq
      %v3763 = vshrl.u32 %v3762, 7
      %v3764 = vsub.s32 %v3671, %v3763
      %v3765 = vrot.slane %v3015, %v3764
      %v3766 = vsel %vm3676, %v3765, %v3761
      %v3767 = vlaneseq
      %v3768 = vshrl.u32 %v3767, 7
      %v3769 = vsub.s32 %v3678, %v3768
      %v3770 = vrot.slane %v3017, %v3769
      %v3771 = vsel %vm3683, %v3770, %v3766
      %v3772 = vlaneseq
      %v3773 = vshrl.u32 %v3772, 7
      %v3774 = vsub.s32 %v3685, %v3773
      %v3775 = vrot.slane %v3019, %v3774
      %v3776 = vsel %vm3690, %v3775, %v3771
      %v3777 = vlaneseq
      %v3778 = vshrl.u32 %v3777, 7
      %v3779 = vsub.s32 %v3692, %v3778
      %v3780 = vrot.slane %v3021, %v3779
      %v3781 = vsel %vm3697, %v3780, %v3776
      %v3782 = vlaneseq
      %v3783 = vshrl.u32 %v3782, 7
      %v3784 = vsub.s32 %v3699, %v3783
      %v3785 = vrot.slane %v3023, %v3784
      %v3786 = vsel %vm3704, %v3785, %v3781
      %v3787 = vlaneseq
      %v3788 = vshrl.u32 %v3787, 7
      %v3789 = vsub.s32 %v3706, %v3788
      %v3790 = vrot.slane %v3025, %v3789
      %v3791 = vsel %vm3711, %v3790, %v3786
      %v3792 = vlaneseq
      %v3793 = vshrl.u32 %v3792, 7
      %v3794 = vsub.s32 %v3603, %v3793
      %v3795 = vrot.slane %v3027, %v3794
      %v3796 = vlaneseq
      %v3797 = vshrl.u32 %v3796, 7
      %v3798 = vsub.s32 %v3608, %v3797
      %v3799 = vrot.slane %v3029, %v3798
      %v3800 = vsel %vm3613, %v3799, %v3795
      %v3801 = vlaneseq
      %v3802 = vshrl.u32 %v3801, 7
      %v3803 = vsub.s32 %v3615, %v3802
      %v3804 = vrot.slane %v3031, %v3803
      %v3805 = vsel %vm3620, %v3804, %v3800
      %v3806 = vlaneseq
      %v3807 = vshrl.u32 %v3806, 7
      %v3808 = vsub.s32 %v3622, %v3807
      %v3809 = vrot.slane %v3033, %v3808
      %v3810 = vsel %vm3627, %v3809, %v3805
      %v3811 = vlaneseq
      %v3812 = vshrl.u32 %v3811, 7
      %v3813 = vsub.s32 %v3629, %v3812
      %v3814 = vrot.slane %v3035, %v3813
      %v3815 = vsel %vm3634, %v3814, %v3810
      %v3816 = vlaneseq
      %v3817 = vshrl.u32 %v3816, 7
      %v3818 = vsub.s32 %v3636, %v3817
      %v3819 = vrot.slane %v3037, %v3818
      %v3820 = vsel %vm3641, %v3819, %v3815
      %v3821 = vlaneseq
      %v3822 = vshrl.u32 %v3821, 7
      %v3823 = vsub.s32 %v3643, %v3822
      %v3824 = vrot.slane %v3039, %v3823
      %v3825 = vsel %vm3648, %v3824, %v3820
      %v3826 = vlaneseq
      %v3827 = vshrl.u32 %v3826, 7
      %v3828 = vsub.s32 %v3650, %v3827
      %v3829 = vrot.slane %v3041, %v3828
      %v3830 = vsel %vm3655, %v3829, %v3825
      %v3831 = vlaneseq
      %v3832 = vshrl.u32 %v3831, 7
      %v3833 = vsub.s32 %v3657, %v3832
      %v3834 = vrot.slane %v3043, %v3833
      %v3835 = vsel %vm3662, %v3834, %v3830
      %v3836 = vlaneseq
      %v3837 = vshrl.u32 %v3836, 7
      %v3838 = vsub.s32 %v3664, %v3837
      %v3839 = vrot.slane %v3045, %v3838
      %v3840 = vsel %vm3669, %v3839, %v3835
      %v3841 = vlaneseq
      %v3842 = vshrl.u32 %v3841, 7
      %v3843 = vsub.s32 %v3671, %v3842
      %v3844 = vrot.slane %v3047, %v3843
      %v3845 = vsel %vm3676, %v3844, %v3840
      %v3846 = vlaneseq
      %v3847 = vshrl.u32 %v3846, 7
      %v3848 = vsub.s32 %v3678, %v3847
      %v3849 = vrot.slane %v3049, %v3848
      %v3850 = vsel %vm3683, %v3849, %v3845
      %v3851 = vlaneseq
      %v3852 = vshrl.u32 %v3851, 7
      %v3853 = vsub.s32 %v3685, %v3852
      %v3854 = vrot.slane %v3051, %v3853
      %v3855 = vsel %vm3690, %v3854, %v3850
      %v3856 = vlaneseq
      %v3857 = vshrl.u32 %v3856, 7
      %v3858 = vsub.s32 %v3692, %v3857
      %v3859 = vrot.slane %v3053, %v3858
      %v3860 = vsel %vm3697, %v3859, %v3855
      %v3861 = vlaneseq
      %v3862 = vshrl.u32 %v3861, 7
      %v3863 = vsub.s32 %v3699, %v3862
      %v3864 = vrot.slane %v3055, %v3863
      %v3865 = vsel %vm3704, %v3864, %v3860
      %v3866 = vlaneseq
      %v3867 = vshrl.u32 %v3866, 7
      %v3868 = vsub.s32 %v3706, %v3867
      %v3869 = vrot.slane %v3057, %v3868
      %v3870 = vsel %vm3711, %v3869, %v3865
      %v3871 = vlaneseq
      %v3872 = vshrl.u32 %v3871, 7
      %v3873 = vsub.s32 %v3603, %v3872
      %v3874 = vrot.slane %v3059, %v3873
      %v3875 = vlaneseq
      %v3876 = vshrl.u32 %v3875, 7
      %v3877 = vsub.s32 %v3608, %v3876
      %v3878 = vrot.slane %v3061, %v3877
      %v3879 = vsel %vm3613, %v3878, %v3874
      %v3880 = vlaneseq
      %v3881 = vshrl.u32 %v3880, 7
      %v3882 = vsub.s32 %v3615, %v3881
      %v3883 = vrot.slane %v3063, %v3882
      %v3884 = vsel %vm3620, %v3883, %v3879
      %v3885 = vlaneseq
      %v3886 = vshrl.u32 %v3885, 7
      %v3887 = vsub.s32 %v3622, %v3886
      %v3888 = vrot.slane %v3065, %v3887
      %v3889 = vsel %vm3627, %v3888, %v3884
      %v3890 = vlaneseq
      %v3891 = vshrl.u32 %v3890, 7
      %v3892 = vsub.s32 %v3629, %v3891
      %v3893 = vrot.slane %v3067, %v3892
      %v3894 = vsel %vm3634, %v3893, %v3889
      %v3895 = vlaneseq
      %v3896 = vshrl.u32 %v3895, 7
      %v3897 = vsub.s32 %v3636, %v3896
      %v3898 = vrot.slane %v3069, %v3897
      %v3899 = vsel %vm3641, %v3898, %v3894
      %v3900 = vlaneseq
      %v3901 = vshrl.u32 %v3900, 7
      %v3902 = vsub.s32 %v3643, %v3901
      %v3903 = vrot.slane %v3071, %v3902
      %v3904 = vsel %vm3648, %v3903, %v3899
      %v3905 = vlaneseq
      %v3906 = vshrl.u32 %v3905, 7
      %v3907 = vsub.s32 %v3650, %v3906
      %v3908 = vrot.slane %v3073, %v3907
      %v3909 = vsel %vm3655, %v3908, %v3904
      %v3910 = vlaneseq
      %v3911 = vshrl.u32 %v3910, 7
      %v3912 = vsub.s32 %v3657, %v3911
      %v3913 = vrot.slane %v3075, %v3912
      %v3914 = vsel %vm3662, %v3913, %v3909
      %v3915 = vlaneseq
      %v3916 = vshrl.u32 %v3915, 7
      %v3917 = vsub.s32 %v3664, %v3916
      %v3918 = vrot.slane %v3077, %v3917
      %v3919 = vsel %vm3669, %v3918, %v3914
      %v3920 = vlaneseq
      %v3921 = vshrl.u32 %v3920, 7
      %v3922 = vsub.s32 %v3671, %v3921
      %v3923 = vrot.slane %v3079, %v3922
      %v3924 = vsel %vm3676, %v3923, %v3919
      %v3925 = vlaneseq
      %v3926 = vshrl.u32 %v3925, 7
      %v3927 = vsub.s32 %v3678, %v3926
      %v3928 = vrot.slane %v3081, %v3927
      %v3929 = vsel %vm3683, %v3928, %v3924
      %v3930 = vlaneseq
      %v3931 = vshrl.u32 %v3930, 7
      %v3932 = vsub.s32 %v3685, %v3931
      %v3933 = vrot.slane %v3083, %v3932
      %v3934 = vsel %vm3690, %v3933, %v3929
      %v3935 = vlaneseq
      %v3936 = vshrl.u32 %v3935, 7
      %v3937 = vsub.s32 %v3692, %v3936
      %v3938 = vrot.slane %v3085, %v3937
      %v3939 = vsel %vm3697, %v3938, %v3934
      %v3940 = vlaneseq
      %v3941 = vshrl.u32 %v3940, 7
      %v3942 = vsub.s32 %v3699, %v3941
      %v3943 = vrot.slane %v3087, %v3942
      %v3944 = vsel %vm3704, %v3943, %v3939
      %v3945 = vlaneseq
      %v3946 = vshrl.u32 %v3945, 7
      %v3947 = vsub.s32 %v3706, %v3946
      %v3948 = vrot.slane %v3089, %v3947
      %v3949 = vsel %vm3711, %v3948, %v3944
      %v3950 = vlaneseq
      %v3951 = vshrl.u32 %v3950, 7
      %v3952 = vsub.s32 %v3603, %v3951
      %v3953 = vrot.slane %v3091, %v3952
      %v3954 = vlaneseq
      %v3955 = vshrl.u32 %v3954, 7
      %v3956 = vsub.s32 %v3608, %v3955
      %v3957 = vrot.slane %v3093, %v3956
      %v3958 = vsel %vm3613, %v3957, %v3953
      %v3959 = vlaneseq
      %v3960 = vshrl.u32 %v3959, 7
      %v3961 = vsub.s32 %v3615, %v3960
      %v3962 = vrot.slane %v3095, %v3961
      %v3963 = vsel %vm3620, %v3962, %v3958
      %v3964 = vlaneseq
      %v3965 = vshrl.u32 %v3964, 7
      %v3966 = vsub.s32 %v3622, %v3965
      %v3967 = vrot.slane %v3097, %v3966
      %v3968 = vsel %vm3627, %v3967, %v3963
      %v3969 = vlaneseq
      %v3970 = vshrl.u32 %v3969, 7
      %v3971 = vsub.s32 %v3629, %v3970
      %v3972 = vrot.slane %v3099, %v3971
      %v3973 = vsel %vm3634, %v3972, %v3968
      %v3974 = vlaneseq
      %v3975 = vshrl.u32 %v3974, 7
      %v3976 = vsub.s32 %v3636, %v3975
      %v3977 = vrot.slane %v3101, %v3976
      %v3978 = vsel %vm3641, %v3977, %v3973
      %v3979 = vlaneseq
      %v3980 = vshrl.u32 %v3979, 7
      %v3981 = vsub.s32 %v3643, %v3980
      %v3982 = vrot.slane %v3103, %v3981
      %v3983 = vsel %vm3648, %v3982, %v3978
      %v3984 = vlaneseq
      %v3985 = vshrl.u32 %v3984, 7
      %v3986 = vsub.s32 %v3650, %v3985
      %v3987 = vrot.slane %v3105, %v3986
      %v3988 = vsel %vm3655, %v3987, %v3983
      %v3989 = vlaneseq
      %v3990 = vshrl.u32 %v3989, 7
      %v3991 = vsub.s32 %v3657, %v3990
      %v3992 = vrot.slane %v3107, %v3991
      %v3993 = vsel %vm3662, %v3992, %v3988
      %v3994 = vlaneseq
      %v3995 = vshrl.u32 %v3994, 7
      %v3996 = vsub.s32 %v3664, %v3995
      %v3997 = vrot.slane %v3109, %v3996
      %v3998 = vsel %vm3669, %v3997, %v3993
      %v3999 = vlaneseq
      %v4000 = vshrl.u32 %v3999, 7
      %v4001 = vsub.s32 %v3671, %v4000
      %v4002 = vrot.slane %v3111, %v4001
      %v4003 = vsel %vm3676, %v4002, %v3998
      %v4004 = vlaneseq
      %v4005 = vshrl.u32 %v4004, 7
      %v4006 = vsub.s32 %v3678, %v4005
      %v4007 = vrot.slane %v3113, %v4006
      %v4008 = vsel %vm3683, %v4007, %v4003
      %v4009 = vlaneseq
      %v4010 = vshrl.u32 %v4009, 7
      %v4011 = vsub.s32 %v3685, %v4010
      %v4012 = vrot.slane %v3115, %v4011
      %v4013 = vsel %vm3690, %v4012, %v4008
      %v4014 = vlaneseq
      %v4015 = vshrl.u32 %v4014, 7
      %v4016 = vsub.s32 %v3692, %v4015
      %v4017 = vrot.slane %v3117, %v4016
      %v4018 = vsel %vm3697, %v4017, %v4013
      %v4019 = vlaneseq
      %v4020 = vshrl.u32 %v4019, 7
      %v4021 = vsub.s32 %v3699, %v4020
      %v4022 = vrot.slane %v3119, %v4021
      %v4023 = vsel %vm3704, %v4022, %v4018
      %v4024 = vlaneseq
      %v4025 = vshrl.u32 %v4024, 7
      %v4026 = vsub.s32 %v3706, %v4025
      %v4027 = vrot.slane %v3121, %v4026
      %v4028 = vsel %vm3711, %v4027, %v4023
      %v4029 = vlaneseq
      %v4030 = vshrl.u32 %v4029, 7
      %v4031 = vsub.s32 %v3603, %v4030
      %v4032 = vrot.slane %v3123, %v4031
      %v4033 = vlaneseq
      %v4034 = vshrl.u32 %v4033, 7
      %v4035 = vsub.s32 %v3608, %v4034
      %v4036 = vrot.slane %v3125, %v4035
      %v4037 = vsel %vm3613, %v4036, %v4032
      %v4038 = vlaneseq
      %v4039 = vshrl.u32 %v4038, 7
      %v4040 = vsub.s32 %v3615, %v4039
      %v4041 = vrot.slane %v3127, %v4040
      %v4042 = vsel %vm3620, %v4041, %v4037
      %v4043 = vlaneseq
      %v4044 = vshrl.u32 %v4043, 7
      %v4045 = vsub.s32 %v3622, %v4044
      %v4046 = vrot.slane %v3129, %v4045
      %v4047 = vsel %vm3627, %v4046, %v4042
      %v4048 = vlaneseq
      %v4049 = vshrl.u32 %v4048, 7
      %v4050 = vsub.s32 %v3629, %v4049
      %v4051 = vrot.slane %v3131, %v4050
      %v4052 = vsel %vm3634, %v4051, %v4047
      %v4053 = vlaneseq
      %v4054 = vshrl.u32 %v4053, 7
      %v4055 = vsub.s32 %v3636, %v4054
      %v4056 = vrot.slane %v3133, %v4055
      %v4057 = vsel %vm3641, %v4056, %v4052
      %v4058 = vlaneseq
      %v4059 = vshrl.u32 %v4058, 7
      %v4060 = vsub.s32 %v3643, %v4059
      %v4061 = vrot.slane %v3135, %v4060
      %v4062 = vsel %vm3648, %v4061, %v4057
      %v4063 = vlaneseq
      %v4064 = vshrl.u32 %v4063, 7
      %v4065 = vsub.s32 %v3650, %v4064
      %v4066 = vrot.slane %v3137, %v4065
      %v4067 = vsel %vm3655, %v4066, %v4062
      %v4068 = vlaneseq
      %v4069 = vshrl.u32 %v4068, 7
      %v4070 = vsub.s32 %v3657, %v4069
      %v4071 = vrot.slane %v3139, %v4070
      %v4072 = vsel %vm3662, %v4071, %v4067
      %v4073 = vlaneseq
      %v4074 = vshrl.u32 %v4073, 7
      %v4075 = vsub.s32 %v3664, %v4074
      %v4076 = vrot.slane %v3141, %v4075
      %v4077 = vsel %vm3669, %v4076, %v4072
      %v4078 = vlaneseq
      %v4079 = vshrl.u32 %v4078, 7
      %v4080 = vsub.s32 %v3671, %v4079
      %v4081 = vrot.slane %v3143, %v4080
      %v4082 = vsel %vm3676, %v4081, %v4077
      %v4083 = vlaneseq
      %v4084 = vshrl.u32 %v4083, 7
      %v4085 = vsub.s32 %v3678, %v4084
      %v4086 = vrot.slane %v3145, %v4085
      %v4087 = vsel %vm3683, %v4086, %v4082
      %v4088 = vlaneseq
      %v4089 = vshrl.u32 %v4088, 7
      %v4090 = vsub.s32 %v3685, %v4089
      %v4091 = vrot.slane %v3147, %v4090
      %v4092 = vsel %vm3690, %v4091, %v4087
      %v4093 = vlaneseq
      %v4094 = vshrl.u32 %v4093, 7
      %v4095 = vsub.s32 %v3692, %v4094
      %v4096 = vrot.slane %v3149, %v4095
      %v4097 = vsel %vm3697, %v4096, %v4092
      %v4098 = vlaneseq
      %v4099 = vshrl.u32 %v4098, 7
      %v4100 = vsub.s32 %v3699, %v4099
      %v4101 = vrot.slane %v3151, %v4100
      %v4102 = vsel %vm3704, %v4101, %v4097
      %v4103 = vlaneseq
      %v4104 = vshrl.u32 %v4103, 7
      %v4105 = vsub.s32 %v3706, %v4104
      %v4106 = vrot.slane %v3153, %v4105
      %v4107 = vsel %vm3711, %v4106, %v4102
      %v4108 = vlaneseq
      %v4109 = vshrl.u32 %v4108, 7
      %v4110 = vsub.s32 %v3603, %v4109
      %v4111 = vrot.slane %v3155, %v4110
      %v4112 = vlaneseq
      %v4113 = vshrl.u32 %v4112, 7
      %v4114 = vsub.s32 %v3608, %v4113
      %v4115 = vrot.slane %v3157, %v4114
      %v4116 = vsel %vm3613, %v4115, %v4111
      %v4117 = vlaneseq
      %v4118 = vshrl.u32 %v4117, 7
      %v4119 = vsub.s32 %v3615, %v4118
      %v4120 = vrot.slane %v3159, %v4119
      %v4121 = vsel %vm3620, %v4120, %v4116
      %v4122 = vlaneseq
      %v4123 = vshrl.u32 %v4122, 7
      %v4124 = vsub.s32 %v3622, %v4123
      %v4125 = vrot.slane %v3161, %v4124
      %v4126 = vsel %vm3627, %v4125, %v4121
      %v4127 = vlaneseq
      %v4128 = vshrl.u32 %v4127, 7
      %v4129 = vsub.s32 %v3629, %v4128
      %v4130 = vrot.slane %v3163, %v4129
      %v4131 = vsel %vm3634, %v4130, %v4126
      %v4132 = vlaneseq
      %v4133 = vshrl.u32 %v4132, 7
      %v4134 = vsub.s32 %v3636, %v4133
      %v4135 = vrot.slane %v3165, %v4134
      %v4136 = vsel %vm3641, %v4135, %v4131
      %v4137 = vlaneseq
      %v4138 = vshrl.u32 %v4137, 7
      %v4139 = vsub.s32 %v3643, %v4138
      %v4140 = vrot.slane %v3167, %v4139
      %v4141 = vsel %vm3648, %v4140, %v4136
      %v4142 = vlaneseq
      %v4143 = vshrl.u32 %v4142, 7
      %v4144 = vsub.s32 %v3650, %v4143
      %v4145 = vrot.slane %v3169, %v4144
      %v4146 = vsel %vm3655, %v4145, %v4141
      %v4147 = vlaneseq
      %v4148 = vshrl.u32 %v4147, 7
      %v4149 = vsub.s32 %v3657, %v4148
      %v4150 = vrot.slane %v3171, %v4149
      %v4151 = vsel %vm3662, %v4150, %v4146
      %v4152 = vlaneseq
      %v4153 = vshrl.u32 %v4152, 7
      %v4154 = vsub.s32 %v3664, %v4153
      %v4155 = vrot.slane %v3173, %v4154
      %v4156 = vsel %vm3669, %v4155, %v4151
      %v4157 = vlaneseq
      %v4158 = vshrl.u32 %v4157, 7
      %v4159 = vsub.s32 %v3671, %v4158
      %v4160 = vrot.slane %v3175, %v4159
      %v4161 = vsel %vm3676, %v4160, %v4156
      %v4162 = vlaneseq
      %v4163 = vshrl.u32 %v4162, 7
      %v4164 = vsub.s32 %v3678, %v4163
      %v4165 = vrot.slane %v3177, %v4164
      %v4166 = vsel %vm3683, %v4165, %v4161
      %v4167 = vlaneseq
      %v4168 = vshrl.u32 %v4167, 7
      %v4169 = vsub.s32 %v3685, %v4168
      %v4170 = vrot.slane %v3179, %v4169
      %v4171 = vsel %vm3690, %v4170, %v4166
      %v4172 = vlaneseq
      %v4173 = vshrl.u32 %v4172, 7
      %v4174 = vsub.s32 %v3692, %v4173
      %v4175 = vrot.slane %v3181, %v4174
      %v4176 = vsel %vm3697, %v4175, %v4171
      %v4177 = vlaneseq
      %v4178 = vshrl.u32 %v4177, 7
      %v4179 = vsub.s32 %v3699, %v4178
      %v4180 = vrot.slane %v3183, %v4179
      %v4181 = vsel %vm3704, %v4180, %v4176
      %v4182 = vlaneseq
      %v4183 = vshrl.u32 %v4182, 7
      %v4184 = vsub.s32 %v3706, %v4183
      %v4185 = vrot.slane %v3185, %v4184
      %v4186 = vsel %vm3711, %v4185, %v4181
      %v4187 = vlaneseq
      %v4188 = vshrl.u32 %v4187, 7
      %v4189 = vsub.s32 %v3603, %v4188
      %v4190 = vrot.slane %v3187, %v4189
      %v4191 = vlaneseq
      %v4192 = vshrl.u32 %v4191, 7
      %v4193 = vsub.s32 %v3608, %v4192
      %v4194 = vrot.slane %v3189, %v4193
      %v4195 = vsel %vm3613, %v4194, %v4190
      %v4196 = vlaneseq
      %v4197 = vshrl.u32 %v4196, 7
      %v4198 = vsub.s32 %v3615, %v4197
      %v4199 = vrot.slane %v3191, %v4198
      %v4200 = vsel %vm3620, %v4199, %v4195
      %v4201 = vlaneseq
      %v4202 = vshrl.u32 %v4201, 7
      %v4203 = vsub.s32 %v3622, %v4202
      %v4204 = vrot.slane %v3193, %v4203
      %v4205 = vsel %vm3627, %v4204, %v4200
      %v4206 = vlaneseq
      %v4207 = vshrl.u32 %v4206, 7
      %v4208 = vsub.s32 %v3629, %v4207
      %v4209 = vrot.slane %v3195, %v4208
      %v4210 = vsel %vm3634, %v4209, %v4205
      %v4211 = vlaneseq
      %v4212 = vshrl.u32 %v4211, 7
      %v4213 = vsub.s32 %v3636, %v4212
      %v4214 = vrot.slane %v3197, %v4213
      %v4215 = vsel %vm3641, %v4214, %v4210
      %v4216 = vlaneseq
      %v4217 = vshrl.u32 %v4216, 7
      %v4218 = vsub.s32 %v3643, %v4217
      %v4219 = vrot.slane %v3199, %v4218
      %v4220 = vsel %vm3648, %v4219, %v4215
      %v4221 = vlaneseq
      %v4222 = vshrl.u32 %v4221, 7
      %v4223 = vsub.s32 %v3650, %v4222
      %v4224 = vrot.slane %v3201, %v4223
      %v4225 = vsel %vm3655, %v4224, %v4220
      %v4226 = vlaneseq
      %v4227 = vshrl.u32 %v4226, 7
      %v4228 = vsub.s32 %v3657, %v4227
      %v4229 = vrot.slane %v3203, %v4228
      %v4230 = vsel %vm3662, %v4229, %v4225
      %v4231 = vlaneseq
      %v4232 = vshrl.u32 %v4231, 7
      %v4233 = vsub.s32 %v3664, %v4232
      %v4234 = vrot.slane %v3205, %v4233
      %v4235 = vsel %vm3669, %v4234, %v4230
      %v4236 = vlaneseq
      %v4237 = vshrl.u32 %v4236, 7
      %v4238 = vsub.s32 %v3671, %v4237
      %v4239 = vrot.slane %v3207, %v4238
      %v4240 = vsel %vm3676, %v4239, %v4235
      %v4241 = vlaneseq
      %v4242 = vshrl.u32 %v4241, 7
      %v4243 = vsub.s32 %v3678, %v4242
      %v4244 = vrot.slane %v3209, %v4243
      %v4245 = vsel %vm3683, %v4244, %v4240
      %v4246 = vlaneseq
      %v4247 = vshrl.u32 %v4246, 7
      %v4248 = vsub.s32 %v3685, %v4247
      %v4249 = vrot.slane %v3211, %v4248
      %v4250 = vsel %vm3690, %v4249, %v4245
      %v4251 = vlaneseq
      %v4252 = vshrl.u32 %v4251, 7
      %v4253 = vsub.s32 %v3692, %v4252
      %v4254 = vrot.slane %v3213, %v4253
      %v4255 = vsel %vm3697, %v4254, %v4250
      %v4256 = vlaneseq
      %v4257 = vshrl.u32 %v4256, 7
      %v4258 = vsub.s32 %v3699, %v4257
      %v4259 = vrot.slane %v3215, %v4258
      %v4260 = vsel %vm3704, %v4259, %v4255
      %v4261 = vlaneseq
      %v4262 = vshrl.u32 %v4261, 7
      %v4263 = vsub.s32 %v3706, %v4262
      %v4264 = vrot.slane %v3217, %v4263
      %v4265 = vsel %vm3711, %v4264, %v4260
      %vm4266 = vcmask 1041409
      %v4267 = vsel %vm4266, %v3791, %v3712
      %vm4268 = vcmask 1042434
      %v4269 = vsel %vm4268, %v3870, %v4267
      %vm4270 = vcmask 1043459
      %v4271 = vsel %vm4270, %v3949, %v4269
      %vm4272 = vcmask 1044484
      %v4273 = vsel %vm4272, %v4028, %v4271
      %vm4274 = vcmask 1045509
      %v4275 = vsel %vm4274, %v4107, %v4273
      %vm4276 = vcmask 1046534
      %v4277 = vsel %vm4276, %v4186, %v4275
      %vm4278 = vcmask 1047559
      %v4279 = vsel %vm4278, %v4265, %v4277
      %4281 = vadd.xlane.f32.xlu0 %v4279
      %v4282 = vpop.xlane.xlu0 %4281
      %v4411 = vlaneseq
      %v4412 = vshrl.u32 %v4411, 7
      %v4413 = vsub.s32 %v3603, %v4412
      %v4414 = vrot.slane %v3219, %v4413
      %v4415 = vlaneseq
      %v4416 = vshrl.u32 %v4415, 7
      %v4417 = vsub.s32 %v3608, %v4416
      %v4418 = vrot.slane %v3221, %v4417
      %v4419 = vsel %vm3613, %v4418, %v4414
      %v4420 = vlaneseq
      %v4421 = vshrl.u32 %v4420, 7
      %v4422 = vsub.s32 %v3615, %v4421
      %v4423 = vrot.slane %v3223, %v4422
      %v4424 = vsel %vm3620, %v4423, %v4419
      %v4425 = vlaneseq
      %v4426 = vshrl.u32 %v4425, 7
      %v4427 = vsub.s32 %v3622, %v4426
      %v4428 = vrot.slane %v3225, %v4427
      %v4429 = vsel %vm3627, %v4428, %v4424
      %v4430 = vlaneseq
      %v4431 = vshrl.u32 %v4430, 7
      %v4432 = vsub.s32 %v3629, %v4431
      %v4433 = vrot.slane %v3227, %v4432
      %v4434 = vsel %vm3634, %v4433, %v4429
      %v4435 = vlaneseq
      %v4436 = vshrl.u32 %v4435, 7
      %v4437 = vsub.s32 %v3636, %v4436
      %v4438 = vrot.slane %v3229, %v4437
      %v4439 = vsel %vm3641, %v4438, %v4434
      %v4440 = vlaneseq
      %v4441 = vshrl.u32 %v4440, 7
      %v4442 = vsub.s32 %v3643, %v4441
      %v4443 = vrot.slane %v3231, %v4442
      %v4444 = vsel %vm3648, %v4443, %v4439
      %v4445 = vlaneseq
      %v4446 = vshrl.u32 %v4445, 7
      %v4447 = vsub.s32 %v3650, %v4446
      %v4448 = vrot.slane %v3233, %v4447
      %v4449 = vsel %vm3655, %v4448, %v4444
      %v4450 = vlaneseq
      %v4451 = vshrl.u32 %v4450, 7
      %v4452 = vsub.s32 %v3657, %v4451
      %v4453 = vrot.slane %v3235, %v4452
      %v4454 = vsel %vm3662, %v4453, %v4449
      %v4455 = vlaneseq
      %v4456 = vshrl.u32 %v4455, 7
      %v4457 = vsub.s32 %v3664, %v4456
      %v4458 = vrot.slane %v3237, %v4457
      %v4459 = vsel %vm3669, %v4458, %v4454
      %v4460 = vlaneseq
      %v4461 = vshrl.u32 %v4460, 7
      %v4462 = vsub.s32 %v3671, %v4461
      %v4463 = vrot.slane %v3239, %v4462
      %v4464 = vsel %vm3676, %v4463, %v4459
      %v4465 = vlaneseq
      %v4466 = vshrl.u32 %v4465, 7
      %v4467 = vsub.s32 %v3678, %v4466
      %v4468 = vrot.slane %v3241, %v4467
      %v4469 = vsel %vm3683, %v4468, %v4464
      %v4470 = vlaneseq
      %v4471 = vshrl.u32 %v4470, 7
      %v4472 = vsub.s32 %v3685, %v4471
      %v4473 = vrot.slane %v3243, %v4472
      %v4474 = vsel %vm3690, %v4473, %v4469
      %v4475 = vlaneseq
      %v4476 = vshrl.u32 %v4475, 7
      %v4477 = vsub.s32 %v3692, %v4476
      %v4478 = vrot.slane %v3245, %v4477
      %v4479 = vsel %vm3697, %v4478, %v4474
      %v4480 = vlaneseq
      %v4481 = vshrl.u32 %v4480, 7
      %v4482 = vsub.s32 %v3699, %v4481
      %v4483 = vrot.slane %v3247, %v4482
      %v4484 = vsel %vm3704, %v4483, %v4479
      %v4485 = vlaneseq
      %v4486 = vshrl.u32 %v4485, 7
      %v4487 = vsub.s32 %v3706, %v4486
      %v4488 = vrot.slane %v3249, %v4487
      %v4489 = vsel %vm3711, %v4488, %v4484
      %v4490 = vlaneseq
      %v4491 = vshrl.u32 %v4490, 7
      %v4492 = vsub.s32 %v3603, %v4491
      %v4493 = vrot.slane %v3251, %v4492
      %v4494 = vlaneseq
      %v4495 = vshrl.u32 %v4494, 7
      %v4496 = vsub.s32 %v3608, %v4495
      %v4497 = vrot.slane %v3253, %v4496
      %v4498 = vsel %vm3613, %v4497, %v4493
      %v4499 = vlaneseq
      %v4500 = vshrl.u32 %v4499, 7
      %v4501 = vsub.s32 %v3615, %v4500
      %v4502 = vrot.slane %v3255, %v4501
      %v4503 = vsel %vm3620, %v4502, %v4498
      %v4504 = vlaneseq
      %v4505 = vshrl.u32 %v4504, 7
      %v4506 = vsub.s32 %v3622, %v4505
      %v4507 = vrot.slane %v3257, %v4506
      %v4508 = vsel %vm3627, %v4507, %v4503
      %v4509 = vlaneseq
      %v4510 = vshrl.u32 %v4509, 7
      %v4511 = vsub.s32 %v3629, %v4510
      %v4512 = vrot.slane %v3259, %v4511
      %v4513 = vsel %vm3634, %v4512, %v4508
      %v4514 = vlaneseq
      %v4515 = vshrl.u32 %v4514, 7
      %v4516 = vsub.s32 %v3636, %v4515
      %v4517 = vrot.slane %v3261, %v4516
      %v4518 = vsel %vm3641, %v4517, %v4513
      %v4519 = vlaneseq
      %v4520 = vshrl.u32 %v4519, 7
      %v4521 = vsub.s32 %v3643, %v4520
      %v4522 = vrot.slane %v3263, %v4521
      %v4523 = vsel %vm3648, %v4522, %v4518
      %v4524 = vlaneseq
      %v4525 = vshrl.u32 %v4524, 7
      %v4526 = vsub.s32 %v3650, %v4525
      %v4527 = vrot.slane %v3265, %v4526
      %v4528 = vsel %vm3655, %v4527, %v4523
      %v4529 = vlaneseq
      %v4530 = vshrl.u32 %v4529, 7
      %v4531 = vsub.s32 %v3657, %v4530
      %v4532 = vrot.slane %v3267, %v4531
      %v4533 = vsel %vm3662, %v4532, %v4528
      %v4534 = vlaneseq
      %v4535 = vshrl.u32 %v4534, 7
      %v4536 = vsub.s32 %v3664, %v4535
      %v4537 = vrot.slane %v3269, %v4536
      %v4538 = vsel %vm3669, %v4537, %v4533
      %v4539 = vlaneseq
      %v4540 = vshrl.u32 %v4539, 7
      %v4541 = vsub.s32 %v3671, %v4540
      %v4542 = vrot.slane %v3271, %v4541
      %v4543 = vsel %vm3676, %v4542, %v4538
      %v4544 = vlaneseq
      %v4545 = vshrl.u32 %v4544, 7
      %v4546 = vsub.s32 %v3678, %v4545
      %v4547 = vrot.slane %v3273, %v4546
      %v4548 = vsel %vm3683, %v4547, %v4543
      %v4549 = vlaneseq
      %v4550 = vshrl.u32 %v4549, 7
      %v4551 = vsub.s32 %v3685, %v4550
      %v4552 = vrot.slane %v3275, %v4551
      %v4553 = vsel %vm3690, %v4552, %v4548
      %v4554 = vlaneseq
      %v4555 = vshrl.u32 %v4554, 7
      %v4556 = vsub.s32 %v3692, %v4555
      %v4557 = vrot.slane %v3277, %v4556
      %v4558 = vsel %vm3697, %v4557, %v4553
      %v4559 = vlaneseq
      %v4560 = vshrl.u32 %v4559, 7
      %v4561 = vsub.s32 %v3699, %v4560
      %v4562 = vrot.slane %v3279, %v4561
      %v4563 = vsel %vm3704, %v4562, %v4558
      %v4564 = vlaneseq
      %v4565 = vshrl.u32 %v4564, 7
      %v4566 = vsub.s32 %v3706, %v4565
      %v4567 = vrot.slane %v3281, %v4566
      %v4568 = vsel %vm3711, %v4567, %v4563
      %v4569 = vlaneseq
      %v4570 = vshrl.u32 %v4569, 7
      %v4571 = vsub.s32 %v3603, %v4570
      %v4572 = vrot.slane %v3283, %v4571
      %v4573 = vlaneseq
      %v4574 = vshrl.u32 %v4573, 7
      %v4575 = vsub.s32 %v3608, %v4574
      %v4576 = vrot.slane %v3285, %v4575
      %v4577 = vsel %vm3613, %v4576, %v4572
      %v4578 = vlaneseq
      %v4579 = vshrl.u32 %v4578, 7
      %v4580 = vsub.s32 %v3615, %v4579
      %v4581 = vrot.slane %v3287, %v4580
      %v4582 = vsel %vm3620, %v4581, %v4577
      %v4583 = vlaneseq
      %v4584 = vshrl.u32 %v4583, 7
      %v4585 = vsub.s32 %v3622, %v4584
      %v4586 = vrot.slane %v3289, %v4585
      %v4587 = vsel %vm3627, %v4586, %v4582
      %v4588 = vlaneseq
      %v4589 = vshrl.u32 %v4588, 7
      %v4590 = vsub.s32 %v3629, %v4589
      %v4591 = vrot.slane %v3291, %v4590
      %v4592 = vsel %vm3634, %v4591, %v4587
      %v4593 = vlaneseq
      %v4594 = vshrl.u32 %v4593, 7
      %v4595 = vsub.s32 %v3636, %v4594
      %v4596 = vrot.slane %v3293, %v4595
      %v4597 = vsel %vm3641, %v4596, %v4592
      %v4598 = vlaneseq
      %v4599 = vshrl.u32 %v4598, 7
      %v4600 = vsub.s32 %v3643, %v4599
      %v4601 = vrot.slane %v3295, %v4600
      %v4602 = vsel %vm3648, %v4601, %v4597
      %v4603 = vlaneseq
      %v4604 = vshrl.u32 %v4603, 7
      %v4605 = vsub.s32 %v3650, %v4604
      %v4606 = vrot.slane %v3297, %v4605
      %v4607 = vsel %vm3655, %v4606, %v4602
      %v4608 = vlaneseq
      %v4609 = vshrl.u32 %v4608, 7
      %v4610 = vsub.s32 %v3657, %v4609
      %v4611 = vrot.slane %v3299, %v4610
      %v4612 = vsel %vm3662, %v4611, %v4607
      %v4613 = vlaneseq
      %v4614 = vshrl.u32 %v4613, 7
      %v4615 = vsub.s32 %v3664, %v4614
      %v4616 = vrot.slane %v3301, %v4615
      %v4617 = vsel %vm3669, %v4616, %v4612
      %v4618 = vlaneseq
      %v4619 = vshrl.u32 %v4618, 7
      %v4620 = vsub.s32 %v3671, %v4619
      %v4621 = vrot.slane %v3303, %v4620
      %v4622 = vsel %vm3676, %v4621, %v4617
      %v4623 = vlaneseq
      %v4624 = vshrl.u32 %v4623, 7
      %v4625 = vsub.s32 %v3678, %v4624
      %v4626 = vrot.slane %v3305, %v4625
      %v4627 = vsel %vm3683, %v4626, %v4622
      %v4628 = vlaneseq
      %v4629 = vshrl.u32 %v4628, 7
      %v4630 = vsub.s32 %v3685, %v4629
      %v4631 = vrot.slane %v3307, %v4630
      %v4632 = vsel %vm3690, %v4631, %v4627
      %v4633 = vlaneseq
      %v4634 = vshrl.u32 %v4633, 7
      %v4635 = vsub.s32 %v3692, %v4634
      %v4636 = vrot.slane %v3309, %v4635
      %v4637 = vsel %vm3697, %v4636, %v4632
      %v4638 = vlaneseq
      %v4639 = vshrl.u32 %v4638, 7
      %v4640 = vsub.s32 %v3699, %v4639
      %v4641 = vrot.slane %v3311, %v4640
      %v4642 = vsel %vm3704, %v4641, %v4637
      %v4643 = vlaneseq
      %v4644 = vshrl.u32 %v4643, 7
      %v4645 = vsub.s32 %v3706, %v4644
      %v4646 = vrot.slane %v3313, %v4645
      %v4647 = vsel %vm3711, %v4646, %v4642
      %v4648 = vlaneseq
      %v4649 = vshrl.u32 %v4648, 7
      %v4650 = vsub.s32 %v3603, %v4649
      %v4651 = vrot.slane %v3315, %v4650
      %v4652 = vlaneseq
      %v4653 = vshrl.u32 %v4652, 7
      %v4654 = vsub.s32 %v3608, %v4653
      %v4655 = vrot.slane %v3317, %v4654
      %v4656 = vsel %vm3613, %v4655, %v4651
      %v4657 = vlaneseq
      %v4658 = vshrl.u32 %v4657, 7
      %v4659 = vsub.s32 %v3615, %v4658
      %v4660 = vrot.slane %v3319, %v4659
      %v4661 = vsel %vm3620, %v4660, %v4656
      %v4662 = vlaneseq
      %v4663 = vshrl.u32 %v4662, 7
      %v4664 = vsub.s32 %v3622, %v4663
      %v4665 = vrot.slane %v3321, %v4664
      %v4666 = vsel %vm3627, %v4665, %v4661
      %v4667 = vlaneseq
      %v4668 = vshrl.u32 %v4667, 7
      %v4669 = vsub.s32 %v3629, %v4668
      %v4670 = vrot.slane %v3323, %v4669
      %v4671 = vsel %vm3634, %v4670, %v4666
      %v4672 = vlaneseq
      %v4673 = vshrl.u32 %v4672, 7
      %v4674 = vsub.s32 %v3636, %v4673
      %v4675 = vrot.slane %v3325, %v4674
      %v4676 = vsel %vm3641, %v4675, %v4671
      %v4677 = vlaneseq
      %v4678 = vshrl.u32 %v4677, 7
      %v4679 = vsub.s32 %v3643, %v4678
      %v4680 = vrot.slane %v3327, %v4679
      %v4681 = vsel %vm3648, %v4680, %v4676
      %v4682 = vlaneseq
      %v4683 = vshrl.u32 %v4682, 7
      %v4684 = vsub.s32 %v3650, %v4683
      %v4685 = vrot.slane %v3329, %v4684
      %v4686 = vsel %vm3655, %v4685, %v4681
      %v4687 = vlaneseq
      %v4688 = vshrl.u32 %v4687, 7
      %v4689 = vsub.s32 %v3657, %v4688
      %v4690 = vrot.slane %v3331, %v4689
      %v4691 = vsel %vm3662, %v4690, %v4686
      %v4692 = vlaneseq
      %v4693 = vshrl.u32 %v4692, 7
      %v4694 = vsub.s32 %v3664, %v4693
      %v4695 = vrot.slane %v3333, %v4694
      %v4696 = vsel %vm3669, %v4695, %v4691
      %v4697 = vlaneseq
      %v4698 = vshrl.u32 %v4697, 7
      %v4699 = vsub.s32 %v3671, %v4698
      %v4700 = vrot.slane %v3335, %v4699
      %v4701 = vsel %vm3676, %v4700, %v4696
      %v4702 = vlaneseq
      %v4703 = vshrl.u32 %v4702, 7
      %v4704 = vsub.s32 %v3678, %v4703
      %v4705 = vrot.slane %v3337, %v4704
      %v4706 = vsel %vm3683, %v4705, %v4701
      %v4707 = vlaneseq
      %v4708 = vshrl.u32 %v4707, 7
      %v4709 = vsub.s32 %v3685, %v4708
      %v4710 = vrot.slane %v3339, %v4709
      %v4711 = vsel %vm3690, %v4710, %v4706
      %v4712 = vlaneseq
      %v4713 = vshrl.u32 %v4712, 7
      %v4714 = vsub.s32 %v3692, %v4713
      %v4715 = vrot.slane %v3341, %v4714
      %v4716 = vsel %vm3697, %v4715, %v4711
      %v4717 = vlaneseq
      %v4718 = vshrl.u32 %v4717, 7
      %v4719 = vsub.s32 %v3699, %v4718
      %v4720 = vrot.slane %v3343, %v4719
      %v4721 = vsel %vm3704, %v4720, %v4716
      %v4722 = vlaneseq
      %v4723 = vshrl.u32 %v4722, 7
      %v4724 = vsub.s32 %v3706, %v4723
      %v4725 = vrot.slane %v3345, %v4724
      %v4726 = vsel %vm3711, %v4725, %v4721
      %v4727 = vlaneseq
      %v4728 = vshrl.u32 %v4727, 7
      %v4729 = vsub.s32 %v3603, %v4728
      %v4730 = vrot.slane %v3347, %v4729
      %v4731 = vlaneseq
      %v4732 = vshrl.u32 %v4731, 7
      %v4733 = vsub.s32 %v3608, %v4732
      %v4734 = vrot.slane %v3349, %v4733
      %v4735 = vsel %vm3613, %v4734, %v4730
      %v4736 = vlaneseq
      %v4737 = vshrl.u32 %v4736, 7
      %v4738 = vsub.s32 %v3615, %v4737
      %v4739 = vrot.slane %v3351, %v4738
      %v4740 = vsel %vm3620, %v4739, %v4735
      %v4741 = vlaneseq
      %v4742 = vshrl.u32 %v4741, 7
      %v4743 = vsub.s32 %v3622, %v4742
      %v4744 = vrot.slane %v3353, %v4743
      %v4745 = vsel %vm3627, %v4744, %v4740
      %v4746 = vlaneseq
      %v4747 = vshrl.u32 %v4746, 7
      %v4748 = vsub.s32 %v3629, %v4747
      %v4749 = vrot.slane %v3355, %v4748
      %v4750 = vsel %vm3634, %v4749, %v4745
      %v4751 = vlaneseq
      %v4752 = vshrl.u32 %v4751, 7
      %v4753 = vsub.s32 %v3636, %v4752
      %v4754 = vrot.slane %v3357, %v4753
      %v4755 = vsel %vm3641, %v4754, %v4750
      %v4756 = vlaneseq
      %v4757 = vshrl.u32 %v4756, 7
      %v4758 = vsub.s32 %v3643, %v4757
      %v4759 = vrot.slane %v3359, %v4758
      %v4760 = vsel %vm3648, %v4759, %v4755
      %v4761 = vlaneseq
      %v4762 = vshrl.u32 %v4761, 7
      %v4763 = vsub.s32 %v3650, %v4762
      %v4764 = vrot.slane %v3361, %v4763
      %v4765 = vsel %vm3655, %v4764, %v4760
      %v4766 = vlaneseq
      %v4767 = vshrl.u32 %v4766, 7
      %v4768 = vsub.s32 %v3657, %v4767
      %v4769 = vrot.slane %v3363, %v4768
      %v4770 = vsel %vm3662, %v4769, %v4765
      %v4771 = vlaneseq
      %v4772 = vshrl.u32 %v4771, 7
      %v4773 = vsub.s32 %v3664, %v4772
      %v4774 = vrot.slane %v3365, %v4773
      %v4775 = vsel %vm3669, %v4774, %v4770
      %v4776 = vlaneseq
      %v4777 = vshrl.u32 %v4776, 7
      %v4778 = vsub.s32 %v3671, %v4777
      %v4779 = vrot.slane %v3367, %v4778
      %v4780 = vsel %vm3676, %v4779, %v4775
      %v4781 = vlaneseq
      %v4782 = vshrl.u32 %v4781, 7
      %v4783 = vsub.s32 %v3678, %v4782
      %v4784 = vrot.slane %v3369, %v4783
      %v4785 = vsel %vm3683, %v4784, %v4780
      %v4786 = vlaneseq
      %v4787 = vshrl.u32 %v4786, 7
      %v4788 = vsub.s32 %v3685, %v4787
      %v4789 = vrot.slane %v3371, %v4788
      %v4790 = vsel %vm3690, %v4789, %v4785
      %v4791 = vlaneseq
      %v4792 = vshrl.u32 %v4791, 7
      %v4793 = vsub.s32 %v3692, %v4792
      %v4794 = vrot.slane %v3373, %v4793
      %v4795 = vsel %vm3697, %v4794, %v4790
      %v4796 = vlaneseq
      %v4797 = vshrl.u32 %v4796, 7
      %v4798 = vsub.s32 %v3699, %v4797
      %v4799 = vrot.slane %v3375, %v4798
      %v4800 = vsel %vm3704, %v4799, %v4795
      %v4801 = vlaneseq
      %v4802 = vshrl.u32 %v4801, 7
      %v4803 = vsub.s32 %v3706, %v4802
      %v4804 = vrot.slane %v3377, %v4803
      %v4805 = vsel %vm3711, %v4804, %v4800
      %v4806 = vlaneseq
      %v4807 = vshrl.u32 %v4806, 7
      %v4808 = vsub.s32 %v3603, %v4807
      %v4809 = vrot.slane %v3379, %v4808
      %v4810 = vlaneseq
      %v4811 = vshrl.u32 %v4810, 7
      %v4812 = vsub.s32 %v3608, %v4811
      %v4813 = vrot.slane %v3381, %v4812
      %v4814 = vsel %vm3613, %v4813, %v4809
      %v4815 = vlaneseq
      %v4816 = vshrl.u32 %v4815, 7
      %v4817 = vsub.s32 %v3615, %v4816
      %v4818 = vrot.slane %v3383, %v4817
      %v4819 = vsel %vm3620, %v4818, %v4814
      %v4820 = vlaneseq
      %v4821 = vshrl.u32 %v4820, 7
      %v4822 = vsub.s32 %v3622, %v4821
      %v4823 = vrot.slane %v3385, %v4822
      %v4824 = vsel %vm3627, %v4823, %v4819
      %v4825 = vlaneseq
      %v4826 = vshrl.u32 %v4825, 7
      %v4827 = vsub.s32 %v3629, %v4826
      %v4828 = vrot.slane %v3387, %v4827
      %v4829 = vsel %vm3634, %v4828, %v4824
      %v4830 = vlaneseq
      %v4831 = vshrl.u32 %v4830, 7
      %v4832 = vsub.s32 %v3636, %v4831
      %v4833 = vrot.slane %v3389, %v4832
      %v4834 = vsel %vm3641, %v4833, %v4829
      %v4835 = vlaneseq
      %v4836 = vshrl.u32 %v4835, 7
      %v4837 = vsub.s32 %v3643, %v4836
      %v4838 = vrot.slane %v3391, %v4837
      %v4839 = vsel %vm3648, %v4838, %v4834
      %v4840 = vlaneseq
      %v4841 = vshrl.u32 %v4840, 7
      %v4842 = vsub.s32 %v3650, %v4841
      %v4843 = vrot.slane %v3393, %v4842
      %v4844 = vsel %vm3655, %v4843, %v4839
      %v4845 = vlaneseq
      %v4846 = vshrl.u32 %v4845, 7
      %v4847 = vsub.s32 %v3657, %v4846
      %v4848 = vrot.slane %v3395, %v4847
      %v4849 = vsel %vm3662, %v4848, %v4844
      %v4850 = vlaneseq
      %v4851 = vshrl.u32 %v4850, 7
      %v4852 = vsub.s32 %v3664, %v4851
      %v4853 = vrot.slane %v3397, %v4852
      %v4854 = vsel %vm3669, %v4853, %v4849
      %v4855 = vlaneseq
      %v4856 = vshrl.u32 %v4855, 7
      %v4857 = vsub.s32 %v3671, %v4856
      %v4858 = vrot.slane %v3399, %v4857
      %v4859 = vsel %vm3676, %v4858, %v4854
      %v4860 = vlaneseq
      %v4861 = vshrl.u32 %v4860, 7
      %v4862 = vsub.s32 %v3678, %v4861
      %v4863 = vrot.slane %v3401, %v4862
      %v4864 = vsel %vm3683, %v4863, %v4859
      %v4865 = vlaneseq
      %v4866 = vshrl.u32 %v4865, 7
      %v4867 = vsub.s32 %v3685, %v4866
      %v4868 = vrot.slane %v3403, %v4867
      %v4869 = vsel %vm3690, %v4868, %v4864
      %v4870 = vlaneseq
      %v4871 = vshrl.u32 %v4870, 7
      %v4872 = vsub.s32 %v3692, %v4871
      %v4873 = vrot.slane %v3405, %v4872
      %v4874 = vsel %vm3697, %v4873, %v4869
      %v4875 = vlaneseq
      %v4876 = vshrl.u32 %v4875, 7
      %v4877 = vsub.s32 %v3699, %v4876
      %v4878 = vrot.slane %v3407, %v4877
      %v4879 = vsel %vm3704, %v4878, %v4874
      %v4880 = vlaneseq
      %v4881 = vshrl.u32 %v4880, 7
      %v4882 = vsub.s32 %v3706, %v4881
      %v4883 = vrot.slane %v3409, %v4882
      %v4884 = vsel %vm3711, %v4883, %v4879
      %v4885 = vlaneseq
      %v4886 = vshrl.u32 %v4885, 7
      %v4887 = vsub.s32 %v3603, %v4886
      %v4888 = vrot.slane %v3411, %v4887
      %v4889 = vlaneseq
      %v4890 = vshrl.u32 %v4889, 7
      %v4891 = vsub.s32 %v3608, %v4890
      %v4892 = vrot.slane %v3413, %v4891
      %v4893 = vsel %vm3613, %v4892, %v4888
      %v4894 = vlaneseq
      %v4895 = vshrl.u32 %v4894, 7
      %v4896 = vsub.s32 %v3615, %v4895
      %v4897 = vrot.slane %v3415, %v4896
      %v4898 = vsel %vm3620, %v4897, %v4893
      %v4899 = vlaneseq
      %v4900 = vshrl.u32 %v4899, 7
      %v4901 = vsub.s32 %v3622, %v4900
      %v4902 = vrot.slane %v3417, %v4901
      %v4903 = vsel %vm3627, %v4902, %v4898
      %v4904 = vlaneseq
      %v4905 = vshrl.u32 %v4904, 7
      %v4906 = vsub.s32 %v3629, %v4905
      %v4907 = vrot.slane %v3419, %v4906
      %v4908 = vsel %vm3634, %v4907, %v4903
      %v4909 = vlaneseq
      %v4910 = vshrl.u32 %v4909, 7
      %v4911 = vsub.s32 %v3636, %v4910
      %v4912 = vrot.slane %v3421, %v4911
      %v4913 = vsel %vm3641, %v4912, %v4908
      %v4914 = vlaneseq
      %v4915 = vshrl.u32 %v4914, 7
      %v4916 = vsub.s32 %v3643, %v4915
      %v4917 = vrot.slane %v3423, %v4916
      %v4918 = vsel %vm3648, %v4917, %v4913
      %v4919 = vlaneseq
      %v4920 = vshrl.u32 %v4919, 7
      %v4921 = vsub.s32 %v3650, %v4920
      %v4922 = vrot.slane %v3425, %v4921
      %v4923 = vsel %vm3655, %v4922, %v4918
      %v4924 = vlaneseq
      %v4925 = vshrl.u32 %v4924, 7
      %v4926 = vsub.s32 %v3657, %v4925
      %v4927 = vrot.slane %v3427, %v4926
      %v4928 = vsel %vm3662, %v4927, %v4923
      %v4929 = vlaneseq
      %v4930 = vshrl.u32 %v4929, 7
      %v4931 = vsub.s32 %v3664, %v4930
      %v4932 = vrot.slane %v3429, %v4931
      %v4933 = vsel %vm3669, %v4932, %v4928
      %v4934 = vlaneseq
      %v4935 = vshrl.u32 %v4934, 7
      %v4936 = vsub.s32 %v3671, %v4935
      %v4937 = vrot.slane %v3431, %v4936
      %v4938 = vsel %vm3676, %v4937, %v4933
      %v4939 = vlaneseq
      %v4940 = vshrl.u32 %v4939, 7
      %v4941 = vsub.s32 %v3678, %v4940
      %v4942 = vrot.slane %v3433, %v4941
      %v4943 = vsel %vm3683, %v4942, %v4938
      %v4944 = vlaneseq
      %v4945 = vshrl.u32 %v4944, 7
      %v4946 = vsub.s32 %v3685, %v4945
      %v4947 = vrot.slane %v3435, %v4946
      %v4948 = vsel %vm3690, %v4947, %v4943
      %v4949 = vlaneseq
      %v4950 = vshrl.u32 %v4949, 7
      %v4951 = vsub.s32 %v3692, %v4950
      %v4952 = vrot.slane %v3437, %v4951
      %v4953 = vsel %vm3697, %v4952, %v4948
      %v4954 = vlaneseq
      %v4955 = vshrl.u32 %v4954, 7
      %v4956 = vsub.s32 %v3699, %v4955
      %v4957 = vrot.slane %v3439, %v4956
      %v4958 = vsel %vm3704, %v4957, %v4953
      %v4959 = vlaneseq
      %v4960 = vshrl.u32 %v4959, 7
      %v4961 = vsub.s32 %v3706, %v4960
      %v4962 = vrot.slane %v3441, %v4961
      %v4963 = vsel %vm3711, %v4962, %v4958
      %v4964 = vlaneseq
      %v4965 = vshrl.u32 %v4964, 7
      %v4966 = vsub.s32 %v3603, %v4965
      %v4967 = vrot.slane %v3443, %v4966
      %v4968 = vlaneseq
      %v4969 = vshrl.u32 %v4968, 7
      %v4970 = vsub.s32 %v3608, %v4969
      %v4971 = vrot.slane %v3445, %v4970
      %v4972 = vsel %vm3613, %v4971, %v4967
      %v4973 = vlaneseq
      %v4974 = vshrl.u32 %v4973, 7
      %v4975 = vsub.s32 %v3615, %v4974
      %v4976 = vrot.slane %v3447, %v4975
      %v4977 = vsel %vm3620, %v4976, %v4972
      %v4978 = vlaneseq
      %v4979 = vshrl.u32 %v4978, 7
      %v4980 = vsub.s32 %v3622, %v4979
      %v4981 = vrot.slane %v3449, %v4980
      %v4982 = vsel %vm3627, %v4981, %v4977
      %v4983 = vlaneseq
      %v4984 = vshrl.u32 %v4983, 7
      %v4985 = vsub.s32 %v3629, %v4984
      %v4986 = vrot.slane %v3451, %v4985
      %v4987 = vsel %vm3634, %v4986, %v4982
      %v4988 = vlaneseq
      %v4989 = vshrl.u32 %v4988, 7
      %v4990 = vsub.s32 %v3636, %v4989
      %v4991 = vrot.slane %v3453, %v4990
      %v4992 = vsel %vm3641, %v4991, %v4987
      %v4993 = vlaneseq
      %v4994 = vshrl.u32 %v4993, 7
      %v4995 = vsub.s32 %v3643, %v4994
      %v4996 = vrot.slane %v3455, %v4995
      %v4997 = vsel %vm3648, %v4996, %v4992
      %v4998 = vlaneseq
      %v4999 = vshrl.u32 %v4998, 7
      %v5000 = vsub.s32 %v3650, %v4999
      %v5001 = vrot.slane %v3457, %v5000
      %v5002 = vsel %vm3655, %v5001, %v4997
      %v5003 = vlaneseq
      %v5004 = vshrl.u32 %v5003, 7
      %v5005 = vsub.s32 %v3657, %v5004
      %v5006 = vrot.slane %v3459, %v5005
      %v5007 = vsel %vm3662, %v5006, %v5002
      %v5008 = vlaneseq
      %v5009 = vshrl.u32 %v5008, 7
      %v5010 = vsub.s32 %v3664, %v5009
      %v5011 = vrot.slane %v3461, %v5010
      %v5012 = vsel %vm3669, %v5011, %v5007
      %v5013 = vlaneseq
      %v5014 = vshrl.u32 %v5013, 7
      %v5015 = vsub.s32 %v3671, %v5014
      %v5016 = vrot.slane %v3463, %v5015
      %v5017 = vsel %vm3676, %v5016, %v5012
      %v5018 = vlaneseq
      %v5019 = vshrl.u32 %v5018, 7
      %v5020 = vsub.s32 %v3678, %v5019
      %v5021 = vrot.slane %v3465, %v5020
      %v5022 = vsel %vm3683, %v5021, %v5017
      %v5023 = vlaneseq
      %v5024 = vshrl.u32 %v5023, 7
      %v5025 = vsub.s32 %v3685, %v5024
      %v5026 = vrot.slane %v3467, %v5025
      %v5027 = vsel %vm3690, %v5026, %v5022
      %v5028 = vlaneseq
      %v5029 = vshrl.u32 %v5028, 7
      %v5030 = vsub.s32 %v3692, %v5029
      %v5031 = vrot.slane %v3469, %v5030
      %v5032 = vsel %vm3697, %v5031, %v5027
      %v5033 = vlaneseq
      %v5034 = vshrl.u32 %v5033, 7
      %v5035 = vsub.s32 %v3699, %v5034
      %v5036 = vrot.slane %v3471, %v5035
      %v5037 = vsel %vm3704, %v5036, %v5032
      %v5038 = vlaneseq
      %v5039 = vshrl.u32 %v5038, 7
      %v5040 = vsub.s32 %v3706, %v5039
      %v5041 = vrot.slane %v3473, %v5040
      %v5042 = vsel %vm3711, %v5041, %v5037
      %v5043 = vsel %vm4266, %v4568, %v4489
      %v5044 = vsel %vm4268, %v4647, %v5043
      %v5045 = vsel %vm4270, %v4726, %v5044
      %v5046 = vsel %vm4272, %v4805, %v5045
      %v5047 = vsel %vm4274, %v4884, %v5046
      %v5048 = vsel %vm4276, %v4963, %v5047
      %v5049 = vsel %vm4278, %v5042, %v5048
      %5051 = vadd.xlane.f32.xlu0 %v5049
      %v5052 = vpop.xlane.xlu0 %5051
      %v5053 = vsub.f32 0.0, %v5052
      %v5054 = vrcp.pop %v5053
      %v5055 = vmul.f32 %v4282, %v5054
      %v5056 = vsub.f32 1.0, %v5055
      %vm5057 = vcmask 7168
      %5058 = vst.msk [vmem:[%s217] sm:$0xff] %vm5057, %v5056
      %p5059 = scmp.lt.s32.totalorder %s14, 1
      %s5060 = scalar_select %p5059, %s14, 1
      %s5061 = smul.addr %s5060, 8
      %s5062 = scalar_lea.vmem %s3, %s5061
      // Predicated region
      $region33: #{tpu_custom_call.1} parent=31 // pred_check
        %p5063 = pneg %p110
      $region34: #{tpu_custom_call.1} parent=31 // pred_check_branch
        %5065 = sbr.rel (%p5063) target = $region36
      $region35: #{tpu_custom_call.1} parent=31 // pred_region
        _
      $region36: #{tpu_custom_call.1} parent=31 // pred_fallthru
        _
    $region32: #{tpu_custom_call.1} parent=5 // pred_fallthru
      _
    %p5066 = scmp.le.s32.totalorder 2, %s9
    // Predicated region
    $region37: #{tpu_custom_call.1} parent=5 // pred_check
      %p5067 = pneg %p5066
    $region38: #{tpu_custom_call.1} parent=5 // pred_check_branch
      %5069 = sbr.rel (%p5067) target = $region40
    $region39: #{tpu_custom_call.1} parent=5 // pred_region
      %s5070 = ssub.s32 %s9, 2
      // Predicated region
      $region41: #{tpu_custom_call.1} parent=39 // pred_check
        %p5071 = pneg %p116
      $region42: #{tpu_custom_call.1} parent=39 // pred_check_branch
        %5073 = sbr.rel (%p5071) target = $region44
      $region43: #{tpu_custom_call.1} parent=39 // pred_region
        %p5074 = scmp.lt.s32.totalorder %s15, 1
        %s5075 = scalar_select %p5074, %s15, 1
        %s5076 = smul.addr %s5075, 8
        %s5077 = scalar_lea.vmem %s3, %s5076
      $region44: #{tpu_custom_call.1} parent=39 // pred_fallthru
        _
    $region40: #{tpu_custom_call.1} parent=5 // pred_fallthru
      _
  $region6: #{tpu_custom_call.1} parent=0 // loop_footer
    %s13 = sadd.s32 1, %s9
  $region7: #{tpu_custom_call.1} parent=0 // loop_footer_branch
    %8 = sbr.rel target = $region3
  $region8: #{tpu_custom_call.1} parent=0 // loop_exit
    _

</llo_original>
